<compile_context>
chip_gen: v7x
topology: tpu7x:2x2x1
jax: 0.10.0
libtpu: 0.0.40
codegen_flags: <defaults>
</compile_context>

<pallas_src>
import functools

import jax
import jax.numpy as jnp
from jax.experimental import pallas as pl
from jax.experimental.pallas import tpu as pltpu


# --------------------------------------------------------------------------
# Model dimensions (deterministic synthetic DINOv2-style ViT backbone)
# --------------------------------------------------------------------------
PATCH = 8          # patch size
EMBED_DIM = 32     # ViT embed dim (backbone.get_num_channels())
DEPTH = 2          # transformer blocks
NUM_HEADS = 2
HEAD_DIM = EMBED_DIM // NUM_HEADS
MLP_DIM = 4 * EMBED_DIM            # 128 -> lane-dense intermediate
N_CLASSES = 10                     # config.dataset.n_classes
HEAD_PAD = 128                     # head output padded to one full lane tile
LN_EPS = 1e-6                      # DINOv2 LayerNorm eps (PyTorch default is 1e-5)


# --------------------------------------------------------------------------
# In-kernel helpers (pure value functions, traced inside the Pallas body)
# --------------------------------------------------------------------------

def _layernorm(x, g, b, eps):
    mu = jnp.mean(x, axis=-1, keepdims=True)
    xc = x - mu
    var = jnp.mean(xc * xc, axis=-1, keepdims=True)
    return xc * jax.lax.rsqrt(var + eps) * g + b


def _gelu(x):
    # TODO(synk): PyTorch nn.GELU() is exact-erf GELU; tanh approximation is
    # used here for robust TPU lowering of the transcendental (EUP tanh).
    c = jnp.float32(0.7978845608028654)  # sqrt(2/pi)
    return 0.5 * x * (1.0 + jnp.tanh(c * (x + 0.044715 * x * x * x)))


# --------------------------------------------------------------------------
# The fused forward kernel: one grid step == one image
# --------------------------------------------------------------------------

def _vit_forward_kernel(xp_ref, pw_ref, pb_ref, cls_ref, pos_ref,
                        ln1g_ref, ln1b_ref, qkvw_ref, qkvb_ref,
                        projw_ref, projb_ref, ln2g_ref, ln2b_ref,
                        fc1w_ref, fc1b_ref, fc2w_ref, fc2b_ref,
                        ng_ref, nb_ref, hw_ref, hb_ref,
                        out_ref,
                        seq_s, attn_s,
                        *, n_patches, seq_len, depth, num_heads, head_dim):
    f32 = jnp.float32
    dim = num_heads * head_dim

    # ---- patch embedding (stride=kernel Conv2d == matmul on im2col rows) ----
    tok = jnp.dot(xp_ref[0], pw_ref[...], preferred_element_type=f32) + pb_ref[...]
    pos = pos_ref[...]

    # ---- prepend [CLS] + add positional embedding, assembled in VMEM ----
    seq_s[pl.ds(0, 1), :] = cls_ref[...] + pos[0:1, :]
    seq_s[pl.ds(1, n_patches), :] = tok + pos[1:seq_len, :]
    x = seq_s[...]                                       # (S, D)

    scale = float(head_dim) ** -0.5

    for l in range(depth):
        # ---------------- multi-head self-attention ----------------
        h = _layernorm(x, ln1g_ref[l], ln1b_ref[l], LN_EPS)
        qkv = (jnp.dot(h, qkvw_ref[l], preferred_element_type=f32)
               + qkvb_ref[l])                            # (S, 3D)
        for hh in range(num_heads):                      # static head loop
            lo = hh * head_dim
            q = qkv[:, lo:lo + head_dim]
            k = qkv[:, dim + lo:dim + lo + head_dim]
            v = qkv[:, 2 * dim + lo:2 * dim + lo + head_dim]
            s = jax.lax.dot_general(q, k, (((1,), (1,)), ((), ())),
                                    preferred_element_type=f32) * scale
            m = jnp.max(s, axis=-1, keepdims=True)
            p = jnp.exp(s - m)
            denom = jnp.sum(p, axis=-1, keepdims=True)
            o = jnp.dot(p, v, preferred_element_type=f32)
            attn_s[:, pl.ds(lo, head_dim)] = o * pl.reciprocal(denom, approx=True)
        a = attn_s[...]                                  # (S, D)
        # residual fused into the projection (no HBM round trip)
        x = x + jnp.dot(a, projw_ref[l], preferred_element_type=f32) + projb_ref[l]

        # ---------------- MLP ----------------
        h = _layernorm(x, ln2g_ref[l], ln2b_ref[l], LN_EPS)
        h = _gelu(jnp.dot(h, fc1w_ref[l], preferred_element_type=f32) + fc1b_ref[l])
        x = x + jnp.dot(h, fc2w_ref[l], preferred_element_type=f32) + fc2b_ref[l]

    # ---- final LN, 'global' feature = CLS token, decode head ----
    h = _layernorm(x, ng_ref[...], nb_ref[...], LN_EPS)
    cls_feat = h[0:1, :]                                 # (1, D)
    logits = (jnp.dot(cls_feat, hw_ref[...], preferred_element_type=f32)
              + hb_ref[...])                             # (1, 128) lane-dense
    out_ref[0] = logits.astype(out_ref.dtype)


# --------------------------------------------------------------------------
# Parameters (deterministic synthetic weights, stacked along depth)
# --------------------------------------------------------------------------

def init_params(key, in_chans, img_size):
    n_patches = (img_size // PATCH) ** 2
    seq_len = n_patches + 1
    patch_dim = in_chans * PATCH * PATCH
    L, D = DEPTH, EMBED_DIM

    def nrm(k, shape, s=0.02):
        return (s * jax.random.normal(k, shape)).astype(jnp.float32)

    keys = iter(jax.random.split(key, 16))
    head_w = nrm(next(keys), (D, N_CLASSES))
    return {
        "patch_w": nrm(next(keys), (patch_dim, D)),
        "patch_b": jnp.zeros((1, D), jnp.float32),
        "cls": nrm(next(keys), (1, D)),
        "pos": nrm(next(keys), (seq_len, D)),
        "ln1_g": jnp.ones((L, 1, D), jnp.float32),
        "ln1_b": jnp.zeros((L, 1, D), jnp.float32),
        "qkv_w": nrm(next(keys), (L, D, 3 * D)),
        "qkv_b": jnp.zeros((L, 1, 3 * D), jnp.float32),
        "proj_w": nrm(next(keys), (L, D, D)),
        "proj_b": jnp.zeros((L, 1, D), jnp.float32),
        "ln2_g": jnp.ones((L, 1, D), jnp.float32),
        "ln2_b": jnp.zeros((L, 1, D), jnp.float32),
        "fc1_w": nrm(next(keys), (L, D, MLP_DIM)),
        "fc1_b": jnp.zeros((L, 1, MLP_DIM), jnp.float32),
        "fc2_w": nrm(next(keys), (L, MLP_DIM, D)),
        "fc2_b": jnp.zeros((L, 1, D), jnp.float32),
        "norm_g": jnp.ones((1, D), jnp.float32),
        "norm_b": jnp.zeros((1, D), jnp.float32),
        # zero-padded to 128 output lanes -> unmasked lane-dense stores;
        # logits are sliced back to n_classes in the wrapper.
        "head_w": jnp.zeros((D, HEAD_PAD), jnp.float32).at[:, :N_CLASSES].set(head_w),
        "head_b": jnp.zeros((1, HEAD_PAD), jnp.float32),
    }


# --------------------------------------------------------------------------
# Forward wrapper: one fused pallas_call (grid over images)
# --------------------------------------------------------------------------

def classification_model_forward(x, params):
    """Equivalent of ClassificationModel.forward: frozen backbone -> head."""
    B, C, H, W = x.shape                  # NCHW, same axis convention as PyTorch
    nH, nW = H // PATCH, W // PATCH
    N = nH * nW
    S = N + 1
    D = EMBED_DIM
    patch_dim = C * PATCH * PATCH

    # im2col patchify: the only host-side data-movement op feeding the fused
    # kernel. Flatten order (C, P, P) matches Conv2d weight layout (D, C, P, P).
    xp = (x.reshape(B, C, nH, PATCH, nW, PATCH)
           .transpose(0, 2, 4, 1, 3, 5)
           .reshape(B, N, patch_dim))

    kernel = functools.partial(
        _vit_forward_kernel,
        n_patches=N, seq_len=S, depth=DEPTH,
        num_heads=NUM_HEADS, head_dim=HEAD_DIM)

    def const(shape):  # full-array block, same weights every grid step
        return pl.BlockSpec(shape, lambda b: (0,) * len(shape))

    out = pl.pallas_call(
        kernel,
        out_shape=jax.ShapeDtypeStruct((B, 1, HEAD_PAD), jnp.float32),
        grid=(B,),
        in_specs=[
            pl.BlockSpec((1, N, patch_dim), lambda b: (b, 0, 0)),   # per-image patches
            const((patch_dim, D)), const((1, D)),                   # patch embed
            const((1, D)), const((S, D)),                           # cls, pos
            const((DEPTH, 1, D)), const((DEPTH, 1, D)),             # ln1
            const((DEPTH, D, 3 * D)), const((DEPTH, 1, 3 * D)),     # qkv
            const((DEPTH, D, D)), const((DEPTH, 1, D)),             # proj
            const((DEPTH, 1, D)), const((DEPTH, 1, D)),             # ln2
            const((DEPTH, D, MLP_DIM)), const((DEPTH, 1, MLP_DIM)), # fc1
            const((DEPTH, MLP_DIM, D)), const((DEPTH, 1, D)),       # fc2
            const((1, D)), const((1, D)),                           # final norm
            const((D, HEAD_PAD)), const((1, HEAD_PAD)),             # decode head
        ],
        out_specs=pl.BlockSpec((1, 1, HEAD_PAD), lambda b: (b, 0, 0)),
        scratch_shapes=[
            pltpu.VMEM((S, D), jnp.float32),   # seq buffer (resident per step)
            pltpu.VMEM((S, D), jnp.float32),   # per-head attention assembly
        ],
        compiler_params=pltpu.CompilerParams(
            dimension_semantics=("parallel",)),   # images shard across TCs (v7x)
    )(xp, params["patch_w"], params["patch_b"], params["cls"], params["pos"],
      params["ln1_g"], params["ln1_b"], params["qkv_w"], params["qkv_b"],
      params["proj_w"], params["proj_b"], params["ln2_g"], params["ln2_b"],
      params["fc1_w"], params["fc1_b"], params["fc2_w"], params["fc2_b"],
      params["norm_g"], params["norm_b"], params["head_w"], params["head_b"])

    return out[:, 0, :N_CLASSES]          # (B, n_classes)


# --------------------------------------------------------------------------
# Main
# --------------------------------------------------------------------------

if __name__ == "__main__":
    key = jax.random.PRNGKey(0)
    k_x, k_p = jax.random.split(key)

    B, C, HW = 2, 3, 16
    x = jax.random.normal(k_x, (B, C, HW, HW), dtype=jnp.float32)
    params = init_params(k_p, in_chans=C, img_size=HW)

    fwd = jax.jit(classification_model_forward)
    logits = fwd(x, params)
    jax.block_until_ready(logits)

    assert logits.shape == (B, N_CLASSES), logits.shape
    assert logits.dtype == jnp.float32
    print("KERNEL_OK")
</pallas_src>

<mosaic_0001>
module attributes {stable_mosaic.version = 11 : i64} {
  func.func @_vit_forward_kernel(%arg0: i32, %arg1: memref<1x4x192xf32, #tpu.memory_space<vmem>>, %arg2: memref<192x32xf32, #tpu.memory_space<vmem>>, %arg3: memref<1x32xf32, #tpu.memory_space<vmem>>, %arg4: memref<1x32xf32, #tpu.memory_space<vmem>>, %arg5: memref<5x32xf32, #tpu.memory_space<vmem>>, %arg6: memref<2x1x32xf32, #tpu.memory_space<vmem>>, %arg7: memref<2x1x32xf32, #tpu.memory_space<vmem>>, %arg8: memref<2x32x96xf32, #tpu.memory_space<vmem>>, %arg9: memref<2x1x96xf32, #tpu.memory_space<vmem>>, %arg10: memref<2x32x32xf32, #tpu.memory_space<vmem>>, %arg11: memref<2x1x32xf32, #tpu.memory_space<vmem>>, %arg12: memref<2x1x32xf32, #tpu.memory_space<vmem>>, %arg13: memref<2x1x32xf32, #tpu.memory_space<vmem>>, %arg14: memref<2x32x128xf32, #tpu.memory_space<vmem>>, %arg15: memref<2x1x128xf32, #tpu.memory_space<vmem>>, %arg16: memref<2x128x32xf32, #tpu.memory_space<vmem>>, %arg17: memref<2x1x32xf32, #tpu.memory_space<vmem>>, %arg18: memref<1x32xf32, #tpu.memory_space<vmem>>, %arg19: memref<1x32xf32, #tpu.memory_space<vmem>>, %arg20: memref<32x128xf32, #tpu.memory_space<vmem>>, %arg21: memref<1x128xf32, #tpu.memory_space<vmem>>, %arg22: memref<1x1x128xf32, #tpu.memory_space<vmem>>, %arg23: memref<5x32xf32, #tpu.memory_space<vmem>>, %arg24: memref<5x32xf32, #tpu.memory_space<vmem>>) attributes {dimension_semantics = [#tpu.dimension_semantics<parallel>], iteration_bounds = array<i64: 2>, scalar_prefetch = 0 : i64, scratch_operands = 2 : i64, tpu.core_type = #tpu.core_type<tc>, window_params = [{transform_indices = @transform_0, window_bounds = array<i64: 1, 4, 192>}, {pipeline_mode = #tpu.pipeline_mode<synchronous>, transform_indices = @transform_1, window_bounds = array<i64: 192, 32>}, {pipeline_mode = #tpu.pipeline_mode<synchronous>, transform_indices = @transform_2, window_bounds = array<i64: 1, 32>}, {pipeline_mode = #tpu.pipeline_mode<synchronous>, transform_indices = @transform_3, window_bounds = array<i64: 1, 32>}, {pipeline_mode = #tpu.pipeline_mode<synchronous>, transform_indices = @transform_4, window_bounds = array<i64: 5, 32>}, {pipeline_mode = #tpu.pipeline_mode<synchronous>, transform_indices = @transform_5, window_bounds = array<i64: 2, 1, 32>}, {pipeline_mode = #tpu.pipeline_mode<synchronous>, transform_indices = @transform_6, window_bounds = array<i64: 2, 1, 32>}, {pipeline_mode = #tpu.pipeline_mode<synchronous>, transform_indices = @transform_7, window_bounds = array<i64: 2, 32, 96>}, {pipeline_mode = #tpu.pipeline_mode<synchronous>, transform_indices = @transform_8, window_bounds = array<i64: 2, 1, 96>}, {pipeline_mode = #tpu.pipeline_mode<synchronous>, transform_indices = @transform_9, window_bounds = array<i64: 2, 32, 32>}, {pipeline_mode = #tpu.pipeline_mode<synchronous>, transform_indices = @transform_10, window_bounds = array<i64: 2, 1, 32>}, {pipeline_mode = #tpu.pipeline_mode<synchronous>, transform_indices = @transform_11, window_bounds = array<i64: 2, 1, 32>}, {pipeline_mode = #tpu.pipeline_mode<synchronous>, transform_indices = @transform_12, window_bounds = array<i64: 2, 1, 32>}, {pipeline_mode = #tpu.pipeline_mode<synchronous>, transform_indices = @transform_13, window_bounds = array<i64: 2, 32, 128>}, {pipeline_mode = #tpu.pipeline_mode<synchronous>, transform_indices = @transform_14, window_bounds = array<i64: 2, 1, 128>}, {pipeline_mode = #tpu.pipeline_mode<synchronous>, transform_indices = @transform_15, window_bounds = array<i64: 2, 128, 32>}, {pipeline_mode = #tpu.pipeline_mode<synchronous>, transform_indices = @transform_16, window_bounds = array<i64: 2, 1, 32>}, {pipeline_mode = #tpu.pipeline_mode<synchronous>, transform_indices = @transform_17, window_bounds = array<i64: 1, 32>}, {pipeline_mode = #tpu.pipeline_mode<synchronous>, transform_indices = @transform_18, window_bounds = array<i64: 1, 32>}, {pipeline_mode = #tpu.pipeline_mode<synchronous>, transform_indices = @transform_19, window_bounds = array<i64: 32, 128>}, {pipeline_mode = #tpu.pipeline_mode<synchronous>, transform_indices = @transform_20, window_bounds = array<i64: 1, 128>}, {transform_indices = @transform_21, window_bounds = array<i64: 1, 1, 128>}]} {
    %c0 = arith.constant 0 : index
    %c0_0 = arith.constant 0 : index
    %c0_1 = arith.constant 0 : index
    %0 = vector.load %arg1[%c0, %c0_0, %c0_1] : memref<1x4x192xf32, #tpu.memory_space<vmem>>, vector<1x4x192xf32>
    %1 = vector.shape_cast %0 : vector<1x4x192xf32> to vector<4x192xf32>
    %c0_2 = arith.constant 0 : index
    %c0_3 = arith.constant 0 : index
    %2 = vector.load %arg2[%c0_2, %c0_3] : memref<192x32xf32, #tpu.memory_space<vmem>>, vector<192x32xf32>
    %cst = arith.constant dense<0.000000e+00> : vector<4x32xf32>
    %3 = tpu.matmul %1, %2, %cst {dimension_numbers = #tpu.dot_dimension_numbers<[1], [0], [0], [1], [0, 0, 1, 1], [], []>} : vector<4x192xf32>, vector<192x32xf32>, vector<4x32xf32> -> vector<4x32xf32>
    %c0_4 = arith.constant 0 : index
    %c0_5 = arith.constant 0 : index
    %4 = vector.load %arg3[%c0_4, %c0_5] : memref<1x32xf32, #tpu.memory_space<vmem>>, vector<1x32xf32>
    %5 = vector.broadcast %4 : vector<1x32xf32> to vector<4x32xf32>
    %6 = arith.addf %3, %5 : vector<4x32xf32>
    %c0_6 = arith.constant 0 : index
    %c0_7 = arith.constant 0 : index
    %7 = vector.load %arg5[%c0_6, %c0_7] : memref<5x32xf32, #tpu.memory_space<vmem>>, vector<5x32xf32>
    %c0_8 = arith.constant 0 : index
    %c0_9 = arith.constant 0 : index
    %8 = vector.load %arg4[%c0_8, %c0_9] : memref<1x32xf32, #tpu.memory_space<vmem>>, vector<1x32xf32>
    %9 = vector.extract_strided_slice %7 {offsets = [0, 0], sizes = [1, 32], strides = [1, 1]} : vector<5x32xf32> to vector<1x32xf32>
    %10 = arith.addf %8, %9 : vector<1x32xf32>
    %c0_10 = arith.constant 0 : index
    %c0_11 = arith.constant 0 : index
    %11 = vector.load %arg23[%c0_10, %c0_11] : memref<5x32xf32, #tpu.memory_space<vmem>>, vector<1x32xf32>
    tpu.vector_store %arg23[%c0_10, %c0_11], %10 {strides = array<i32>} : memref<5x32xf32, #tpu.memory_space<vmem>>, vector<1x32xf32>,
    %12 = vector.extract_strided_slice %7 {offsets = [1, 0], sizes = [4, 32], strides = [1, 1]} : vector<5x32xf32> to vector<4x32xf32>
    %13 = arith.addf %6, %12 : vector<4x32xf32>
    %c1 = arith.constant 1 : index
    %c0_12 = arith.constant 0 : index
    %14 = vector.load %arg23[%c1, %c0_12] : memref<5x32xf32, #tpu.memory_space<vmem>>, vector<4x32xf32>
    tpu.vector_store %arg23[%c1, %c0_12], %13 {strides = array<i32>} : memref<5x32xf32, #tpu.memory_space<vmem>>, vector<4x32xf32>,
    %c0_13 = arith.constant 0 : index
    %c0_14 = arith.constant 0 : index
    %15 = vector.load %arg23[%c0_13, %c0_14] : memref<5x32xf32, #tpu.memory_space<vmem>>, vector<5x32xf32>
    %c0_15 = arith.constant 0 : index
    %c0_16 = arith.constant 0 : index
    %c0_17 = arith.constant 0 : index
    %16 = vector.load %arg6[%c0_15, %c0_16, %c0_17] : memref<2x1x32xf32, #tpu.memory_space<vmem>>, vector<1x1x32xf32>
    %17 = vector.shape_cast %16 : vector<1x1x32xf32> to vector<1x32xf32>
    %c0_18 = arith.constant 0 : index
    %c0_19 = arith.constant 0 : index
    %c0_20 = arith.constant 0 : index
    %18 = vector.load %arg7[%c0_18, %c0_19, %c0_20] : memref<2x1x32xf32, #tpu.memory_space<vmem>>, vector<1x1x32xf32>
    %19 = vector.shape_cast %18 : vector<1x1x32xf32> to vector<1x32xf32>
    %cst_21 = arith.constant dense<0.000000e+00> : vector<5xf32>
    %20 = vector.multi_reduction <add>, %15, %cst_21 [1] : vector<5x32xf32> to vector<5xf32>
    %21 = vector.shape_cast %20 : vector<5xf32> to vector<5x1xf32>
    %cst_22 = arith.constant 3.200000e+01 : f32
    %22 = vector.broadcast %cst_22 : f32 to vector<5x1xf32>
    %23 = arith.divf %21, %22 : vector<5x1xf32>
    %24 = vector.broadcast %23 : vector<5x1xf32> to vector<5x32xf32>
    %25 = arith.subf %15, %24 : vector<5x32xf32>
    %26 = arith.mulf %25, %25 : vector<5x32xf32>
    %cst_23 = arith.constant dense<0.000000e+00> : vector<5xf32>
    %27 = vector.multi_reduction <add>, %26, %cst_23 [1] : vector<5x32xf32> to vector<5xf32>
    %28 = vector.shape_cast %27 : vector<5xf32> to vector<5x1xf32>
    %cst_24 = arith.constant 3.200000e+01 : f32
    %29 = vector.broadcast %cst_24 : f32 to vector<5x1xf32>
    %30 = arith.divf %28, %29 : vector<5x1xf32>
    %cst_25 = arith.constant 9.99999997E-7 : f32
    %31 = vector.broadcast %cst_25 : f32 to vector<5x1xf32>
    %32 = arith.addf %30, %31 : vector<5x1xf32>
    %33 = math.rsqrt %32 : vector<5x1xf32>
    %34 = vector.broadcast %33 : vector<5x1xf32> to vector<5x32xf32>
    %35 = arith.mulf %25, %34 : vector<5x32xf32>
    %36 = vector.broadcast %17 : vector<1x32xf32> to vector<5x32xf32>
    %37 = arith.mulf %35, %36 : vector<5x32xf32>
    %38 = vector.broadcast %19 : vector<1x32xf32> to vector<5x32xf32>
    %39 = arith.addf %37, %38 : vector<5x32xf32>
    %c0_26 = arith.constant 0 : index
    %c0_27 = arith.constant 0 : index
    %c0_28 = arith.constant 0 : index
    %40 = vector.load %arg8[%c0_26, %c0_27, %c0_28] : memref<2x32x96xf32, #tpu.memory_space<vmem>>, vector<1x32x96xf32>
    %41 = vector.shape_cast %40 : vector<1x32x96xf32> to vector<32x96xf32>
    %cst_29 = arith.constant dense<0.000000e+00> : vector<5x96xf32>
    %42 = tpu.matmul %39, %41, %cst_29 {dimension_numbers = #tpu.dot_dimension_numbers<[1], [0], [0], [1], [0, 0, 1, 1], [], []>} : vector<5x32xf32>, vector<32x96xf32>, vector<5x96xf32> -> vector<5x96xf32>
    %c0_30 = arith.constant 0 : index
    %c0_31 = arith.constant 0 : index
    %c0_32 = arith.constant 0 : index
    %43 = vector.load %arg9[%c0_30, %c0_31, %c0_32] : memref<2x1x96xf32, #tpu.memory_space<vmem>>, vector<1x1x96xf32>
    %44 = vector.shape_cast %43 : vector<1x1x96xf32> to vector<1x96xf32>
    %45 = vector.broadcast %44 : vector<1x96xf32> to vector<5x96xf32>
    %46 = arith.addf %42, %45 : vector<5x96xf32>
    %47 = vector.extract_strided_slice %46 {offsets = [0, 0], sizes = [5, 16], strides = [1, 1]} : vector<5x96xf32> to vector<5x16xf32>
    %48 = vector.extract_strided_slice %46 {offsets = [0, 32], sizes = [5, 16], strides = [1, 1]} : vector<5x96xf32> to vector<5x16xf32>
    %49 = vector.extract_strided_slice %46 {offsets = [0, 64], sizes = [5, 16], strides = [1, 1]} : vector<5x96xf32> to vector<5x16xf32>
    %cst_33 = arith.constant dense<0.000000e+00> : vector<5x5xf32>
    %50 = tpu.matmul %47, %48, %cst_33 {dimension_numbers = #tpu.dot_dimension_numbers<[1], [1], [0], [0], [0, 0, 1, 0], [], []>} : vector<5x16xf32>, vector<5x16xf32>, vector<5x5xf32> -> vector<5x5xf32>
    %cst_34 = arith.constant 2.500000e-01 : f32
    %51 = vector.broadcast %cst_34 : f32 to vector<5x5xf32>
    %52 = arith.mulf %50, %51 : vector<5x5xf32>
    %cst_35 = arith.constant dense<0xFF800000> : vector<5xf32>
    %53 = vector.multi_reduction <maximumf>, %52, %cst_35 [1] : vector<5x5xf32> to vector<5xf32>
    %54 = vector.shape_cast %53 : vector<5xf32> to vector<5x1xf32>
    %55 = vector.broadcast %54 : vector<5x1xf32> to vector<5x5xf32>
    %56 = arith.subf %52, %55 : vector<5x5xf32>
    %57 = math.exp %56 : vector<5x5xf32>
    %cst_36 = arith.constant dense<0.000000e+00> : vector<5xf32>
    %58 = vector.multi_reduction <add>, %57, %cst_36 [1] : vector<5x5xf32> to vector<5xf32>
    %59 = vector.shape_cast %58 : vector<5xf32> to vector<5x1xf32>
    %cst_37 = arith.constant dense<0.000000e+00> : vector<5x16xf32>
    %60 = tpu.matmul %57, %49, %cst_37 {dimension_numbers = #tpu.dot_dimension_numbers<[1], [0], [0], [1], [0, 0, 1, 1], [], []>} : vector<5x5xf32>, vector<5x16xf32>, vector<5x16xf32> -> vector<5x16xf32>
    %61 = tpu.reciprocal %59 {approx = true} : vector<5x1xf32> -> vector<5x1xf32>
    %62 = vector.broadcast %61 : vector<5x1xf32> to vector<5x16xf32>
    %63 = arith.mulf %60, %62 : vector<5x16xf32>
    %c0_38 = arith.constant 0 : index
    %c0_39 = arith.constant 0 : index
    %64 = vector.load %arg24[%c0_38, %c0_39] : memref<5x32xf32, #tpu.memory_space<vmem>>, vector<5x16xf32>
    tpu.vector_store %arg24[%c0_38, %c0_39], %63 {strides = array<i32>} : memref<5x32xf32, #tpu.memory_space<vmem>>, vector<5x16xf32>,
    %65 = vector.extract_strided_slice %46 {offsets = [0, 16], sizes = [5, 16], strides = [1, 1]} : vector<5x96xf32> to vector<5x16xf32>
    %66 = vector.extract_strided_slice %46 {offsets = [0, 48], sizes = [5, 16], strides = [1, 1]} : vector<5x96xf32> to vector<5x16xf32>
    %67 = vector.extract_strided_slice %46 {offsets = [0, 80], sizes = [5, 16], strides = [1, 1]} : vector<5x96xf32> to vector<5x16xf32>
    %cst_40 = arith.constant dense<0.000000e+00> : vector<5x5xf32>
    %68 = tpu.matmul %65, %66, %cst_40 {dimension_numbers = #tpu.dot_dimension_numbers<[1], [1], [0], [0], [0, 0, 1, 0], [], []>} : vector<5x16xf32>, vector<5x16xf32>, vector<5x5xf32> -> vector<5x5xf32>
    %cst_41 = arith.constant 2.500000e-01 : f32
    %69 = vector.broadcast %cst_41 : f32 to vector<5x5xf32>
    %70 = arith.mulf %68, %69 : vector<5x5xf32>
    %cst_42 = arith.constant dense<0xFF800000> : vector<5xf32>
    %71 = vector.multi_reduction <maximumf>, %70, %cst_42 [1] : vector<5x5xf32> to vector<5xf32>
    %72 = vector.shape_cast %71 : vector<5xf32> to vector<5x1xf32>
    %73 = vector.broadcast %72 : vector<5x1xf32> to vector<5x5xf32>
    %74 = arith.subf %70, %73 : vector<5x5xf32>
    %75 = math.exp %74 : vector<5x5xf32>
    %cst_43 = arith.constant dense<0.000000e+00> : vector<5xf32>
    %76 = vector.multi_reduction <add>, %75, %cst_43 [1] : vector<5x5xf32> to vector<5xf32>
    %77 = vector.shape_cast %76 : vector<5xf32> to vector<5x1xf32>
    %cst_44 = arith.constant dense<0.000000e+00> : vector<5x16xf32>
    %78 = tpu.matmul %75, %67, %cst_44 {dimension_numbers = #tpu.dot_dimension_numbers<[1], [0], [0], [1], [0, 0, 1, 1], [], []>} : vector<5x5xf32>, vector<5x16xf32>, vector<5x16xf32> -> vector<5x16xf32>
    %79 = tpu.reciprocal %77 {approx = true} : vector<5x1xf32> -> vector<5x1xf32>
    %80 = vector.broadcast %79 : vector<5x1xf32> to vector<5x16xf32>
    %81 = arith.mulf %78, %80 : vector<5x16xf32>
    %c0_45 = arith.constant 0 : index
    %c16 = arith.constant 16 : index
    %82 = vector.load %arg24[%c0_45, %c16] : memref<5x32xf32, #tpu.memory_space<vmem>>, vector<5x16xf32>
    tpu.vector_store %arg24[%c0_45, %c16], %81 {strides = array<i32>} : memref<5x32xf32, #tpu.memory_space<vmem>>, vector<5x16xf32>,
    %c0_46 = arith.constant 0 : index
    %c0_47 = arith.constant 0 : index
    %83 = vector.load %arg24[%c0_46, %c0_47] : memref<5x32xf32, #tpu.memory_space<vmem>>, vector<5x32xf32>
    %c0_48 = arith.constant 0 : index
    %c0_49 = arith.constant 0 : index
    %c0_50 = arith.constant 0 : index
    %84 = vector.load %arg10[%c0_48, %c0_49, %c0_50] : memref<2x32x32xf32, #tpu.memory_space<vmem>>, vector<1x32x32xf32>
    %85 = vector.shape_cast %84 : vector<1x32x32xf32> to vector<32x32xf32>
    %cst_51 = arith.constant dense<0.000000e+00> : vector<5x32xf32>
    %86 = tpu.matmul %83, %85, %cst_51 {dimension_numbers = #tpu.dot_dimension_numbers<[1], [0], [0], [1], [0, 0, 1, 1], [], []>} : vector<5x32xf32>, vector<32x32xf32>, vector<5x32xf32> -> vector<5x32xf32>
    %87 = arith.addf %15, %86 : vector<5x32xf32>
    %c0_52 = arith.constant 0 : index
    %c0_53 = arith.constant 0 : index
    %c0_54 = arith.constant 0 : index
    %88 = vector.load %arg11[%c0_52, %c0_53, %c0_54] : memref<2x1x32xf32, #tpu.memory_space<vmem>>, vector<1x1x32xf32>
    %89 = vector.shape_cast %88 : vector<1x1x32xf32> to vector<1x32xf32>
    %90 = vector.broadcast %89 : vector<1x32xf32> to vector<5x32xf32>
    %91 = arith.addf %87, %90 : vector<5x32xf32>
    %c0_55 = arith.constant 0 : index
    %c0_56 = arith.constant 0 : index
    %c0_57 = arith.constant 0 : index
    %92 = vector.load %arg12[%c0_55, %c0_56, %c0_57] : memref<2x1x32xf32, #tpu.memory_space<vmem>>, vector<1x1x32xf32>
    %93 = vector.shape_cast %92 : vector<1x1x32xf32> to vector<1x32xf32>
    %c0_58 = arith.constant 0 : index
    %c0_59 = arith.constant 0 : index
    %c0_60 = arith.constant 0 : index
    %94 = vector.load %arg13[%c0_58, %c0_59, %c0_60] : memref<2x1x32xf32, #tpu.memory_space<vmem>>, vector<1x1x32xf32>
    %95 = vector.shape_cast %94 : vector<1x1x32xf32> to vector<1x32xf32>
    %cst_61 = arith.constant dense<0.000000e+00> : vector<5xf32>
    %96 = vector.multi_reduction <add>, %91, %cst_61 [1] : vector<5x32xf32> to vector<5xf32>
    %97 = vector.shape_cast %96 : vector<5xf32> to vector<5x1xf32>
    %cst_62 = arith.constant 3.200000e+01 : f32
    %98 = vector.broadcast %cst_62 : f32 to vector<5x1xf32>
    %99 = arith.divf %97, %98 : vector<5x1xf32>
    %100 = vector.broadcast %99 : vector<5x1xf32> to vector<5x32xf32>
    %101 = arith.subf %91, %100 : vector<5x32xf32>
    %102 = arith.mulf %101, %101 : vector<5x32xf32>
    %cst_63 = arith.constant dense<0.000000e+00> : vector<5xf32>
    %103 = vector.multi_reduction <add>, %102, %cst_63 [1] : vector<5x32xf32> to vector<5xf32>
    %104 = vector.shape_cast %103 : vector<5xf32> to vector<5x1xf32>
    %cst_64 = arith.constant 3.200000e+01 : f32
    %105 = vector.broadcast %cst_64 : f32 to vector<5x1xf32>
    %106 = arith.divf %104, %105 : vector<5x1xf32>
    %cst_65 = arith.constant 9.99999997E-7 : f32
    %107 = vector.broadcast %cst_65 : f32 to vector<5x1xf32>
    %108 = arith.addf %106, %107 : vector<5x1xf32>
    %109 = math.rsqrt %108 : vector<5x1xf32>
    %110 = vector.broadcast %109 : vector<5x1xf32> to vector<5x32xf32>
    %111 = arith.mulf %101, %110 : vector<5x32xf32>
    %112 = vector.broadcast %93 : vector<1x32xf32> to vector<5x32xf32>
    %113 = arith.mulf %111, %112 : vector<5x32xf32>
    %114 = vector.broadcast %95 : vector<1x32xf32> to vector<5x32xf32>
    %115 = arith.addf %113, %114 : vector<5x32xf32>
    %c0_66 = arith.constant 0 : index
    %c0_67 = arith.constant 0 : index
    %c0_68 = arith.constant 0 : index
    %116 = vector.load %arg14[%c0_66, %c0_67, %c0_68] : memref<2x32x128xf32, #tpu.memory_space<vmem>>, vector<1x32x128xf32>
    %117 = vector.shape_cast %116 : vector<1x32x128xf32> to vector<32x128xf32>
    %cst_69 = arith.constant dense<0.000000e+00> : vector<5x128xf32>
    %118 = tpu.matmul %115, %117, %cst_69 {dimension_numbers = #tpu.dot_dimension_numbers<[1], [0], [0], [1], [0, 0, 1, 1], [], []>} : vector<5x32xf32>, vector<32x128xf32>, vector<5x128xf32> -> vector<5x128xf32>
    %c0_70 = arith.constant 0 : index
    %c0_71 = arith.constant 0 : index
    %c0_72 = arith.constant 0 : index
    %119 = vector.load %arg15[%c0_70, %c0_71, %c0_72] : memref<2x1x128xf32, #tpu.memory_space<vmem>>, vector<1x1x128xf32>
    %120 = vector.shape_cast %119 : vector<1x1x128xf32> to vector<1x128xf32>
    %121 = vector.broadcast %120 : vector<1x128xf32> to vector<5x128xf32>
    %122 = arith.addf %118, %121 : vector<5x128xf32>
    %cst_73 = arith.constant 5.000000e-01 : f32
    %123 = vector.broadcast %cst_73 : f32 to vector<5x128xf32>
    %124 = arith.mulf %123, %122 : vector<5x128xf32>
    %cst_74 = arith.constant 4.471500e-02 : f32
    %125 = vector.broadcast %cst_74 : f32 to vector<5x128xf32>
    %126 = arith.mulf %125, %122 : vector<5x128xf32>
    %127 = arith.mulf %126, %122 : vector<5x128xf32>
    %128 = arith.mulf %127, %122 : vector<5x128xf32>
    %129 = arith.addf %122, %128 : vector<5x128xf32>
    %cst_75 = arith.constant 0.797884583 : f32
    %130 = vector.broadcast %cst_75 : f32 to vector<5x128xf32>
    %131 = arith.mulf %130, %129 : vector<5x128xf32>
    %132 = math.tanh %131 : vector<5x128xf32>
    %cst_76 = arith.constant 1.000000e+00 : f32
    %133 = vector.broadcast %cst_76 : f32 to vector<5x128xf32>
    %134 = arith.addf %133, %132 : vector<5x128xf32>
    %135 = arith.mulf %124, %134 : vector<5x128xf32>
    %c0_77 = arith.constant 0 : index
    %c0_78 = arith.constant 0 : index
    %c0_79 = arith.constant 0 : index
    %136 = vector.load %arg16[%c0_77, %c0_78, %c0_79] : memref<2x128x32xf32, #tpu.memory_space<vmem>>, vector<1x128x32xf32>
    %137 = vector.shape_cast %136 : vector<1x128x32xf32> to vector<128x32xf32>
    %cst_80 = arith.constant dense<0.000000e+00> : vector<5x32xf32>
    %138 = tpu.matmul %135, %137, %cst_80 {dimension_numbers = #tpu.dot_dimension_numbers<[1], [0], [0], [1], [0, 0, 1, 1], [], []>} : vector<5x128xf32>, vector<128x32xf32>, vector<5x32xf32> -> vector<5x32xf32>
    %139 = arith.addf %91, %138 : vector<5x32xf32>
    %c0_81 = arith.constant 0 : index
    %c0_82 = arith.constant 0 : index
    %c0_83 = arith.constant 0 : index
    %140 = vector.load %arg17[%c0_81, %c0_82, %c0_83] : memref<2x1x32xf32, #tpu.memory_space<vmem>>, vector<1x1x32xf32>
    %141 = vector.shape_cast %140 : vector<1x1x32xf32> to vector<1x32xf32>
    %142 = vector.broadcast %141 : vector<1x32xf32> to vector<5x32xf32>
    %143 = arith.addf %139, %142 : vector<5x32xf32>
    %c1_84 = arith.constant 1 : index
    %c0_85 = arith.constant 0 : index
    %c0_86 = arith.constant 0 : index
    %144 = vector.load %arg6[%c1_84, %c0_85, %c0_86] : memref<2x1x32xf32, #tpu.memory_space<vmem>>, vector<1x1x32xf32>
    %145 = vector.shape_cast %144 : vector<1x1x32xf32> to vector<1x32xf32>
    %c1_87 = arith.constant 1 : index
    %c0_88 = arith.constant 0 : index
    %c0_89 = arith.constant 0 : index
    %146 = vector.load %arg7[%c1_87, %c0_88, %c0_89] : memref<2x1x32xf32, #tpu.memory_space<vmem>>, vector<1x1x32xf32>
    %147 = vector.shape_cast %146 : vector<1x1x32xf32> to vector<1x32xf32>
    %cst_90 = arith.constant dense<0.000000e+00> : vector<5xf32>
    %148 = vector.multi_reduction <add>, %143, %cst_90 [1] : vector<5x32xf32> to vector<5xf32>
    %149 = vector.shape_cast %148 : vector<5xf32> to vector<5x1xf32>
    %cst_91 = arith.constant 3.200000e+01 : f32
    %150 = vector.broadcast %cst_91 : f32 to vector<5x1xf32>
    %151 = arith.divf %149, %150 : vector<5x1xf32>
    %152 = vector.broadcast %151 : vector<5x1xf32> to vector<5x32xf32>
    %153 = arith.subf %143, %152 : vector<5x32xf32>
    %154 = arith.mulf %153, %153 : vector<5x32xf32>
    %cst_92 = arith.constant dense<0.000000e+00> : vector<5xf32>
    %155 = vector.multi_reduction <add>, %154, %cst_92 [1] : vector<5x32xf32> to vector<5xf32>
    %156 = vector.shape_cast %155 : vector<5xf32> to vector<5x1xf32>
    %cst_93 = arith.constant 3.200000e+01 : f32
    %157 = vector.broadcast %cst_93 : f32 to vector<5x1xf32>
    %158 = arith.divf %156, %157 : vector<5x1xf32>
    %cst_94 = arith.constant 9.99999997E-7 : f32
    %159 = vector.broadcast %cst_94 : f32 to vector<5x1xf32>
    %160 = arith.addf %158, %159 : vector<5x1xf32>
    %161 = math.rsqrt %160 : vector<5x1xf32>
    %162 = vector.broadcast %161 : vector<5x1xf32> to vector<5x32xf32>
    %163 = arith.mulf %153, %162 : vector<5x32xf32>
    %164 = vector.broadcast %145 : vector<1x32xf32> to vector<5x32xf32>
    %165 = arith.mulf %163, %164 : vector<5x32xf32>
    %166 = vector.broadcast %147 : vector<1x32xf32> to vector<5x32xf32>
    %167 = arith.addf %165, %166 : vector<5x32xf32>
    %c1_95 = arith.constant 1 : index
    %c0_96 = arith.constant 0 : index
    %c0_97 = arith.constant 0 : index
    %168 = vector.load %arg8[%c1_95, %c0_96, %c0_97] : memref<2x32x96xf32, #tpu.memory_space<vmem>>, vector<1x32x96xf32>
    %169 = vector.shape_cast %168 : vector<1x32x96xf32> to vector<32x96xf32>
    %cst_98 = arith.constant dense<0.000000e+00> : vector<5x96xf32>
    %170 = tpu.matmul %167, %169, %cst_98 {dimension_numbers = #tpu.dot_dimension_numbers<[1], [0], [0], [1], [0, 0, 1, 1], [], []>} : vector<5x32xf32>, vector<32x96xf32>, vector<5x96xf32> -> vector<5x96xf32>
    %c1_99 = arith.constant 1 : index
    %c0_100 = arith.constant 0 : index
    %c0_101 = arith.constant 0 : index
    %171 = vector.load %arg9[%c1_99, %c0_100, %c0_101] : memref<2x1x96xf32, #tpu.memory_space<vmem>>, vector<1x1x96xf32>
    %172 = vector.shape_cast %171 : vector<1x1x96xf32> to vector<1x96xf32>
    %173 = vector.broadcast %172 : vector<1x96xf32> to vector<5x96xf32>
    %174 = arith.addf %170, %173 : vector<5x96xf32>
    %175 = vector.extract_strided_slice %174 {offsets = [0, 0], sizes = [5, 16], strides = [1, 1]} : vector<5x96xf32> to vector<5x16xf32>
    %176 = vector.extract_strided_slice %174 {offsets = [0, 32], sizes = [5, 16], strides = [1, 1]} : vector<5x96xf32> to vector<5x16xf32>
    %177 = vector.extract_strided_slice %174 {offsets = [0, 64], sizes = [5, 16], strides = [1, 1]} : vector<5x96xf32> to vector<5x16xf32>
    %cst_102 = arith.constant dense<0.000000e+00> : vector<5x5xf32>
    %178 = tpu.matmul %175, %176, %cst_102 {dimension_numbers = #tpu.dot_dimension_numbers<[1], [1], [0], [0], [0, 0, 1, 0], [], []>} : vector<5x16xf32>, vector<5x16xf32>, vector<5x5xf32> -> vector<5x5xf32>
    %cst_103 = arith.constant 2.500000e-01 : f32
    %179 = vector.broadcast %cst_103 : f32 to vector<5x5xf32>
    %180 = arith.mulf %178, %179 : vector<5x5xf32>
    %cst_104 = arith.constant dense<0xFF800000> : vector<5xf32>
    %181 = vector.multi_reduction <maximumf>, %180, %cst_104 [1] : vector<5x5xf32> to vector<5xf32>
    %182 = vector.shape_cast %181 : vector<5xf32> to vector<5x1xf32>
    %183 = vector.broadcast %182 : vector<5x1xf32> to vector<5x5xf32>
    %184 = arith.subf %180, %183 : vector<5x5xf32>
    %185 = math.exp %184 : vector<5x5xf32>
    %cst_105 = arith.constant dense<0.000000e+00> : vector<5xf32>
    %186 = vector.multi_reduction <add>, %185, %cst_105 [1] : vector<5x5xf32> to vector<5xf32>
    %187 = vector.shape_cast %186 : vector<5xf32> to vector<5x1xf32>
    %cst_106 = arith.constant dense<0.000000e+00> : vector<5x16xf32>
    %188 = tpu.matmul %185, %177, %cst_106 {dimension_numbers = #tpu.dot_dimension_numbers<[1], [0], [0], [1], [0, 0, 1, 1], [], []>} : vector<5x5xf32>, vector<5x16xf32>, vector<5x16xf32> -> vector<5x16xf32>
    %189 = tpu.reciprocal %187 {approx = true} : vector<5x1xf32> -> vector<5x1xf32>
    %190 = vector.broadcast %189 : vector<5x1xf32> to vector<5x16xf32>
    %191 = arith.mulf %188, %190 : vector<5x16xf32>
    %c0_107 = arith.constant 0 : index
    %c0_108 = arith.constant 0 : index
    %192 = vector.load %arg24[%c0_107, %c0_108] : memref<5x32xf32, #tpu.memory_space<vmem>>, vector<5x16xf32>
    tpu.vector_store %arg24[%c0_107, %c0_108], %191 {strides = array<i32>} : memref<5x32xf32, #tpu.memory_space<vmem>>, vector<5x16xf32>,
    %193 = vector.extract_strided_slice %174 {offsets = [0, 16], sizes = [5, 16], strides = [1, 1]} : vector<5x96xf32> to vector<5x16xf32>
    %194 = vector.extract_strided_slice %174 {offsets = [0, 48], sizes = [5, 16], strides = [1, 1]} : vector<5x96xf32> to vector<5x16xf32>
    %195 = vector.extract_strided_slice %174 {offsets = [0, 80], sizes = [5, 16], strides = [1, 1]} : vector<5x96xf32> to vector<5x16xf32>
    %cst_109 = arith.constant dense<0.000000e+00> : vector<5x5xf32>
    %196 = tpu.matmul %193, %194, %cst_109 {dimension_numbers = #tpu.dot_dimension_numbers<[1], [1], [0], [0], [0, 0, 1, 0], [], []>} : vector<5x16xf32>, vector<5x16xf32>, vector<5x5xf32> -> vector<5x5xf32>
    %cst_110 = arith.constant 2.500000e-01 : f32
    %197 = vector.broadcast %cst_110 : f32 to vector<5x5xf32>
    %198 = arith.mulf %196, %197 : vector<5x5xf32>
    %cst_111 = arith.constant dense<0xFF800000> : vector<5xf32>
    %199 = vector.multi_reduction <maximumf>, %198, %cst_111 [1] : vector<5x5xf32> to vector<5xf32>
    %200 = vector.shape_cast %199 : vector<5xf32> to vector<5x1xf32>
    %201 = vector.broadcast %200 : vector<5x1xf32> to vector<5x5xf32>
    %202 = arith.subf %198, %201 : vector<5x5xf32>
    %203 = math.exp %202 : vector<5x5xf32>
    %cst_112 = arith.constant dense<0.000000e+00> : vector<5xf32>
    %204 = vector.multi_reduction <add>, %203, %cst_112 [1] : vector<5x5xf32> to vector<5xf32>
    %205 = vector.shape_cast %204 : vector<5xf32> to vector<5x1xf32>
    %cst_113 = arith.constant dense<0.000000e+00> : vector<5x16xf32>
    %206 = tpu.matmul %203, %195, %cst_113 {dimension_numbers = #tpu.dot_dimension_numbers<[1], [0], [0], [1], [0, 0, 1, 1], [], []>} : vector<5x5xf32>, vector<5x16xf32>, vector<5x16xf32> -> vector<5x16xf32>
    %207 = tpu.reciprocal %205 {approx = true} : vector<5x1xf32> -> vector<5x1xf32>
    %208 = vector.broadcast %207 : vector<5x1xf32> to vector<5x16xf32>
    %209 = arith.mulf %206, %208 : vector<5x16xf32>
    %c0_114 = arith.constant 0 : index
    %c16_115 = arith.constant 16 : index
    %210 = vector.load %arg24[%c0_114, %c16_115] : memref<5x32xf32, #tpu.memory_space<vmem>>, vector<5x16xf32>
    tpu.vector_store %arg24[%c0_114, %c16_115], %209 {strides = array<i32>} : memref<5x32xf32, #tpu.memory_space<vmem>>, vector<5x16xf32>,
    %c0_116 = arith.constant 0 : index
    %c0_117 = arith.constant 0 : index
    %211 = vector.load %arg24[%c0_116, %c0_117] : memref<5x32xf32, #tpu.memory_space<vmem>>, vector<5x32xf32>
    %c1_118 = arith.constant 1 : index
    %c0_119 = arith.constant 0 : index
    %c0_120 = arith.constant 0 : index
    %212 = vector.load %arg10[%c1_118, %c0_119, %c0_120] : memref<2x32x32xf32, #tpu.memory_space<vmem>>, vector<1x32x32xf32>
    %213 = vector.shape_cast %212 : vector<1x32x32xf32> to vector<32x32xf32>
    %cst_121 = arith.constant dense<0.000000e+00> : vector<5x32xf32>
    %214 = tpu.matmul %211, %213, %cst_121 {dimension_numbers = #tpu.dot_dimension_numbers<[1], [0], [0], [1], [0, 0, 1, 1], [], []>} : vector<5x32xf32>, vector<32x32xf32>, vector<5x32xf32> -> vector<5x32xf32>
    %215 = arith.addf %143, %214 : vector<5x32xf32>
    %c1_122 = arith.constant 1 : index
    %c0_123 = arith.constant 0 : index
    %c0_124 = arith.constant 0 : index
    %216 = vector.load %arg11[%c1_122, %c0_123, %c0_124] : memref<2x1x32xf32, #tpu.memory_space<vmem>>, vector<1x1x32xf32>
    %217 = vector.shape_cast %216 : vector<1x1x32xf32> to vector<1x32xf32>
    %218 = vector.broadcast %217 : vector<1x32xf32> to vector<5x32xf32>
    %219 = arith.addf %215, %218 : vector<5x32xf32>
    %c1_125 = arith.constant 1 : index
    %c0_126 = arith.constant 0 : index
    %c0_127 = arith.constant 0 : index
    %220 = vector.load %arg12[%c1_125, %c0_126, %c0_127] : memref<2x1x32xf32, #tpu.memory_space<vmem>>, vector<1x1x32xf32>
    %221 = vector.shape_cast %220 : vector<1x1x32xf32> to vector<1x32xf32>
    %c1_128 = arith.constant 1 : index
    %c0_129 = arith.constant 0 : index
    %c0_130 = arith.constant 0 : index
    %222 = vector.load %arg13[%c1_128, %c0_129, %c0_130] : memref<2x1x32xf32, #tpu.memory_space<vmem>>, vector<1x1x32xf32>
    %223 = vector.shape_cast %222 : vector<1x1x32xf32> to vector<1x32xf32>
    %cst_131 = arith.constant dense<0.000000e+00> : vector<5xf32>
    %224 = vector.multi_reduction <add>, %219, %cst_131 [1] : vector<5x32xf32> to vector<5xf32>
    %225 = vector.shape_cast %224 : vector<5xf32> to vector<5x1xf32>
    %cst_132 = arith.constant 3.200000e+01 : f32
    %226 = vector.broadcast %cst_132 : f32 to vector<5x1xf32>
    %227 = arith.divf %225, %226 : vector<5x1xf32>
    %228 = vector.broadcast %227 : vector<5x1xf32> to vector<5x32xf32>
    %229 = arith.subf %219, %228 : vector<5x32xf32>
    %230 = arith.mulf %229, %229 : vector<5x32xf32>
    %cst_133 = arith.constant dense<0.000000e+00> : vector<5xf32>
    %231 = vector.multi_reduction <add>, %230, %cst_133 [1] : vector<5x32xf32> to vector<5xf32>
    %232 = vector.shape_cast %231 : vector<5xf32> to vector<5x1xf32>
    %cst_134 = arith.constant 3.200000e+01 : f32
    %233 = vector.broadcast %cst_134 : f32 to vector<5x1xf32>
    %234 = arith.divf %232, %233 : vector<5x1xf32>
    %cst_135 = arith.constant 9.99999997E-7 : f32
    %235 = vector.broadcast %cst_135 : f32 to vector<5x1xf32>
    %236 = arith.addf %234, %235 : vector<5x1xf32>
    %237 = math.rsqrt %236 : vector<5x1xf32>
    %238 = vector.broadcast %237 : vector<5x1xf32> to vector<5x32xf32>
    %239 = arith.mulf %229, %238 : vector<5x32xf32>
    %240 = vector.broadcast %221 : vector<1x32xf32> to vector<5x32xf32>
    %241 = arith.mulf %239, %240 : vector<5x32xf32>
    %242 = vector.broadcast %223 : vector<1x32xf32> to vector<5x32xf32>
    %243 = arith.addf %241, %242 : vector<5x32xf32>
    %c1_136 = arith.constant 1 : index
    %c0_137 = arith.constant 0 : index
    %c0_138 = arith.constant 0 : index
    %244 = vector.load %arg14[%c1_136, %c0_137, %c0_138] : memref<2x32x128xf32, #tpu.memory_space<vmem>>, vector<1x32x128xf32>
    %245 = vector.shape_cast %244 : vector<1x32x128xf32> to vector<32x128xf32>
    %cst_139 = arith.constant dense<0.000000e+00> : vector<5x128xf32>
    %246 = tpu.matmul %243, %245, %cst_139 {dimension_numbers = #tpu.dot_dimension_numbers<[1], [0], [0], [1], [0, 0, 1, 1], [], []>} : vector<5x32xf32>, vector<32x128xf32>, vector<5x128xf32> -> vector<5x128xf32>
    %c1_140 = arith.constant 1 : index
    %c0_141 = arith.constant 0 : index
    %c0_142 = arith.constant 0 : index
    %247 = vector.load %arg15[%c1_140, %c0_141, %c0_142] : memref<2x1x128xf32, #tpu.memory_space<vmem>>, vector<1x1x128xf32>
    %248 = vector.shape_cast %247 : vector<1x1x128xf32> to vector<1x128xf32>
    %249 = vector.broadcast %248 : vector<1x128xf32> to vector<5x128xf32>
    %250 = arith.addf %246, %249 : vector<5x128xf32>
    %cst_143 = arith.constant 5.000000e-01 : f32
    %251 = vector.broadcast %cst_143 : f32 to vector<5x128xf32>
    %252 = arith.mulf %251, %250 : vector<5x128xf32>
    %cst_144 = arith.constant 4.471500e-02 : f32
    %253 = vector.broadcast %cst_144 : f32 to vector<5x128xf32>
    %254 = arith.mulf %253, %250 : vector<5x128xf32>
    %255 = arith.mulf %254, %250 : vector<5x128xf32>
    %256 = arith.mulf %255, %250 : vector<5x128xf32>
    %257 = arith.addf %250, %256 : vector<5x128xf32>
    %cst_145 = arith.constant 0.797884583 : f32
    %258 = vector.broadcast %cst_145 : f32 to vector<5x128xf32>
    %259 = arith.mulf %258, %257 : vector<5x128xf32>
    %260 = math.tanh %259 : vector<5x128xf32>
    %cst_146 = arith.constant 1.000000e+00 : f32
    %261 = vector.broadcast %cst_146 : f32 to vector<5x128xf32>
    %262 = arith.addf %261, %260 : vector<5x128xf32>
    %263 = arith.mulf %252, %262 : vector<5x128xf32>
    %c1_147 = arith.constant 1 : index
    %c0_148 = arith.constant 0 : index
    %c0_149 = arith.constant 0 : index
    %264 = vector.load %arg16[%c1_147, %c0_148, %c0_149] : memref<2x128x32xf32, #tpu.memory_space<vmem>>, vector<1x128x32xf32>
    %265 = vector.shape_cast %264 : vector<1x128x32xf32> to vector<128x32xf32>
    %cst_150 = arith.constant dense<0.000000e+00> : vector<5x32xf32>
    %266 = tpu.matmul %263, %265, %cst_150 {dimension_numbers = #tpu.dot_dimension_numbers<[1], [0], [0], [1], [0, 0, 1, 1], [], []>} : vector<5x128xf32>, vector<128x32xf32>, vector<5x32xf32> -> vector<5x32xf32>
    %267 = arith.addf %219, %266 : vector<5x32xf32>
    %c1_151 = arith.constant 1 : index
    %c0_152 = arith.constant 0 : index
    %c0_153 = arith.constant 0 : index
    %268 = vector.load %arg17[%c1_151, %c0_152, %c0_153] : memref<2x1x32xf32, #tpu.memory_space<vmem>>, vector<1x1x32xf32>
    %269 = vector.shape_cast %268 : vector<1x1x32xf32> to vector<1x32xf32>
    %270 = vector.broadcast %269 : vector<1x32xf32> to vector<5x32xf32>
    %271 = arith.addf %267, %270 : vector<5x32xf32>
    %c0_154 = arith.constant 0 : index
    %c0_155 = arith.constant 0 : index
    %272 = vector.load %arg18[%c0_154, %c0_155] : memref<1x32xf32, #tpu.memory_space<vmem>>, vector<1x32xf32>
    %c0_156 = arith.constant 0 : index
    %c0_157 = arith.constant 0 : index
    %273 = vector.load %arg19[%c0_156, %c0_157] : memref<1x32xf32, #tpu.memory_space<vmem>>, vector<1x32xf32>
    %cst_158 = arith.constant dense<0.000000e+00> : vector<5xf32>
    %274 = vector.multi_reduction <add>, %271, %cst_158 [1] : vector<5x32xf32> to vector<5xf32>
    %275 = vector.shape_cast %274 : vector<5xf32> to vector<5x1xf32>
    %cst_159 = arith.constant 3.200000e+01 : f32
    %276 = vector.broadcast %cst_159 : f32 to vector<5x1xf32>
    %277 = arith.divf %275, %276 : vector<5x1xf32>
    %278 = vector.broadcast %277 : vector<5x1xf32> to vector<5x32xf32>
    %279 = arith.subf %271, %278 : vector<5x32xf32>
    %280 = arith.mulf %279, %279 : vector<5x32xf32>
    %cst_160 = arith.constant dense<0.000000e+00> : vector<5xf32>
    %281 = vector.multi_reduction <add>, %280, %cst_160 [1] : vector<5x32xf32> to vector<5xf32>
    %282 = vector.shape_cast %281 : vector<5xf32> to vector<5x1xf32>
    %cst_161 = arith.constant 3.200000e+01 : f32
    %283 = vector.broadcast %cst_161 : f32 to vector<5x1xf32>
    %284 = arith.divf %282, %283 : vector<5x1xf32>
    %cst_162 = arith.constant 9.99999997E-7 : f32
    %285 = vector.broadcast %cst_162 : f32 to vector<5x1xf32>
    %286 = arith.addf %284, %285 : vector<5x1xf32>
    %287 = math.rsqrt %286 : vector<5x1xf32>
    %288 = vector.broadcast %287 : vector<5x1xf32> to vector<5x32xf32>
    %289 = arith.mulf %279, %288 : vector<5x32xf32>
    %290 = vector.broadcast %272 : vector<1x32xf32> to vector<5x32xf32>
    %291 = arith.mulf %289, %290 : vector<5x32xf32>
    %292 = vector.broadcast %273 : vector<1x32xf32> to vector<5x32xf32>
    %293 = arith.addf %291, %292 : vector<5x32xf32>
    %294 = vector.extract_strided_slice %293 {offsets = [0, 0], sizes = [1, 32], strides = [1, 1]} : vector<5x32xf32> to vector<1x32xf32>
    %c0_163 = arith.constant 0 : index
    %c0_164 = arith.constant 0 : index
    %295 = vector.load %arg20[%c0_163, %c0_164] : memref<32x128xf32, #tpu.memory_space<vmem>>, vector<32x128xf32>
    %cst_165 = arith.constant dense<0.000000e+00> : vector<1x128xf32>
    %296 = tpu.matmul %294, %295, %cst_165 {dimension_numbers = #tpu.dot_dimension_numbers<[1], [0], [0], [1], [0, 0, 1, 1], [], []>} : vector<1x32xf32>, vector<32x128xf32>, vector<1x128xf32> -> vector<1x128xf32>
    %c0_166 = arith.constant 0 : index
    %c0_167 = arith.constant 0 : index
    %297 = vector.load %arg21[%c0_166, %c0_167] : memref<1x128xf32, #tpu.memory_space<vmem>>, vector<1x128xf32>
    %298 = arith.addf %296, %297 : vector<1x128xf32>
    %c0_168 = arith.constant 0 : index
    %c0_169 = arith.constant 0 : index
    %c0_170 = arith.constant 0 : index
    %299 = vector.load %arg22[%c0_168, %c0_169, %c0_170] : memref<1x1x128xf32, #tpu.memory_space<vmem>>, vector<1x1x128xf32>
    %300 = vector.shape_cast %299 : vector<1x1x128xf32> to vector<1x128xf32>
    %301 = vector.shape_cast %298 : vector<1x128xf32> to vector<1x1x128xf32>
    tpu.vector_store %arg22[%c0_168, %c0_169, %c0_170], %301 {strides = array<i32>} : memref<1x1x128xf32, #tpu.memory_space<vmem>>, vector<1x1x128xf32>,
    return
  }
  func.func @transform_0(%arg0: i32) -> (i32, i32, i32) {
    %c0_i32 = arith.constant 0 : i32
    %c0_i32_0 = arith.constant 0 : i32
    %c0_i32_1 = arith.constant 0 : i32
    return %arg0, %c0_i32, %c0_i32_0 : i32, i32, i32
  }
  func.func @transform_1(%arg0: i32) -> (i32, i32) {
    %c0_i32 = arith.constant 0 : i32
    %c0_i32_0 = arith.constant 0 : i32
    %c0_i32_1 = arith.constant 0 : i32
    return %c0_i32, %c0_i32_0 : i32, i32
  }
  func.func @transform_2(%arg0: i32) -> (i32, i32) {
    %c0_i32 = arith.constant 0 : i32
    %c0_i32_0 = arith.constant 0 : i32
    %c0_i32_1 = arith.constant 0 : i32
    return %c0_i32, %c0_i32_0 : i32, i32
  }
  func.func @transform_3(%arg0: i32) -> (i32, i32) {
    %c0_i32 = arith.constant 0 : i32
    %c0_i32_0 = arith.constant 0 : i32
    %c0_i32_1 = arith.constant 0 : i32
    return %c0_i32, %c0_i32_0 : i32, i32
  }
  func.func @transform_4(%arg0: i32) -> (i32, i32) {
    %c0_i32 = arith.constant 0 : i32
    %c0_i32_0 = arith.constant 0 : i32
    %c0_i32_1 = arith.constant 0 : i32
    return %c0_i32, %c0_i32_0 : i32, i32
  }
  func.func @transform_5(%arg0: i32) -> (i32, i32, i32) {
    %c0_i32 = arith.constant 0 : i32
    %c0_i32_0 = arith.constant 0 : i32
    %c0_i32_1 = arith.constant 0 : i32
    %c0_i32_2 = arith.constant 0 : i32
    return %c0_i32, %c0_i32_0, %c0_i32_1 : i32, i32, i32
  }
  func.func @transform_6(%arg0: i32) -> (i32, i32, i32) {
    %c0_i32 = arith.constant 0 : i32
    %c0_i32_0 = arith.constant 0 : i32
    %c0_i32_1 = arith.constant 0 : i32
    %c0_i32_2 = arith.constant 0 : i32
    return %c0_i32, %c0_i32_0, %c0_i32_1 : i32, i32, i32
  }
  func.func @transform_7(%arg0: i32) -> (i32, i32, i32) {
    %c0_i32 = arith.constant 0 : i32
    %c0_i32_0 = arith.constant 0 : i32
    %c0_i32_1 = arith.constant 0 : i32
    %c0_i32_2 = arith.constant 0 : i32
    return %c0_i32, %c0_i32_0, %c0_i32_1 : i32, i32, i32
  }
  func.func @transform_8(%arg0: i32) -> (i32, i32, i32) {
    %c0_i32 = arith.constant 0 : i32
    %c0_i32_0 = arith.constant 0 : i32
    %c0_i32_1 = arith.constant 0 : i32
    %c0_i32_2 = arith.constant 0 : i32
    return %c0_i32, %c0_i32_0, %c0_i32_1 : i32, i32, i32
  }
  func.func @transform_9(%arg0: i32) -> (i32, i32, i32) {
    %c0_i32 = arith.constant 0 : i32
    %c0_i32_0 = arith.constant 0 : i32
    %c0_i32_1 = arith.constant 0 : i32
    %c0_i32_2 = arith.constant 0 : i32
    return %c0_i32, %c0_i32_0, %c0_i32_1 : i32, i32, i32
  }
  func.func @transform_10(%arg0: i32) -> (i32, i32, i32) {
    %c0_i32 = arith.constant 0 : i32
    %c0_i32_0 = arith.constant 0 : i32
    %c0_i32_1 = arith.constant 0 : i32
    %c0_i32_2 = arith.constant 0 : i32
    return %c0_i32, %c0_i32_0, %c0_i32_1 : i32, i32, i32
  }
  func.func @transform_11(%arg0: i32) -> (i32, i32, i32) {
    %c0_i32 = arith.constant 0 : i32
    %c0_i32_0 = arith.constant 0 : i32
    %c0_i32_1 = arith.constant 0 : i32
    %c0_i32_2 = arith.constant 0 : i32
    return %c0_i32, %c0_i32_0, %c0_i32_1 : i32, i32, i32
  }
  func.func @transform_12(%arg0: i32) -> (i32, i32, i32) {
    %c0_i32 = arith.constant 0 : i32
    %c0_i32_0 = arith.constant 0 : i32
    %c0_i32_1 = arith.constant 0 : i32
    %c0_i32_2 = arith.constant 0 : i32
    return %c0_i32, %c0_i32_0, %c0_i32_1 : i32, i32, i32
  }
  func.func @transform_13(%arg0: i32) -> (i32, i32, i32) {
    %c0_i32 = arith.constant 0 : i32
    %c0_i32_0 = arith.constant 0 : i32
    %c0_i32_1 = arith.constant 0 : i32
    %c0_i32_2 = arith.constant 0 : i32
    return %c0_i32, %c0_i32_0, %c0_i32_1 : i32, i32, i32
  }
  func.func @transform_14(%arg0: i32) -> (i32, i32, i32) {
    %c0_i32 = arith.constant 0 : i32
    %c0_i32_0 = arith.constant 0 : i32
    %c0_i32_1 = arith.constant 0 : i32
    %c0_i32_2 = arith.constant 0 : i32
    return %c0_i32, %c0_i32_0, %c0_i32_1 : i32, i32, i32
  }
  func.func @transform_15(%arg0: i32) -> (i32, i32, i32) {
    %c0_i32 = arith.constant 0 : i32
    %c0_i32_0 = arith.constant 0 : i32
    %c0_i32_1 = arith.constant 0 : i32
    %c0_i32_2 = arith.constant 0 : i32
    return %c0_i32, %c0_i32_0, %c0_i32_1 : i32, i32, i32
  }
  func.func @transform_16(%arg0: i32) -> (i32, i32, i32) {
    %c0_i32 = arith.constant 0 : i32
    %c0_i32_0 = arith.constant 0 : i32
    %c0_i32_1 = arith.constant 0 : i32
    %c0_i32_2 = arith.constant 0 : i32
    return %c0_i32, %c0_i32_0, %c0_i32_1 : i32, i32, i32
  }
  func.func @transform_17(%arg0: i32) -> (i32, i32) {
    %c0_i32 = arith.constant 0 : i32
    %c0_i32_0 = arith.constant 0 : i32
    %c0_i32_1 = arith.constant 0 : i32
    return %c0_i32, %c0_i32_0 : i32, i32
  }
  func.func @transform_18(%arg0: i32) -> (i32, i32) {
    %c0_i32 = arith.constant 0 : i32
    %c0_i32_0 = arith.constant 0 : i32
    %c0_i32_1 = arith.constant 0 : i32
    return %c0_i32, %c0_i32_0 : i32, i32
  }
  func.func @transform_19(%arg0: i32) -> (i32, i32) {
    %c0_i32 = arith.constant 0 : i32
    %c0_i32_0 = arith.constant 0 : i32
    %c0_i32_1 = arith.constant 0 : i32
    return %c0_i32, %c0_i32_0 : i32, i32
  }
  func.func @transform_20(%arg0: i32) -> (i32, i32) {
    %c0_i32 = arith.constant 0 : i32
    %c0_i32_0 = arith.constant 0 : i32
    %c0_i32_1 = arith.constant 0 : i32
    return %c0_i32, %c0_i32_0 : i32, i32
  }
  func.func @transform_21(%arg0: i32) -> (i32, i32, i32) {
    %c0_i32 = arith.constant 0 : i32
    %c0_i32_0 = arith.constant 0 : i32
    %c0_i32_1 = arith.constant 0 : i32
    return %arg0, %c0_i32, %c0_i32_0 : i32, i32, i32
  }
}

</mosaic_0001>

<llo_original>
// kernel: classification_model_forward.1
$region0: #{classification_model_forward.1}
  #allocation0 [shape = 'u32[]', space=smem, size = 0x4, offset = 0x4, fixed_abs, tag = 'smem constant byte address 0x4 - core index']
  #allocation1 [shape = 'u32[144,128]{1,0:T(1,128)}', space=vmem, size = 0x12000, scoped, tag = 'internal scratch']
  #allocation2 [shape = 'f32[5,32]{1,0:T(8,128)}', space=vmem, size = 0x1000, scoped, tag = 'scratch operand']
  #allocation3 [shape = 'f32[5,32]{1,0:T(8,128)}', space=vmem, size = 0x1000, scoped, tag = 'scratch operand']
  %s0 = inlined_call_operand.vmem [shape: f32[2,4,192], index: 0, kind: input, shape index: {}]
  %s1 = inlined_call_operand.vmem [shape: f32[192,32], index: 1, kind: input, shape index: {}]
  %s2 = inlined_call_operand.vmem [shape: f32[1,32], index: 2, kind: input, shape index: {}]
  %s3 = inlined_call_operand.vmem [shape: f32[1,32], index: 3, kind: input, shape index: {}]
  %s4 = inlined_call_operand.vmem [shape: f32[5,32], index: 4, kind: input, shape index: {}]
  %s5 = inlined_call_operand.vmem [shape: f32[2,1,32], index: 5, kind: input, shape index: {}]
  %s6 = inlined_call_operand.vmem [shape: f32[2,1,32], index: 6, kind: input, shape index: {}]
  %s7 = inlined_call_operand.vmem [shape: f32[2,32,96], index: 7, kind: input, shape index: {}]
  %s8 = inlined_call_operand.vmem [shape: f32[2,1,96], index: 8, kind: input, shape index: {}]
  %s9 = inlined_call_operand.vmem [shape: f32[2,32,32], index: 9, kind: input, shape index: {}]
  %s10 = inlined_call_operand.vmem [shape: f32[2,1,32], index: 10, kind: input, shape index: {}]
  %s11 = inlined_call_operand.vmem [shape: f32[2,1,32], index: 11, kind: input, shape index: {}]
  %s12 = inlined_call_operand.vmem [shape: f32[2,1,32], index: 12, kind: input, shape index: {}]
  %s13 = inlined_call_operand.vmem [shape: f32[2,32,128], index: 13, kind: input, shape index: {}]
  %s14 = inlined_call_operand.vmem [shape: f32[2,1,128], index: 14, kind: input, shape index: {}]
  %s15 = inlined_call_operand.vmem [shape: f32[2,128,32], index: 15, kind: input, shape index: {}]
  %s16 = inlined_call_operand.vmem [shape: f32[2,1,32], index: 16, kind: input, shape index: {}]
  %s17 = inlined_call_operand.vmem [shape: f32[1,32], index: 17, kind: input, shape index: {}]
  %s18 = inlined_call_operand.vmem [shape: f32[1,32], index: 18, kind: input, shape index: {}]
  %s19 = inlined_call_operand.vmem [shape: f32[32,128], index: 19, kind: input, shape index: {}]
  %s20 = inlined_call_operand.vmem [shape: f32[1,128], index: 20, kind: input, shape index: {}]
  %s21 = inlined_call_operand.hbm [shape: f32[2,1,128], index: 21, kind: output, shape index: {}]
  %s22 = sld [smem:[#allocation0]]
  $region117: #{classification_model_forward.1} parent=0
    _
  %s24 = ssub.s32 1, %s22
  %s25 = scalar_select 0, %s24, %s22
  $region1: #{classification_model_forward.1} parent=0
    #allocation4 [shape = 'u8[1024]{0}', space=vmem, size = 0x400, scoped, tag = 'output window, operand 0']
    #allocation5 [shape = 's32[2]{0}', space=sflag, size = 0x8, scoped, tag = 'scoped memory for classification_model_forward.1']
    %26 = vsyncpa [#allocation5], 0
    %s27 = scalar_lea.sflag [#allocation5], 1
    %28 = vsyncpa %s27, 0
    loop: start=0, step=1, limit=4
    $region2: #{classification_model_forward.1} parent=1 // loop_pre_header
      _
    $region3: #{classification_model_forward.1} parent=1 // loop_header
      %s30 = sphi 0, %s34
      %p31 = scmp.ge.s32.totalorder %s30, 4
      %s40 = sphi 0, %s42
      %s43 = sphi 0, %s40
      %s44 = sphi 0, %s43
      %s60 = sphi 0, %s44
      %s64 = sphi 0, %s64
      %s66 = sphi 0, %s64
      %s67 = sphi 0, %s66
      %s81 = sphi 0, %s67
      %s85 = sphi 0, %s85
      %s87 = sphi 0, %s85
      %s88 = sphi 0, %s87
      %s102 = sphi 0, %s88
      %s106 = sphi 0, %s106
      %s108 = sphi 0, %s106
      %s109 = sphi 0, %s108
      %s123 = sphi 0, %s109
      %s127 = sphi 0, %s127
      %s129 = sphi 0, %s127
      %s130 = sphi 0, %s129
      %s144 = sphi 0, %s130
      %s148 = sphi 0, %s148
      %s150 = sphi 0, %s148
      %s151 = sphi 0, %s150
      %s165 = sphi 0, %s151
      %s169 = sphi 0, %s169
      %s171 = sphi 0, %s169
      %s172 = sphi 0, %s171
      %s186 = sphi 0, %s172
      %s190 = sphi 0, %s190
      %s192 = sphi 0, %s190
      %s193 = sphi 0, %s192
      %s207 = sphi 0, %s193
      %s211 = sphi 0, %s211
      %s213 = sphi 0, %s211
      %s214 = sphi 0, %s213
      %s228 = sphi 0, %s214
      %s232 = sphi 0, %s232
      %s234 = sphi 0, %s232
      %s235 = sphi 0, %s234
      %s249 = sphi 0, %s235
      %s253 = sphi 0, %s253
      %s255 = sphi 0, %s253
      %s256 = sphi 0, %s255
      %s270 = sphi 0, %s256
      %s274 = sphi 0, %s274
      %s276 = sphi 0, %s274
      %s277 = sphi 0, %s276
      %s291 = sphi 0, %s277
      %s295 = sphi 0, %s295
      %s297 = sphi 0, %s295
      %s298 = sphi 0, %s297
      %s312 = sphi 0, %s298
      %s316 = sphi 0, %s316
      %s318 = sphi 0, %s316
      %s319 = sphi 0, %s318
      %s333 = sphi 0, %s319
      %s337 = sphi 0, %s337
      %s339 = sphi 0, %s337
      %s340 = sphi 0, %s339
      %s354 = sphi 0, %s340
      %s358 = sphi 0, %s358
      %s360 = sphi 0, %s358
      %s361 = sphi 0, %s360
      %s375 = sphi 0, %s361
      %s379 = sphi 0, %s379
      %s381 = sphi 0, %s379
      %s382 = sphi 0, %s381
      %s396 = sphi 0, %s382
      %s400 = sphi 0, %s400
      %s402 = sphi 0, %s400
      %s403 = sphi 0, %s402
      %s417 = sphi 0, %s403
      %s421 = sphi 0, %s421
      %s423 = sphi 0, %s421
      %s424 = sphi 0, %s423
      %s438 = sphi 0, %s424
      %s442 = sphi 0, %s442
      %s444 = sphi 0, %s442
      %s445 = sphi 0, %s444
      %s459 = sphi 0, %s445
      %s463 = sphi 0, %s463
      %s465 = sphi 0, %s463
      %s466 = sphi 0, %s465
      %s480 = sphi 0, %s466
      %s486 = sphi 0, %s488
      %s489 = sphi 0, %s486
      %s490 = sphi 0, %s489
      %s506 = sphi 0, %s490
    $region4: #{classification_model_forward.1} parent=1 // loop_header_branch
      %33 = sbr.rel (%p31) target = $region8
    $region5: #{classification_model_forward.1} parent=1 // loop_body
      %s35 = ssub.s32 %s30, 1
      %s36 = ssub.s32 %s30, 2
      %s37 = sadd.s32 %s30, 1
      %s38 = ssub.s32 %s30, %s37
      %p39 = scmp.eq.s32.totalorder %s38, 0
      %s41 = sadd.s32 %s40, 1
      %s42 = scalar_select %p39, %s40, %s41
      %p45 = pneg %p39
      %p46 = scmp.eq.s32.totalorder %s30, 1
      %p47 = por %p45, %p46
      %p48 = scmp.ne.s32.totalorder %s40, %s43
      %p49 = scmp.eq.s32.totalorder %s30, 0
      %p50 = por %p48, %p49
      %p51 = scmp.ne.s32.totalorder %s40, %s43
      %p52 = scmp.eq.s32.totalorder %s35, 1
      %p53 = por %p51, %p52
      %p54 = scmp.ne.s32.totalorder %s43, %s44
      %p55 = scmp.eq.s32.totalorder %s35, 0
      %p56 = por %p54, %p55
      %p57 = scmp.ne.s32.totalorder %s43, %s44
      %p58 = scmp.eq.s32.totalorder %s36, 1
      %p59 = por %p57, %p58
      %p61 = scmp.ne.s32.totalorder %s44, %s60
      %p62 = scmp.eq.s32.totalorder %s36, 0
      %p63 = por %p61, %p62
      %s65 = sadd.s32 %s64, 1
      %p68 = scmp.eq.s32.totalorder %s30, 1
      %p69 = scmp.ne.s32.totalorder %s64, %s66
      %p70 = scmp.eq.s32.totalorder %s30, 0
      %p71 = por %p69, %p70
      %p72 = scmp.ne.s32.totalorder %s64, %s66
      %p73 = scmp.eq.s32.totalorder %s35, 1
      %p74 = por %p72, %p73
      %p75 = scmp.ne.s32.totalorder %s66, %s67
      %p76 = scmp.eq.s32.totalorder %s35, 0
      %p77 = por %p75, %p76
      %p78 = scmp.ne.s32.totalorder %s66, %s67
      %p79 = scmp.eq.s32.totalorder %s36, 1
      %p80 = por %p78, %p79
      %p82 = scmp.ne.s32.totalorder %s67, %s81
      %p83 = scmp.eq.s32.totalorder %s36, 0
      %p84 = por %p82, %p83
      %s86 = sadd.s32 %s85, 1
      %p89 = scmp.eq.s32.totalorder %s30, 1
      %p90 = scmp.ne.s32.totalorder %s85, %s87
      %p91 = scmp.eq.s32.totalorder %s30, 0
      %p92 = por %p90, %p91
      %p93 = scmp.ne.s32.totalorder %s85, %s87
      %p94 = scmp.eq.s32.totalorder %s35, 1
      %p95 = por %p93, %p94
      %p96 = scmp.ne.s32.totalorder %s87, %s88
      %p97 = scmp.eq.s32.totalorder %s35, 0
      %p98 = por %p96, %p97
      %p99 = scmp.ne.s32.totalorder %s87, %s88
      %p100 = scmp.eq.s32.totalorder %s36, 1
      %p101 = por %p99, %p100
      %p103 = scmp.ne.s32.totalorder %s88, %s102
      %p104 = scmp.eq.s32.totalorder %s36, 0
      %p105 = por %p103, %p104
      %s107 = sadd.s32 %s106, 1
      %p110 = scmp.eq.s32.totalorder %s30, 1
      %p111 = scmp.ne.s32.totalorder %s106, %s108
      %p112 = scmp.eq.s32.totalorder %s30, 0
      %p113 = por %p111, %p112
      %p114 = scmp.ne.s32.totalorder %s106, %s108
      %p115 = scmp.eq.s32.totalorder %s35, 1
      %p116 = por %p114, %p115
      %p117 = scmp.ne.s32.totalorder %s108, %s109
      %p118 = scmp.eq.s32.totalorder %s35, 0
      %p119 = por %p117, %p118
      %p120 = scmp.ne.s32.totalorder %s108, %s109
      %p121 = scmp.eq.s32.totalorder %s36, 1
      %p122 = por %p120, %p121
      %p124 = scmp.ne.s32.totalorder %s109, %s123
      %p125 = scmp.eq.s32.totalorder %s36, 0
      %p126 = por %p124, %p125
      %s128 = sadd.s32 %s127, 1
      %p131 = scmp.eq.s32.totalorder %s30, 1
      %p132 = scmp.ne.s32.totalorder %s127, %s129
      %p133 = scmp.eq.s32.totalorder %s30, 0
      %p134 = por %p132, %p133
      %p135 = scmp.ne.s32.totalorder %s127, %s129
      %p136 = scmp.eq.s32.totalorder %s35, 1
      %p137 = por %p135, %p136
      %p138 = scmp.ne.s32.totalorder %s129, %s130
      %p139 = scmp.eq.s32.totalorder %s35, 0
      %p140 = por %p138, %p139
      %p141 = scmp.ne.s32.totalorder %s129, %s130
      %p142 = scmp.eq.s32.totalorder %s36, 1
      %p143 = por %p141, %p142
      %p145 = scmp.ne.s32.totalorder %s130, %s144
      %p146 = scmp.eq.s32.totalorder %s36, 0
      %p147 = por %p145, %p146
      %s149 = sadd.s32 %s148, 1
      %p152 = scmp.eq.s32.totalorder %s30, 1
      %p153 = scmp.ne.s32.totalorder %s148, %s150
      %p154 = scmp.eq.s32.totalorder %s30, 0
      %p155 = por %p153, %p154
      %p156 = scmp.ne.s32.totalorder %s148, %s150
      %p157 = scmp.eq.s32.totalorder %s35, 1
      %p158 = por %p156, %p157
      %p159 = scmp.ne.s32.totalorder %s150, %s151
      %p160 = scmp.eq.s32.totalorder %s35, 0
      %p161 = por %p159, %p160
      %p162 = scmp.ne.s32.totalorder %s150, %s151
      %p163 = scmp.eq.s32.totalorder %s36, 1
      %p164 = por %p162, %p163
      %p166 = scmp.ne.s32.totalorder %s151, %s165
      %p167 = scmp.eq.s32.totalorder %s36, 0
      %p168 = por %p166, %p167
      %s170 = sadd.s32 %s169, 1
      %p173 = scmp.eq.s32.totalorder %s30, 1
      %p174 = scmp.ne.s32.totalorder %s169, %s171
      %p175 = scmp.eq.s32.totalorder %s30, 0
      %p176 = por %p174, %p175
      %p177 = scmp.ne.s32.totalorder %s169, %s171
      %p178 = scmp.eq.s32.totalorder %s35, 1
      %p179 = por %p177, %p178
      %p180 = scmp.ne.s32.totalorder %s171, %s172
      %p181 = scmp.eq.s32.totalorder %s35, 0
      %p182 = por %p180, %p181
      %p183 = scmp.ne.s32.totalorder %s171, %s172
      %p184 = scmp.eq.s32.totalorder %s36, 1
      %p185 = por %p183, %p184
      %p187 = scmp.ne.s32.totalorder %s172, %s186
      %p188 = scmp.eq.s32.totalorder %s36, 0
      %p189 = por %p187, %p188
      %s191 = sadd.s32 %s190, 1
      %p194 = scmp.eq.s32.totalorder %s30, 1
      %p195 = scmp.ne.s32.totalorder %s190, %s192
      %p196 = scmp.eq.s32.totalorder %s30, 0
      %p197 = por %p195, %p196
      %p198 = scmp.ne.s32.totalorder %s190, %s192
      %p199 = scmp.eq.s32.totalorder %s35, 1
      %p200 = por %p198, %p199
      %p201 = scmp.ne.s32.totalorder %s192, %s193
      %p202 = scmp.eq.s32.totalorder %s35, 0
      %p203 = por %p201, %p202
      %p204 = scmp.ne.s32.totalorder %s192, %s193
      %p205 = scmp.eq.s32.totalorder %s36, 1
      %p206 = por %p204, %p205
      %p208 = scmp.ne.s32.totalorder %s193, %s207
      %p209 = scmp.eq.s32.totalorder %s36, 0
      %p210 = por %p208, %p209
      %s212 = sadd.s32 %s211, 1
      %p215 = scmp.eq.s32.totalorder %s30, 1
      %p216 = scmp.ne.s32.totalorder %s211, %s213
      %p217 = scmp.eq.s32.totalorder %s30, 0
      %p218 = por %p216, %p217
      %p219 = scmp.ne.s32.totalorder %s211, %s213
      %p220 = scmp.eq.s32.totalorder %s35, 1
      %p221 = por %p219, %p220
      %p222 = scmp.ne.s32.totalorder %s213, %s214
      %p223 = scmp.eq.s32.totalorder %s35, 0
      %p224 = por %p222, %p223
      %p225 = scmp.ne.s32.totalorder %s213, %s214
      %p226 = scmp.eq.s32.totalorder %s36, 1
      %p227 = por %p225, %p226
      %p229 = scmp.ne.s32.totalorder %s214, %s228
      %p230 = scmp.eq.s32.totalorder %s36, 0
      %p231 = por %p229, %p230
      %s233 = sadd.s32 %s232, 1
      %p236 = scmp.eq.s32.totalorder %s30, 1
      %p237 = scmp.ne.s32.totalorder %s232, %s234
      %p238 = scmp.eq.s32.totalorder %s30, 0
      %p239 = por %p237, %p238
      %p240 = scmp.ne.s32.totalorder %s232, %s234
      %p241 = scmp.eq.s32.totalorder %s35, 1
      %p242 = por %p240, %p241
      %p243 = scmp.ne.s32.totalorder %s234, %s235
      %p244 = scmp.eq.s32.totalorder %s35, 0
      %p245 = por %p243, %p244
      %p246 = scmp.ne.s32.totalorder %s234, %s235
      %p247 = scmp.eq.s32.totalorder %s36, 1
      %p248 = por %p246, %p247
      %p250 = scmp.ne.s32.totalorder %s235, %s249
      %p251 = scmp.eq.s32.totalorder %s36, 0
      %p252 = por %p250, %p251
      %s254 = sadd.s32 %s253, 1
      %p257 = scmp.eq.s32.totalorder %s30, 1
      %p258 = scmp.ne.s32.totalorder %s253, %s255
      %p259 = scmp.eq.s32.totalorder %s30, 0
      %p260 = por %p258, %p259
      %p261 = scmp.ne.s32.totalorder %s253, %s255
      %p262 = scmp.eq.s32.totalorder %s35, 1
      %p263 = por %p261, %p262
      %p264 = scmp.ne.s32.totalorder %s255, %s256
      %p265 = scmp.eq.s32.totalorder %s35, 0
      %p266 = por %p264, %p265
      %p267 = scmp.ne.s32.totalorder %s255, %s256
      %p268 = scmp.eq.s32.totalorder %s36, 1
      %p269 = por %p267, %p268
      %p271 = scmp.ne.s32.totalorder %s256, %s270
      %p272 = scmp.eq.s32.totalorder %s36, 0
      %p273 = por %p271, %p272
      %s275 = sadd.s32 %s274, 1
      %p278 = scmp.eq.s32.totalorder %s30, 1
      %p279 = scmp.ne.s32.totalorder %s274, %s276
      %p280 = scmp.eq.s32.totalorder %s30, 0
      %p281 = por %p279, %p280
      %p282 = scmp.ne.s32.totalorder %s274, %s276
      %p283 = scmp.eq.s32.totalorder %s35, 1
      %p284 = por %p282, %p283
      %p285 = scmp.ne.s32.totalorder %s276, %s277
      %p286 = scmp.eq.s32.totalorder %s35, 0
      %p287 = por %p285, %p286
      %p288 = scmp.ne.s32.totalorder %s276, %s277
      %p289 = scmp.eq.s32.totalorder %s36, 1
      %p290 = por %p288, %p289
      %p292 = scmp.ne.s32.totalorder %s277, %s291
      %p293 = scmp.eq.s32.totalorder %s36, 0
      %p294 = por %p292, %p293
      %s296 = sadd.s32 %s295, 1
      %p299 = scmp.eq.s32.totalorder %s30, 1
      %p300 = scmp.ne.s32.totalorder %s295, %s297
      %p301 = scmp.eq.s32.totalorder %s30, 0
      %p302 = por %p300, %p301
      %p303 = scmp.ne.s32.totalorder %s295, %s297
      %p304 = scmp.eq.s32.totalorder %s35, 1
      %p305 = por %p303, %p304
      %p306 = scmp.ne.s32.totalorder %s297, %s298
      %p307 = scmp.eq.s32.totalorder %s35, 0
      %p308 = por %p306, %p307
      %p309 = scmp.ne.s32.totalorder %s297, %s298
      %p310 = scmp.eq.s32.totalorder %s36, 1
      %p311 = por %p309, %p310
      %p313 = scmp.ne.s32.totalorder %s298, %s312
      %p314 = scmp.eq.s32.totalorder %s36, 0
      %p315 = por %p313, %p314
      %s317 = sadd.s32 %s316, 1
      %p320 = scmp.eq.s32.totalorder %s30, 1
      %p321 = scmp.ne.s32.totalorder %s316, %s318
      %p322 = scmp.eq.s32.totalorder %s30, 0
      %p323 = por %p321, %p322
      %p324 = scmp.ne.s32.totalorder %s316, %s318
      %p325 = scmp.eq.s32.totalorder %s35, 1
      %p326 = por %p324, %p325
      %p327 = scmp.ne.s32.totalorder %s318, %s319
      %p328 = scmp.eq.s32.totalorder %s35, 0
      %p329 = por %p327, %p328
      %p330 = scmp.ne.s32.totalorder %s318, %s319
      %p331 = scmp.eq.s32.totalorder %s36, 1
      %p332 = por %p330, %p331
      %p334 = scmp.ne.s32.totalorder %s319, %s333
      %p335 = scmp.eq.s32.totalorder %s36, 0
      %p336 = por %p334, %p335
      %s338 = sadd.s32 %s337, 1
      %p341 = scmp.eq.s32.totalorder %s30, 1
      %p342 = scmp.ne.s32.totalorder %s337, %s339
      %p343 = scmp.eq.s32.totalorder %s30, 0
      %p344 = por %p342, %p343
      %p345 = scmp.ne.s32.totalorder %s337, %s339
      %p346 = scmp.eq.s32.totalorder %s35, 1
      %p347 = por %p345, %p346
      %p348 = scmp.ne.s32.totalorder %s339, %s340
      %p349 = scmp.eq.s32.totalorder %s35, 0
      %p350 = por %p348, %p349
      %p351 = scmp.ne.s32.totalorder %s339, %s340
      %p352 = scmp.eq.s32.totalorder %s36, 1
      %p353 = por %p351, %p352
      %p355 = scmp.ne.s32.totalorder %s340, %s354
      %p356 = scmp.eq.s32.totalorder %s36, 0
      %p357 = por %p355, %p356
      %s359 = sadd.s32 %s358, 1
      %p362 = scmp.eq.s32.totalorder %s30, 1
      %p363 = scmp.ne.s32.totalorder %s358, %s360
      %p364 = scmp.eq.s32.totalorder %s30, 0
      %p365 = por %p363, %p364
      %p366 = scmp.ne.s32.totalorder %s358, %s360
      %p367 = scmp.eq.s32.totalorder %s35, 1
      %p368 = por %p366, %p367
      %p369 = scmp.ne.s32.totalorder %s360, %s361
      %p370 = scmp.eq.s32.totalorder %s35, 0
      %p371 = por %p369, %p370
      %p372 = scmp.ne.s32.totalorder %s360, %s361
      %p373 = scmp.eq.s32.totalorder %s36, 1
      %p374 = por %p372, %p373
      %p376 = scmp.ne.s32.totalorder %s361, %s375
      %p377 = scmp.eq.s32.totalorder %s36, 0
      %p378 = por %p376, %p377
      %s380 = sadd.s32 %s379, 1
      %p383 = scmp.eq.s32.totalorder %s30, 1
      %p384 = scmp.ne.s32.totalorder %s379, %s381
      %p385 = scmp.eq.s32.totalorder %s30, 0
      %p386 = por %p384, %p385
      %p387 = scmp.ne.s32.totalorder %s379, %s381
      %p388 = scmp.eq.s32.totalorder %s35, 1
      %p389 = por %p387, %p388
      %p390 = scmp.ne.s32.totalorder %s381, %s382
      %p391 = scmp.eq.s32.totalorder %s35, 0
      %p392 = por %p390, %p391
      %p393 = scmp.ne.s32.totalorder %s381, %s382
      %p394 = scmp.eq.s32.totalorder %s36, 1
      %p395 = por %p393, %p394
      %p397 = scmp.ne.s32.totalorder %s382, %s396
      %p398 = scmp.eq.s32.totalorder %s36, 0
      %p399 = por %p397, %p398
      %s401 = sadd.s32 %s400, 1
      %p404 = scmp.eq.s32.totalorder %s30, 1
      %p405 = scmp.ne.s32.totalorder %s400, %s402
      %p406 = scmp.eq.s32.totalorder %s30, 0
      %p407 = por %p405, %p406
      %p408 = scmp.ne.s32.totalorder %s400, %s402
      %p409 = scmp.eq.s32.totalorder %s35, 1
      %p410 = por %p408, %p409
      %p411 = scmp.ne.s32.totalorder %s402, %s403
      %p412 = scmp.eq.s32.totalorder %s35, 0
      %p413 = por %p411, %p412
      %p414 = scmp.ne.s32.totalorder %s402, %s403
      %p415 = scmp.eq.s32.totalorder %s36, 1
      %p416 = por %p414, %p415
      %p418 = scmp.ne.s32.totalorder %s403, %s417
      %p419 = scmp.eq.s32.totalorder %s36, 0
      %p420 = por %p418, %p419
      %s422 = sadd.s32 %s421, 1
      %p425 = scmp.eq.s32.totalorder %s30, 1
      %p426 = scmp.ne.s32.totalorder %s421, %s423
      %p427 = scmp.eq.s32.totalorder %s30, 0
      %p428 = por %p426, %p427
      %p429 = scmp.ne.s32.totalorder %s421, %s423
      %p430 = scmp.eq.s32.totalorder %s35, 1
      %p431 = por %p429, %p430
      %p432 = scmp.ne.s32.totalorder %s423, %s424
      %p433 = scmp.eq.s32.totalorder %s35, 0
      %p434 = por %p432, %p433
      %p435 = scmp.ne.s32.totalorder %s423, %s424
      %p436 = scmp.eq.s32.totalorder %s36, 1
      %p437 = por %p435, %p436
      %p439 = scmp.ne.s32.totalorder %s424, %s438
      %p440 = scmp.eq.s32.totalorder %s36, 0
      %p441 = por %p439, %p440
      %s443 = sadd.s32 %s442, 1
      %p446 = scmp.eq.s32.totalorder %s30, 1
      %p447 = scmp.ne.s32.totalorder %s442, %s444
      %p448 = scmp.eq.s32.totalorder %s30, 0
      %p449 = por %p447, %p448
      %p450 = scmp.ne.s32.totalorder %s442, %s444
      %p451 = scmp.eq.s32.totalorder %s35, 1
      %p452 = por %p450, %p451
      %p453 = scmp.ne.s32.totalorder %s444, %s445
      %p454 = scmp.eq.s32.totalorder %s35, 0
      %p455 = por %p453, %p454
      %p456 = scmp.ne.s32.totalorder %s444, %s445
      %p457 = scmp.eq.s32.totalorder %s36, 1
      %p458 = por %p456, %p457
      %p460 = scmp.ne.s32.totalorder %s445, %s459
      %p461 = scmp.eq.s32.totalorder %s36, 0
      %p462 = por %p460, %p461
      %s464 = sadd.s32 %s463, 1
      %p467 = scmp.eq.s32.totalorder %s30, 1
      %p468 = scmp.ne.s32.totalorder %s463, %s465
      %p469 = scmp.eq.s32.totalorder %s30, 0
      %p470 = por %p468, %p469
      %p471 = scmp.ne.s32.totalorder %s463, %s465
      %p472 = scmp.eq.s32.totalorder %s35, 1
      %p473 = por %p471, %p472
      %p474 = scmp.ne.s32.totalorder %s465, %s466
      %p475 = scmp.eq.s32.totalorder %s35, 0
      %p476 = por %p474, %p475
      %p477 = scmp.ne.s32.totalorder %s465, %s466
      %p478 = scmp.eq.s32.totalorder %s36, 1
      %p479 = por %p477, %p478
      %p481 = scmp.ne.s32.totalorder %s466, %s480
      %p482 = scmp.eq.s32.totalorder %s36, 0
      %p483 = por %p481, %p482
      %s484 = ssub.s32 %s30, %s37
      %p485 = scmp.eq.s32.totalorder %s484, 0
      %s487 = sadd.s32 %s486, 1
      %s488 = scalar_select %p485, %s486, %s487
      %p491 = pneg %p485
      %p492 = scmp.eq.s32.totalorder %s30, 1
      %p493 = por %p491, %p492
      %p494 = scmp.ne.s32.totalorder %s486, %s489
      %p495 = scmp.eq.s32.totalorder %s30, 0
      %p496 = por %p494, %p495
      %p497 = scmp.ne.s32.totalorder %s486, %s489
      %p498 = scmp.eq.s32.totalorder %s35, 1
      %p499 = por %p497, %p498
      %p500 = scmp.ne.s32.totalorder %s489, %s490
      %p501 = scmp.eq.s32.totalorder %s35, 0
      %p502 = por %p500, %p501
      %p503 = scmp.ne.s32.totalorder %s489, %s490
      %p504 = scmp.eq.s32.totalorder %s36, 1
      %p505 = por %p503, %p504
      %p507 = scmp.ne.s32.totalorder %s490, %s506
      %p508 = scmp.eq.s32.totalorder %s36, 0
      %p509 = por %p507, %p508
      %p510 = scmp.le.s32.totalorder 1, %s30
      %p511 = scmp.lt.s32.totalorder %s30, 3
      %p512 = pnand %p510, %p511
      %p513 = pneg %p512
      // Predicated region
      $region9: #{classification_model_forward.1} parent=5 // pred_check
        _
      $region10: #{classification_model_forward.1} parent=5 // pred_check_branch
        %515 = sbr.rel (%p512) target = $region12
      $region11: #{classification_model_forward.1} parent=5 // pred_region
        %s516 = ssub.s32 %s30, 1
        // Predicated region
        $region13: #{classification_model_forward.1} parent=11 // pred_check
          %p517 = pneg %p77
        $region14: #{classification_model_forward.1} parent=11 // pred_check_branch
          %519 = sbr.rel (%p517) target = $region16
        $region15: #{classification_model_forward.1} parent=11 // pred_region
          _
        $region16: #{classification_model_forward.1} parent=11 // pred_fallthru
          _
        // Predicated region
        $region17: #{classification_model_forward.1} parent=11 // pred_check
          %p520 = pneg %p98
        $region18: #{classification_model_forward.1} parent=11 // pred_check_branch
          %522 = sbr.rel (%p520) target = $region20
        $region19: #{classification_model_forward.1} parent=11 // pred_region
          _
        $region20: #{classification_model_forward.1} parent=11 // pred_fallthru
          _
        // Predicated region
        $region21: #{classification_model_forward.1} parent=11 // pred_check
          %p523 = pneg %p119
        $region22: #{classification_model_forward.1} parent=11 // pred_check_branch
          %525 = sbr.rel (%p523) target = $region24
        $region23: #{classification_model_forward.1} parent=11 // pred_region
          _
        $region24: #{classification_model_forward.1} parent=11 // pred_fallthru
          _
        // Predicated region
        $region25: #{classification_model_forward.1} parent=11 // pred_check
          %p526 = pneg %p140
        $region26: #{classification_model_forward.1} parent=11 // pred_check_branch
          %528 = sbr.rel (%p526) target = $region28
        $region27: #{classification_model_forward.1} parent=11 // pred_region
          _
        $region28: #{classification_model_forward.1} parent=11 // pred_fallthru
          _
        // Predicated region
        $region29: #{classification_model_forward.1} parent=11 // pred_check
          %p529 = pneg %p161
        $region30: #{classification_model_forward.1} parent=11 // pred_check_branch
          %531 = sbr.rel (%p529) target = $region32
        $region31: #{classification_model_forward.1} parent=11 // pred_region
          _
        $region32: #{classification_model_forward.1} parent=11 // pred_fallthru
          _
        // Predicated region
        $region33: #{classification_model_forward.1} parent=11 // pred_check
          %p532 = pneg %p182
        $region34: #{classification_model_forward.1} parent=11 // pred_check_branch
          %534 = sbr.rel (%p532) target = $region36
        $region35: #{classification_model_forward.1} parent=11 // pred_region
          _
        $region36: #{classification_model_forward.1} parent=11 // pred_fallthru
          _
        // Predicated region
        $region37: #{classification_model_forward.1} parent=11 // pred_check
          %p535 = pneg %p203
        $region38: #{classification_model_forward.1} parent=11 // pred_check_branch
          %537 = sbr.rel (%p535) target = $region40
        $region39: #{classification_model_forward.1} parent=11 // pred_region
          _
        $region40: #{classification_model_forward.1} parent=11 // pred_fallthru
          _
        // Predicated region
        $region41: #{classification_model_forward.1} parent=11 // pred_check
          %p538 = pneg %p224
        $region42: #{classification_model_forward.1} parent=11 // pred_check_branch
          %540 = sbr.rel (%p538) target = $region44
        $region43: #{classification_model_forward.1} parent=11 // pred_region
          _
        $region44: #{classification_model_forward.1} parent=11 // pred_fallthru
          _
        // Predicated region
        $region45: #{classification_model_forward.1} parent=11 // pred_check
          %p541 = pneg %p245
        $region46: #{classification_model_forward.1} parent=11 // pred_check_branch
          %543 = sbr.rel (%p541) target = $region48
        $region47: #{classification_model_forward.1} parent=11 // pred_region
          _
        $region48: #{classification_model_forward.1} parent=11 // pred_fallthru
          _
        // Predicated region
        $region49: #{classification_model_forward.1} parent=11 // pred_check
          %p544 = pneg %p266
        $region50: #{classification_model_forward.1} parent=11 // pred_check_branch
          %546 = sbr.rel (%p544) target = $region52
        $region51: #{classification_model_forward.1} parent=11 // pred_region
          _
        $region52: #{classification_model_forward.1} parent=11 // pred_fallthru
          _
        // Predicated region
        $region53: #{classification_model_forward.1} parent=11 // pred_check
          %p547 = pneg %p287
        $region54: #{classification_model_forward.1} parent=11 // pred_check_branch
          %549 = sbr.rel (%p547) target = $region56
        $region55: #{classification_model_forward.1} parent=11 // pred_region
          _
        $region56: #{classification_model_forward.1} parent=11 // pred_fallthru
          _
        // Predicated region
        $region57: #{classification_model_forward.1} parent=11 // pred_check
          %p550 = pneg %p308
        $region58: #{classification_model_forward.1} parent=11 // pred_check_branch
          %552 = sbr.rel (%p550) target = $region60
        $region59: #{classification_model_forward.1} parent=11 // pred_region
          _
        $region60: #{classification_model_forward.1} parent=11 // pred_fallthru
          _
        // Predicated region
        $region61: #{classification_model_forward.1} parent=11 // pred_check
          %p553 = pneg %p329
        $region62: #{classification_model_forward.1} parent=11 // pred_check_branch
          %555 = sbr.rel (%p553) target = $region64
        $region63: #{classification_model_forward.1} parent=11 // pred_region
          _
        $region64: #{classification_model_forward.1} parent=11 // pred_fallthru
          _
        // Predicated region
        $region65: #{classification_model_forward.1} parent=11 // pred_check
          %p556 = pneg %p350
        $region66: #{classification_model_forward.1} parent=11 // pred_check_branch
          %558 = sbr.rel (%p556) target = $region68
        $region67: #{classification_model_forward.1} parent=11 // pred_region
          _
        $region68: #{classification_model_forward.1} parent=11 // pred_fallthru
          _
        // Predicated region
        $region69: #{classification_model_forward.1} parent=11 // pred_check
          %p559 = pneg %p371
        $region70: #{classification_model_forward.1} parent=11 // pred_check_branch
          %561 = sbr.rel (%p559) target = $region72
        $region71: #{classification_model_forward.1} parent=11 // pred_region
          _
        $region72: #{classification_model_forward.1} parent=11 // pred_fallthru
          _
        // Predicated region
        $region73: #{classification_model_forward.1} parent=11 // pred_check
          %p562 = pneg %p392
        $region74: #{classification_model_forward.1} parent=11 // pred_check_branch
          %564 = sbr.rel (%p562) target = $region76
        $region75: #{classification_model_forward.1} parent=11 // pred_region
          _
        $region76: #{classification_model_forward.1} parent=11 // pred_fallthru
          _
        // Predicated region
        $region77: #{classification_model_forward.1} parent=11 // pred_check
          %p565 = pneg %p413
        $region78: #{classification_model_forward.1} parent=11 // pred_check_branch
          %567 = sbr.rel (%p565) target = $region80
        $region79: #{classification_model_forward.1} parent=11 // pred_region
          _
        $region80: #{classification_model_forward.1} parent=11 // pred_fallthru
          _
        // Predicated region
        $region81: #{classification_model_forward.1} parent=11 // pred_check
          %p568 = pneg %p434
        $region82: #{classification_model_forward.1} parent=11 // pred_check_branch
          %570 = sbr.rel (%p568) target = $region84
        $region83: #{classification_model_forward.1} parent=11 // pred_region
          _
        $region84: #{classification_model_forward.1} parent=11 // pred_fallthru
          _
        // Predicated region
        $region85: #{classification_model_forward.1} parent=11 // pred_check
          %p571 = pneg %p455
        $region86: #{classification_model_forward.1} parent=11 // pred_check_branch
          %573 = sbr.rel (%p571) target = $region88
        $region87: #{classification_model_forward.1} parent=11 // pred_region
          _
        $region88: #{classification_model_forward.1} parent=11 // pred_fallthru
          _
        // Predicated region
        $region89: #{classification_model_forward.1} parent=11 // pred_check
          %p574 = pneg %p476
        $region90: #{classification_model_forward.1} parent=11 // pred_check_branch
          %576 = sbr.rel (%p574) target = $region92
        $region91: #{classification_model_forward.1} parent=11 // pred_region
          _
        $region92: #{classification_model_forward.1} parent=11 // pred_fallthru
          _
      $region12: #{classification_model_forward.1} parent=5 // pred_fallthru
        _
      %p577 = scmp.lt.s32.totalorder %s30, 2
      // Predicated region
      $region93: #{classification_model_forward.1} parent=5 // pred_check
        %p578 = pneg %p577
      $region94: #{classification_model_forward.1} parent=5 // pred_check_branch
        %580 = sbr.rel (%p578) target = $region96
      $region95: #{classification_model_forward.1} parent=5 // pred_region
        // Predicated region
        $region97: #{classification_model_forward.1} parent=95 // pred_check
          %p581 = pneg %p50
        $region98: #{classification_model_forward.1} parent=95 // pred_check_branch
          %583 = sbr.rel (%p581) target = $region100
        $region99: #{classification_model_forward.1} parent=95 // pred_region
          %p584 = scmp.lt.s32.totalorder %s30, 1
          %s585 = scalar_select %p584, %s30, 1
          %s586 = smul.addr %s585, 2
          %s587 = smul.addr %s586, 4
          %s588 = scalar_lea.vmem %s0, %s587
        $region100: #{classification_model_forward.1} parent=95 // pred_fallthru
          _
      $region96: #{classification_model_forward.1} parent=5 // pred_fallthru
        _
      %p589 = scmp.le.s32.totalorder 1, %s30
      %p590 = scmp.lt.s32.totalorder %s30, 3
      %p591 = pnand %p589, %p590
      %p592 = pneg %p591
      // Predicated region
      $region101: #{classification_model_forward.1} parent=5 // pred_check
        _
      $region102: #{classification_model_forward.1} parent=5 // pred_check_branch
        %594 = sbr.rel (%p591) target = $region104
      $region103: #{classification_model_forward.1} parent=5 // pred_region
        %s595 = ssub.s32 %s30, 1
        %p596 = scmp.lt.s32.totalorder %s35, 1
        %s597 = scalar_select %p596, %s35, 1
        %s598 = smul.addr %s597, 2
        %s599 = smul.addr %s598, 4
        %s600 = scalar_lea.vmem %s0, %s599
        %p601 = pneg %p56
        %p602 = pneg %p53
        %p603 = pneg %p77
        %p604 = pneg %p74
        %p605 = pneg %p98
        %p606 = pneg %p95
        %p607 = pneg %p119
        %p608 = pneg %p116
        %p609 = pneg %p140
        %p610 = pneg %p137
        %p611 = pneg %p161
        %p612 = pneg %p158
        %p613 = pneg %p182
        %p614 = pneg %p179
        %p615 = pneg %p203
        %p616 = pneg %p200
        %p617 = pneg %p224
        %p618 = pneg %p221
        %p619 = pneg %p245
        %p620 = pneg %p242
        %p621 = pneg %p266
        %p622 = pneg %p263
        %p623 = pneg %p287
        %p624 = pneg %p284
        %p625 = pneg %p308
        %p626 = pneg %p305
        %p627 = pneg %p329
        %p628 = pneg %p326
        %p629 = pneg %p350
        %p630 = pneg %p347
        %p631 = pneg %p371
        %p632 = pneg %p368
        %p633 = pneg %p392
        %p634 = pneg %p389
        %p635 = pneg %p413
        %p636 = pneg %p410
        %p637 = pneg %p434
        %p638 = pneg %p431
        %p639 = pneg %p455
        %p640 = pneg %p452
        %p641 = pneg %p476
        %p642 = pneg %p473
        %p643 = pneg %p502
        %p644 = pneg %p499
        %s645 = sand.u32 %s489, 1
        %s646 = scalar_lea.sflag [#allocation5], %s645
        %s647 = sand.u32 %s489, 1
        %s648 = scalar_lea.vmem [#allocation4], %s647
        %p649 = scmp.lt.s32.totalorder %s35, 1
        %s650 = scalar_select %p649, %s35, 1
        %s651 = smul.addr %s650, 2
        %s652 = smul.addr %s651, 4
        %s653 = scalar_lea.vmem %s0, %s652
        %v654 = vld [vmem:[%s653] sm:$0xff]
        %v655 = vld [vmem:[%s1] sm:$0xff]
        %v656 = vld [vmem:[%s1 + $0x8] sm:$0xff]
        %v657 = vld [vmem:[%s1 + $0x10] sm:$0xff]
        %v658 = vld [vmem:[%s1 + $0x18] sm:$0xff]
        %v659 = vld [vmem:[%s1 + $0x20] sm:$0xff]
        %v660 = vld [vmem:[%s1 + $0x28] sm:$0xff]
        %v661 = vld [vmem:[%s1 + $0x30] sm:$0xff]
        %v662 = vld [vmem:[%s1 + $0x38] sm:$0xff]
        %v663 = vld [vmem:[%s1 + $0x40] sm:$0xff]
        %v664 = vld [vmem:[%s1 + $0x48] sm:$0xff]
        %v665 = vld [vmem:[%s1 + $0x50] sm:$0xff]
        %v666 = vld [vmem:[%s1 + $0x58] sm:$0xff]
        %v667 = vld [vmem:[%s1 + $0x60] sm:$0xff]
        %v668 = vld [vmem:[%s1 + $0x68] sm:$0xff]
        %v669 = vld [vmem:[%s1 + $0x70] sm:$0xff]
        %v670 = vld [vmem:[%s1 + $0x78] sm:$0xff]
        %v671 = vld [vmem:[%s1 + $0x80] sm:$0xff]
        %v672 = vld [vmem:[%s1 + $0x88] sm:$0xff]
        %v673 = vld [vmem:[%s1 + $0x90] sm:$0xff]
        %v674 = vld [vmem:[%s1 + $0x98] sm:$0xff]
        %v675 = vld [vmem:[%s1 + $0xa0] sm:$0xff]
        %v676 = vld [vmem:[%s1 + $0xa8] sm:$0xff]
        %v677 = vld [vmem:[%s1 + $0xb0] sm:$0xff]
        %v678 = vld [vmem:[%s1 + $0xb8] sm:$0xff]
        %v679 = vld [vmem:[%s2] sm:$0x1]
        %v681 = vlaneseq
        %v682 = vshrl.u32 %v681, 7
        %v683 = vsub.s32 0, %v682
        %v684 = vrot.slane %v679, %v683
        %v687 = vcombine.high %v654, %v654
        %vm688 = vcmask 523264
        %v689 = vsel %vm688, %v687, 0
        %691 = vmatprep.subr.mxu0 0.0
        %692 = vmatpush1.msra.mxu0 %v655
        %693 = vmatprep.subr.mxu0 0.0
        %694 = vmatpush1.msra.mxu0 %v656
        %695 = vmatprep.subr.mxu0 0.0
        %696 = vmatpush1.msra.mxu0 %v657
        %697 = vmatprep.subr.mxu0 0.0
        %698 = vmatpush1.msra.mxu0 %v658
        %699 = vmatprep.subr.mxu0 0.0
        %700 = vmatpush1.msra.mxu0 %v659
        %701 = vmatprep.subr.mxu0 0.0
        %702 = vmatpush1.msra.mxu0 %v660
        %703 = vmatprep.subr.mxu0 0.0
        %704 = vmatpush1.msra.mxu0 %v661
        %705 = vmatprep.subr.mxu0 0.0
        %706 = vmatpush1.msra.mxu0 %v662
        %707 = vmatprep.subr.mxu0 0.0
        %708 = vmatpush1.msra.mxu0 %v663
        %709 = vmatprep.subr.mxu0 0.0
        %710 = vmatpush1.msra.mxu0 %v664
        %711 = vmatprep.subr.mxu0 0.0
        %712 = vmatpush1.msra.mxu0 %v665
        %713 = vmatprep.subr.mxu0 0.0
        %714 = vmatpush1.msra.mxu0 %v666
        %715 = vmatprep.subr.mxu0 0.0
        %716 = vmatpush1.msra.mxu0 %v667
        %717 = vmatprep.subr.mxu0 0.0
        %718 = vmatpush1.msra.mxu0 %v668
        %719 = vmatprep.subr.mxu0 0.0
        %720 = vmatpush1.msra.mxu0 %v669
        %721 = vmatprep.subr.mxu0 0.0
        %722 = vmatpush1.msra.mxu0 %v670
        %723 = vmatprep.subr.mxu0 0.0
        %724 = vmatpush1.msra.mxu0 %v671
        %725 = vmatprep.subr.mxu0 0.0
        %726 = vmatpush1.msra.mxu0 %v672
        %727 = vmatprep.subr.mxu0 0.0
        %728 = vmatpush1.msra.mxu0 %v673
        %729 = vmatprep.subr.mxu0 0.0
        %730 = vmatpush1.msra.mxu0 %v674
        %731 = vmatprep.subr.mxu0 0.0
        %732 = vmatpush1.msra.mxu0 %v675
        %733 = vmatprep.subr.mxu0 0.0
        %734 = vmatpush1.msra.mxu0 %v676
        %735 = vmatprep.subr.mxu0 0.0
        %736 = vmatpush1.msra.mxu0 %v677
        %737 = vmatprep.subr.mxu0 0.0
        %738 = vmatpush1.msra.mxu0 %v678
        %739 = vmatprep.subr.mxu0 0.0
        %740 = vmatpush1.msra.mxu0 0.0
        %741 = vmatprep.subr.mxu0 0.0
        %742 = vmatpush1.msra.mxu0 0.0
        %743 = vmatprep.subr.mxu0 0.0
        %744 = vmatpush1.msra.mxu0 0.0
        %745 = vmatprep.subr.mxu0 0.0
        %746 = vmatpush1.msra.mxu0 0.0
        %747 = vmatprep.subr.mxu0 0.0
        %748 = vmatpush1.msra.mxu0 0.0
        %749 = vmatprep.subr.mxu0 0.0
        %750 = vmatpush1.msra.mxu0 0.0
        %751 = vmatprep.subr.mxu0 0.0
        %752 = vmatpush1.msra.mxu0 0.0
        %753 = vmatprep.subr.mxu0 0.0
        %754 = vmatpush1.msra.mxu0 0.0
        %755 = vmatprep.mubr.f32.mxu0 %v689
        %756 = vmatmul.mubr.f32.gmra.mrb[0].mxu0 %v654
        %v757 = vpop.f32.mrb[0].mxu0
        %v758 = vadd.f32 %v684, %v757
        %v759 = vpop.f32.mrb[0].mxu0
        %760 = vdwg.mxu0
        %v761 = vld [vmem:[%s4] sm:$0x1f]
        %v762 = vld [vmem:[%s3] sm:$0x1]
        %v763 = vadd.f32 %v762, %v761
        %vm764 = vcmask 253952
        %765 = vst.msk [vmem:[#allocation2] sm:$0x1] %vm764, %v763
        %v767 = vrot.slane %v761, 1
        %v769 = vadd.f32 %v758, %v767
        %vm770 = vcmask 257024
        %771 = vst.msk [vmem:[#allocation2 + $0x1] sm:$0xf] %vm770, %v769
        %v772 = vld [vmem:[#allocation2] sm:$0x1f]
        %v773 = vld [vmem:[%s5] sm:$0x1]
        %v774 = vld [vmem:[%s6] sm:$0x1]
        %vm775 = vcmask 258048
        %v776 = vsel %vm775, %v772, 0.0
        %777 = vadd.xlane.f32.xlu0 %v776
        %v778 = vpop.xlane.xlu0 %777
        %v779 = vrcp.pop 32.0
        %v780 = vmul.f32 %v778, %v779
        %v781 = vsub.f32 %v772, %v780
        %v782 = vmul.f32 %v781, %v781
        %v783 = vsel %vm775, %v782, 0.0
        %784 = vadd.xlane.f32.xlu0 %v783
        %v785 = vpop.xlane.xlu0 %784
        %v786 = vmul.f32 %v785, %v779
        %v787 = vadd.f32 %v786, 1e-06
        %v788 = vrsqrt.pop %v787
        %v789 = vmul.f32 %v781, %v788
        %v791 = vlaneseq
        %v792 = vshrl.u32 %v791, 7
        %v793 = vsub.s32 0, %v792
        %v794 = vrot.slane %v773, %v793
        %v796 = vmul.f32 %v789, %v794
        %v798 = vlaneseq
        %v799 = vshrl.u32 %v798, 7
        %v800 = vsub.s32 0, %v799
        %v801 = vrot.slane %v774, %v800
        %v803 = vadd.f32 %v796, %v801
        %v804 = vld [vmem:[%s7] sm:$0xff]
        %v805 = vld [vmem:[%s7 + $0x8] sm:$0xff]
        %v806 = vld [vmem:[%s7 + $0x10] sm:$0xff]
        %v807 = vld [vmem:[%s7 + $0x18] sm:$0xff]
        %v808 = vld [vmem:[%s8] sm:$0x1]
        %v810 = vlaneseq
        %v811 = vshrl.u32 %v810, 7
        %v812 = vsub.s32 0, %v811
        %v813 = vrot.slane %v808, %v812
        %vm815 = vcmask 261120
        %v817 = vsel %vm815, %v803, 0
        %819 = vmatprep.subr.mxu0 0.0
        %820 = vmatpush1.msra.mxu0 %v804
        %821 = vmatprep.subr.mxu0 0.0
        %822 = vmatpush1.msra.mxu0 %v805
        %823 = vmatprep.subr.mxu0 0.0
        %824 = vmatpush1.msra.mxu0 %v806
        %825 = vmatprep.subr.mxu0 0.0
        %826 = vmatpush1.msra.mxu0 %v807
        %827 = vmatprep.subr.mxu0 0.0
        %828 = vmatpush1.msra.mxu0 0.0
        %829 = vmatprep.subr.mxu0 0.0
        %830 = vmatpush1.msra.mxu0 0.0
        %831 = vmatprep.subr.mxu0 0.0
        %832 = vmatpush1.msra.mxu0 0.0
        %833 = vmatprep.subr.mxu0 0.0
        %834 = vmatpush1.msra.mxu0 0.0
        %835 = vmatprep.subr.mxu0 0.0
        %836 = vmatpush1.msra.mxu0 0.0
        %837 = vmatprep.subr.mxu0 0.0
        %838 = vmatpush1.msra.mxu0 0.0
        %839 = vmatprep.subr.mxu0 0.0
        %840 = vmatpush1.msra.mxu0 0.0
        %841 = vmatprep.subr.mxu0 0.0
        %842 = vmatpush1.msra.mxu0 0.0
        %843 = vmatprep.subr.mxu0 0.0
        %844 = vmatpush1.msra.mxu0 0.0
        %845 = vmatprep.subr.mxu0 0.0
        %846 = vmatpush1.msra.mxu0 0.0
        %847 = vmatprep.subr.mxu0 0.0
        %848 = vmatpush1.msra.mxu0 0.0
        %849 = vmatprep.subr.mxu0 0.0
        %850 = vmatpush1.msra.mxu0 0.0
        %851 = vmatprep.subr.mxu0 0.0
        %852 = vmatpush1.msra.mxu0 0.0
        %853 = vmatprep.subr.mxu0 0.0
        %854 = vmatpush1.msra.mxu0 0.0
        %855 = vmatprep.subr.mxu0 0.0
        %856 = vmatpush1.msra.mxu0 0.0
        %857 = vmatprep.subr.mxu0 0.0
        %858 = vmatpush1.msra.mxu0 0.0
        %859 = vmatprep.subr.mxu0 0.0
        %860 = vmatpush1.msra.mxu0 0.0
        %861 = vmatprep.subr.mxu0 0.0
        %862 = vmatpush1.msra.mxu0 0.0
        %863 = vmatprep.subr.mxu0 0.0
        %864 = vmatpush1.msra.mxu0 0.0
        %865 = vmatprep.subr.mxu0 0.0
        %866 = vmatpush1.msra.mxu0 0.0
        %867 = vmatprep.subr.mxu0 0.0
        %868 = vmatpush1.msra.mxu0 0.0
        %869 = vmatprep.subr.mxu0 0.0
        %870 = vmatpush1.msra.mxu0 0.0
        %871 = vmatprep.subr.mxu0 0.0
        %872 = vmatpush1.msra.mxu0 0.0
        %873 = vmatprep.subr.mxu0 0.0
        %874 = vmatpush1.msra.mxu0 0.0
        %875 = vmatprep.subr.mxu0 0.0
        %876 = vmatpush1.msra.mxu0 0.0
        %877 = vmatprep.subr.mxu0 0.0
        %878 = vmatpush1.msra.mxu0 0.0
        %879 = vmatprep.subr.mxu0 0.0
        %880 = vmatpush1.msra.mxu0 0.0
        %881 = vmatprep.subr.mxu0 0.0
        %882 = vmatpush1.msra.mxu0 0.0
        %883 = vmatprep.mubr.f32.mxu0 0.0
        %884 = vmatmul.mubr.f32.gmra.mrb[0].mxu0 %v817
        %v885 = vpop.f32.mrb[0].mxu0
        %v886 = vadd.f32 %v813, %v885
        %v887 = vpop.f32.mrb[0].mxu0
        %888 = vdwg.mxu0
        %890 = vrot.lane.b32.xlu0 %v886, 96
        %v891 = vpop.permute.xlu0 %890
        %vm892 = vcmask 130048
        %v893 = vsel %vm892, %v886, 0
        %v895 = vsel %vm892, %v891, 0
        %897 = vmatprep.subr.mxu0 0.0
        %898 = vmatpush1.xpose.msra.mxu0 %v895
        %899 = vmatprep.subr.mxu0 0.0
        %900 = vmatpush1.xpose.msra.mxu0 0.0
        %901 = vmatprep.subr.mxu0 0.0
        %902 = vmatpush1.xpose.msra.mxu0 0.0
        %903 = vmatprep.subr.mxu0 0.0
        %904 = vmatpush1.xpose.msra.mxu0 0.0
        %905 = vmatprep.subr.mxu0 0.0
        %906 = vmatpush1.xpose.msra.mxu0 0.0
        %907 = vmatprep.subr.mxu0 0.0
        %908 = vmatpush1.xpose.msra.mxu0 0.0
        %909 = vmatprep.subr.mxu0 0.0
        %910 = vmatpush1.xpose.msra.mxu0 0.0
        %911 = vmatprep.subr.mxu0 0.0
        %912 = vmatpush1.xpose.msra.mxu0 0.0
        %913 = vmatprep.subr.mxu0 0.0
        %914 = vmatpush1.xpose.msra.mxu0 0.0
        %915 = vmatprep.subr.mxu0 0.0
        %916 = vmatpush1.xpose.msra.mxu0 0.0
        %917 = vmatprep.subr.mxu0 0.0
        %918 = vmatpush1.xpose.msra.mxu0 0.0
        %919 = vmatprep.subr.mxu0 0.0
        %920 = vmatpush1.xpose.msra.mxu0 0.0
        %921 = vmatprep.subr.mxu0 0.0
        %922 = vmatpush1.xpose.msra.mxu0 0.0
        %923 = vmatprep.subr.mxu0 0.0
        %924 = vmatpush1.xpose.msra.mxu0 0.0
        %925 = vmatprep.subr.mxu0 0.0
        %926 = vmatpush1.xpose.msra.mxu0 0.0
        %927 = vmatprep.subr.mxu0 0.0
        %928 = vmatpush1.xpose.msra.mxu0 0.0
        %929 = vmatprep.subr.mxu0 0.0
        %930 = vmatpush1.xpose.msra.mxu0 0.0
        %931 = vmatprep.subr.mxu0 0.0
        %932 = vmatpush1.xpose.msra.mxu0 0.0
        %933 = vmatprep.subr.mxu0 0.0
        %934 = vmatpush1.xpose.msra.mxu0 0.0
        %935 = vmatprep.subr.mxu0 0.0
        %936 = vmatpush1.xpose.msra.mxu0 0.0
        %937 = vmatprep.subr.mxu0 0.0
        %938 = vmatpush1.xpose.msra.mxu0 0.0
        %939 = vmatprep.subr.mxu0 0.0
        %940 = vmatpush1.xpose.msra.mxu0 0.0
        %941 = vmatprep.subr.mxu0 0.0
        %942 = vmatpush1.xpose.msra.mxu0 0.0
        %943 = vmatprep.subr.mxu0 0.0
        %944 = vmatpush1.xpose.msra.mxu0 0.0
        %945 = vmatprep.subr.mxu0 0.0
        %946 = vmatpush1.xpose.msra.mxu0 0.0
        %947 = vmatprep.subr.mxu0 0.0
        %948 = vmatpush1.xpose.msra.mxu0 0.0
        %949 = vmatprep.subr.mxu0 0.0
        %950 = vmatpush1.xpose.msra.mxu0 0.0
        %951 = vmatprep.subr.mxu0 0.0
        %952 = vmatpush1.xpose.msra.mxu0 0.0
        %953 = vmatprep.subr.mxu0 0.0
        %954 = vmatpush1.xpose.msra.mxu0 0.0
        %955 = vmatprep.subr.mxu0 0.0
        %956 = vmatpush1.xpose.msra.mxu0 0.0
        %957 = vmatprep.subr.mxu0 0.0
        %958 = vmatpush1.xpose.msra.mxu0 0.0
        %959 = vmatprep.subr.mxu0 0.0
        %960 = vmatpush1.xpose.msra.mxu0 0.0
        %961 = vmatprep.mubr.f32.mxu0 0.0
        %962 = vmatmul.mubr.f32.gmra.mrb[0].mxu0 %v893
        %v963 = vpop.f32.mrb[0].mxu0
        %v964 = vadd.f32 0.0, %v963
        %v965 = vpop.f32.mrb[0].mxu0
        %966 = vdwg.mxu0
        %v967 = vmul.f32 %v964, 0.25
        %vm968 = vcmask 36864
        %v969 = vsel %vm968, %v967, -inf
        %970 = vmax.xlane.f32.xlu0 %v969
        %v971 = vpop.xlane.xlu0 %970
        %v972 = vsub.f32 %v967, %v971
        %v973 = vmul.f32 %v972, 1.442695
        %v974 = vpow.pop %v973
        %v975 = vsel %vm968, %v974, 0.0
        %976 = vadd.xlane.f32.xlu0 %v975
        %v977 = vpop.xlane.xlu0 %976
        %978 = vrot.lane.b32.xlu0 %v886, 64
        %v979 = vpop.permute.xlu0 %978
        %vm980 = vcmask 39936
        %v982 = vsel %vm980, %v974, 0
        %vm984 = vcmask 1044480
        %v985 = vsel %vm984, %v979, 0
        %987 = vmatprep.subr.mxu0 0.0
        %988 = vmatpush1.msra.mxu0 %v985
        %989 = vmatprep.subr.mxu0 0.0
        %990 = vmatpush1.msra.mxu0 0.0
        %991 = vmatprep.subr.mxu0 0.0
        %992 = vmatpush1.msra.mxu0 0.0
        %993 = vmatprep.subr.mxu0 0.0
        %994 = vmatpush1.msra.mxu0 0.0
        %995 = vmatprep.subr.mxu0 0.0
        %996 = vmatpush1.msra.mxu0 0.0
        %997 = vmatprep.subr.mxu0 0.0
        %998 = vmatpush1.msra.mxu0 0.0
        %999 = vmatprep.subr.mxu0 0.0
        %1000 = vmatpush1.msra.mxu0 0.0
        %1001 = vmatprep.subr.mxu0 0.0
        %1002 = vmatpush1.msra.mxu0 0.0
        %1003 = vmatprep.subr.mxu0 0.0
        %1004 = vmatpush1.msra.mxu0 0.0
        %1005 = vmatprep.subr.mxu0 0.0
        %1006 = vmatpush1.msra.mxu0 0.0
        %1007 = vmatprep.subr.mxu0 0.0
        %1008 = vmatpush1.msra.mxu0 0.0
        %1009 = vmatprep.subr.mxu0 0.0
        %1010 = vmatpush1.msra.mxu0 0.0
        %1011 = vmatprep.subr.mxu0 0.0
        %1012 = vmatpush1.msra.mxu0 0.0
        %1013 = vmatprep.subr.mxu0 0.0
        %1014 = vmatpush1.msra.mxu0 0.0
        %1015 = vmatprep.subr.mxu0 0.0
        %1016 = vmatpush1.msra.mxu0 0.0
        %1017 = vmatprep.subr.mxu0 0.0
        %1018 = vmatpush1.msra.mxu0 0.0
        %1019 = vmatprep.subr.mxu0 0.0
        %1020 = vmatpush1.msra.mxu0 0.0
        %1021 = vmatprep.subr.mxu0 0.0
        %1022 = vmatpush1.msra.mxu0 0.0
        %1023 = vmatprep.subr.mxu0 0.0
        %1024 = vmatpush1.msra.mxu0 0.0
        %1025 = vmatprep.subr.mxu0 0.0
        %1026 = vmatpush1.msra.mxu0 0.0
        %1027 = vmatprep.subr.mxu0 0.0
        %1028 = vmatpush1.msra.mxu0 0.0
        %1029 = vmatprep.subr.mxu0 0.0
        %1030 = vmatpush1.msra.mxu0 0.0
        %1031 = vmatprep.subr.mxu0 0.0
        %1032 = vmatpush1.msra.mxu0 0.0
        %1033 = vmatprep.subr.mxu0 0.0
        %1034 = vmatpush1.msra.mxu0 0.0
        %1035 = vmatprep.subr.mxu0 0.0
        %1036 = vmatpush1.msra.mxu0 0.0
        %1037 = vmatprep.subr.mxu0 0.0
        %1038 = vmatpush1.msra.mxu0 0.0
        %1039 = vmatprep.subr.mxu0 0.0
        %1040 = vmatpush1.msra.mxu0 0.0
        %1041 = vmatprep.subr.mxu0 0.0
        %1042 = vmatpush1.msra.mxu0 0.0
        %1043 = vmatprep.subr.mxu0 0.0
        %1044 = vmatpush1.msra.mxu0 0.0
        %1045 = vmatprep.subr.mxu0 0.0
        %1046 = vmatpush1.msra.mxu0 0.0
        %1047 = vmatprep.subr.mxu0 0.0
        %1048 = vmatpush1.msra.mxu0 0.0
        %1049 = vmatprep.subr.mxu0 0.0
        %1050 = vmatpush1.msra.mxu0 0.0
        %1051 = vmatprep.mubr.f32.mxu0 0.0
        %1052 = vmatmul.mubr.f32.gmra.mrb[0].mxu0 %v982
        %v1053 = vpop.f32.mrb[0].mxu0
        %v1054 = vadd.f32 0.0, %v1053
        %v1055 = vpop.f32.mrb[0].mxu0
        %1056 = vdwg.mxu0
        %v1057 = vrcp.pop %v977
        %v1058 = vmul.f32 %v1054, %v1057
        %vm1059 = vcmask 126976
        %1060 = vst.msk [vmem:[#allocation3] sm:$0x1f] %vm1059, %v1058
        %1061 = vrot.lane.b32.xlu0 %v886, 112
        %v1062 = vpop.permute.xlu0 %1061
        %1063 = vrot.lane.b32.xlu0 %v886, 80
        %v1064 = vpop.permute.xlu0 %1063
        %v1065 = vsel %vm892, %v1062, 0
        %v1067 = vsel %vm892, %v1064, 0
        %1069 = vmatprep.subr.mxu0 0.0
        %1070 = vmatpush1.xpose.msra.mxu0 %v1067
        %1071 = vmatprep.subr.mxu0 0.0
        %1072 = vmatpush1.xpose.msra.mxu0 0.0
        %1073 = vmatprep.subr.mxu0 0.0
        %1074 = vmatpush1.xpose.msra.mxu0 0.0
        %1075 = vmatprep.subr.mxu0 0.0
        %1076 = vmatpush1.xpose.msra.mxu0 0.0
        %1077 = vmatprep.subr.mxu0 0.0
        %1078 = vmatpush1.xpose.msra.mxu0 0.0
        %1079 = vmatprep.subr.mxu0 0.0
        %1080 = vmatpush1.xpose.msra.mxu0 0.0
        %1081 = vmatprep.subr.mxu0 0.0
        %1082 = vmatpush1.xpose.msra.mxu0 0.0
        %1083 = vmatprep.subr.mxu0 0.0
        %1084 = vmatpush1.xpose.msra.mxu0 0.0
        %1085 = vmatprep.subr.mxu0 0.0
        %1086 = vmatpush1.xpose.msra.mxu0 0.0
        %1087 = vmatprep.subr.mxu0 0.0
        %1088 = vmatpush1.xpose.msra.mxu0 0.0
        %1089 = vmatprep.subr.mxu0 0.0
        %1090 = vmatpush1.xpose.msra.mxu0 0.0
        %1091 = vmatprep.subr.mxu0 0.0
        %1092 = vmatpush1.xpose.msra.mxu0 0.0
        %1093 = vmatprep.subr.mxu0 0.0
        %1094 = vmatpush1.xpose.msra.mxu0 0.0
        %1095 = vmatprep.subr.mxu0 0.0
        %1096 = vmatpush1.xpose.msra.mxu0 0.0
        %1097 = vmatprep.subr.mxu0 0.0
        %1098 = vmatpush1.xpose.msra.mxu0 0.0
        %1099 = vmatprep.subr.mxu0 0.0
        %1100 = vmatpush1.xpose.msra.mxu0 0.0
        %1101 = vmatprep.subr.mxu0 0.0
        %1102 = vmatpush1.xpose.msra.mxu0 0.0
        %1103 = vmatprep.subr.mxu0 0.0
        %1104 = vmatpush1.xpose.msra.mxu0 0.0
        %1105 = vmatprep.subr.mxu0 0.0
        %1106 = vmatpush1.xpose.msra.mxu0 0.0
        %1107 = vmatprep.subr.mxu0 0.0
        %1108 = vmatpush1.xpose.msra.mxu0 0.0
        %1109 = vmatprep.subr.mxu0 0.0
        %1110 = vmatpush1.xpose.msra.mxu0 0.0
        %1111 = vmatprep.subr.mxu0 0.0
        %1112 = vmatpush1.xpose.msra.mxu0 0.0
        %1113 = vmatprep.subr.mxu0 0.0
        %1114 = vmatpush1.xpose.msra.mxu0 0.0
        %1115 = vmatprep.subr.mxu0 0.0
        %1116 = vmatpush1.xpose.msra.mxu0 0.0
        %1117 = vmatprep.subr.mxu0 0.0
        %1118 = vmatpush1.xpose.msra.mxu0 0.0
        %1119 = vmatprep.subr.mxu0 0.0
        %1120 = vmatpush1.xpose.msra.mxu0 0.0
        %1121 = vmatprep.subr.mxu0 0.0
        %1122 = vmatpush1.xpose.msra.mxu0 0.0
        %1123 = vmatprep.subr.mxu0 0.0
        %1124 = vmatpush1.xpose.msra.mxu0 0.0
        %1125 = vmatprep.subr.mxu0 0.0
        %1126 = vmatpush1.xpose.msra.mxu0 0.0
        %1127 = vmatprep.subr.mxu0 0.0
        %1128 = vmatpush1.xpose.msra.mxu0 0.0
        %1129 = vmatprep.subr.mxu0 0.0
        %1130 = vmatpush1.xpose.msra.mxu0 0.0
        %1131 = vmatprep.subr.mxu0 0.0
        %1132 = vmatpush1.xpose.msra.mxu0 0.0
        %1133 = vmatprep.mubr.f32.mxu0 0.0
        %1134 = vmatmul.mubr.f32.gmra.mrb[0].mxu0 %v1065
        %v1135 = vpop.f32.mrb[0].mxu0
        %v1136 = vadd.f32 0.0, %v1135
        %v1137 = vpop.f32.mrb[0].mxu0
        %1138 = vdwg.mxu0
        %v1139 = vmul.f32 %v1136, 0.25
        %v1140 = vsel %vm968, %v1139, -inf
        %1141 = vmax.xlane.f32.xlu0 %v1140
        %v1142 = vpop.xlane.xlu0 %1141
        %v1143 = vsub.f32 %v1139, %v1142
        %v1144 = vmul.f32 %v1143, 1.442695
        %v1145 = vpow.pop %v1144
        %v1146 = vsel %vm968, %v1145, 0.0
        %1147 = vadd.xlane.f32.xlu0 %v1146
        %v1148 = vpop.xlane.xlu0 %1147
        %1149 = vrot.lane.b32.xlu0 %v886, 48
        %v1150 = vpop.permute.xlu0 %1149
        %v1152 = vsel %vm980, %v1145, 0
        %v1154 = vsel %vm984, %v1150, 0
        %1156 = vmatprep.subr.mxu0 0.0
        %1157 = vmatpush1.msra.mxu0 %v1154
        %1158 = vmatprep.subr.mxu0 0.0
        %1159 = vmatpush1.msra.mxu0 0.0
        %1160 = vmatprep.subr.mxu0 0.0
        %1161 = vmatpush1.msra.mxu0 0.0
        %1162 = vmatprep.subr.mxu0 0.0
        %1163 = vmatpush1.msra.mxu0 0.0
        %1164 = vmatprep.subr.mxu0 0.0
        %1165 = vmatpush1.msra.mxu0 0.0
        %1166 = vmatprep.subr.mxu0 0.0
        %1167 = vmatpush1.msra.mxu0 0.0
        %1168 = vmatprep.subr.mxu0 0.0
        %1169 = vmatpush1.msra.mxu0 0.0
        %1170 = vmatprep.subr.mxu0 0.0
        %1171 = vmatpush1.msra.mxu0 0.0
        %1172 = vmatprep.subr.mxu0 0.0
        %1173 = vmatpush1.msra.mxu0 0.0
        %1174 = vmatprep.subr.mxu0 0.0
        %1175 = vmatpush1.msra.mxu0 0.0
        %1176 = vmatprep.subr.mxu0 0.0
        %1177 = vmatpush1.msra.mxu0 0.0
        %1178 = vmatprep.subr.mxu0 0.0
        %1179 = vmatpush1.msra.mxu0 0.0
        %1180 = vmatprep.subr.mxu0 0.0
        %1181 = vmatpush1.msra.mxu0 0.0
        %1182 = vmatprep.subr.mxu0 0.0
        %1183 = vmatpush1.msra.mxu0 0.0
        %1184 = vmatprep.subr.mxu0 0.0
        %1185 = vmatpush1.msra.mxu0 0.0
        %1186 = vmatprep.subr.mxu0 0.0
        %1187 = vmatpush1.msra.mxu0 0.0
        %1188 = vmatprep.subr.mxu0 0.0
        %1189 = vmatpush1.msra.mxu0 0.0
        %1190 = vmatprep.subr.mxu0 0.0
        %1191 = vmatpush1.msra.mxu0 0.0
        %1192 = vmatprep.subr.mxu0 0.0
        %1193 = vmatpush1.msra.mxu0 0.0
        %1194 = vmatprep.subr.mxu0 0.0
        %1195 = vmatpush1.msra.mxu0 0.0
        %1196 = vmatprep.subr.mxu0 0.0
        %1197 = vmatpush1.msra.mxu0 0.0
        %1198 = vmatprep.subr.mxu0 0.0
        %1199 = vmatpush1.msra.mxu0 0.0
        %1200 = vmatprep.subr.mxu0 0.0
        %1201 = vmatpush1.msra.mxu0 0.0
        %1202 = vmatprep.subr.mxu0 0.0
        %1203 = vmatpush1.msra.mxu0 0.0
        %1204 = vmatprep.subr.mxu0 0.0
        %1205 = vmatpush1.msra.mxu0 0.0
        %1206 = vmatprep.subr.mxu0 0.0
        %1207 = vmatpush1.msra.mxu0 0.0
        %1208 = vmatprep.subr.mxu0 0.0
        %1209 = vmatpush1.msra.mxu0 0.0
        %1210 = vmatprep.subr.mxu0 0.0
        %1211 = vmatpush1.msra.mxu0 0.0
        %1212 = vmatprep.subr.mxu0 0.0
        %1213 = vmatpush1.msra.mxu0 0.0
        %1214 = vmatprep.subr.mxu0 0.0
        %1215 = vmatpush1.msra.mxu0 0.0
        %1216 = vmatprep.subr.mxu0 0.0
        %1217 = vmatpush1.msra.mxu0 0.0
        %1218 = vmatprep.subr.mxu0 0.0
        %1219 = vmatpush1.msra.mxu0 0.0
        %1220 = vmatprep.mubr.f32.mxu0 0.0
        %1221 = vmatmul.mubr.f32.gmra.mrb[0].mxu0 %v1152
        %v1222 = vpop.f32.mrb[0].mxu0
        %v1223 = vadd.f32 0.0, %v1222
        %v1224 = vpop.f32.mrb[0].mxu0
        %1225 = vdwg.mxu0
        %v1226 = vrcp.pop %v1148
        %v1227 = vmul.f32 %v1223, %v1226
        %1229 = vrot.lane.b32.xlu0 %v1227, 16
        %v1230 = vpop.permute.xlu0 %1229
        %vm1232 = vcmask 258176
        %1233 = vst.msk [vmem:[#allocation3] sm:$0x1f] %vm1232, %v1230
        %v1234 = vld [vmem:[#allocation3] sm:$0x1f]
        %v1235 = vld [vmem:[%s9] sm:$0xff]
        %v1236 = vld [vmem:[%s9 + $0x8] sm:$0xff]
        %v1237 = vld [vmem:[%s9 + $0x10] sm:$0xff]
        %v1238 = vld [vmem:[%s9 + $0x18] sm:$0xff]
        %v1240 = vsel %vm815, %v1234, 0
        %1242 = vmatprep.subr.mxu0 0.0
        %1243 = vmatpush1.msra.mxu0 %v1235
        %1244 = vmatprep.subr.mxu0 0.0
        %1245 = vmatpush1.msra.mxu0 %v1236
        %1246 = vmatprep.subr.mxu0 0.0
        %1247 = vmatpush1.msra.mxu0 %v1237
        %1248 = vmatprep.subr.mxu0 0.0
        %1249 = vmatpush1.msra.mxu0 %v1238
        %1250 = vmatprep.subr.mxu0 0.0
        %1251 = vmatpush1.msra.mxu0 0.0
        %1252 = vmatprep.subr.mxu0 0.0
        %1253 = vmatpush1.msra.mxu0 0.0
        %1254 = vmatprep.subr.mxu0 0.0
        %1255 = vmatpush1.msra.mxu0 0.0
        %1256 = vmatprep.subr.mxu0 0.0
        %1257 = vmatpush1.msra.mxu0 0.0
        %1258 = vmatprep.subr.mxu0 0.0
        %1259 = vmatpush1.msra.mxu0 0.0
        %1260 = vmatprep.subr.mxu0 0.0
        %1261 = vmatpush1.msra.mxu0 0.0
        %1262 = vmatprep.subr.mxu0 0.0
        %1263 = vmatpush1.msra.mxu0 0.0
        %1264 = vmatprep.subr.mxu0 0.0
        %1265 = vmatpush1.msra.mxu0 0.0
        %1266 = vmatprep.subr.mxu0 0.0
        %1267 = vmatpush1.msra.mxu0 0.0
        %1268 = vmatprep.subr.mxu0 0.0
        %1269 = vmatpush1.msra.mxu0 0.0
        %1270 = vmatprep.subr.mxu0 0.0
        %1271 = vmatpush1.msra.mxu0 0.0
        %1272 = vmatprep.subr.mxu0 0.0
        %1273 = vmatpush1.msra.mxu0 0.0
        %1274 = vmatprep.subr.mxu0 0.0
        %1275 = vmatpush1.msra.mxu0 0.0
        %1276 = vmatprep.subr.mxu0 0.0
        %1277 = vmatpush1.msra.mxu0 0.0
        %1278 = vmatprep.subr.mxu0 0.0
        %1279 = vmatpush1.msra.mxu0 0.0
        %1280 = vmatprep.subr.mxu0 0.0
        %1281 = vmatpush1.msra.mxu0 0.0
        %1282 = vmatprep.subr.mxu0 0.0
        %1283 = vmatpush1.msra.mxu0 0.0
        %1284 = vmatprep.subr.mxu0 0.0
        %1285 = vmatpush1.msra.mxu0 0.0
        %1286 = vmatprep.subr.mxu0 0.0
        %1287 = vmatpush1.msra.mxu0 0.0
        %1288 = vmatprep.subr.mxu0 0.0
        %1289 = vmatpush1.msra.mxu0 0.0
        %1290 = vmatprep.subr.mxu0 0.0
        %1291 = vmatpush1.msra.mxu0 0.0
        %1292 = vmatprep.subr.mxu0 0.0
        %1293 = vmatpush1.msra.mxu0 0.0
        %1294 = vmatprep.subr.mxu0 0.0
        %1295 = vmatpush1.msra.mxu0 0.0
        %1296 = vmatprep.subr.mxu0 0.0
        %1297 = vmatpush1.msra.mxu0 0.0
        %1298 = vmatprep.subr.mxu0 0.0
        %1299 = vmatpush1.msra.mxu0 0.0
        %1300 = vmatprep.subr.mxu0 0.0
        %1301 = vmatpush1.msra.mxu0 0.0
        %1302 = vmatprep.subr.mxu0 0.0
        %1303 = vmatpush1.msra.mxu0 0.0
        %1304 = vmatprep.subr.mxu0 0.0
        %1305 = vmatpush1.msra.mxu0 0.0
        %1306 = vmatprep.mubr.f32.mxu0 0.0
        %1307 = vmatmul.mubr.f32.gmra.mrb[0].mxu0 %v1240
        %v1308 = vpop.f32.mrb[0].mxu0
        %v1309 = vadd.f32 0.0, %v1308
        %v1310 = vpop.f32.mrb[0].mxu0
        %1311 = vdwg.mxu0
        %v1312 = vadd.f32 %v772, %v1309
        %v1313 = vld [vmem:[%s10] sm:$0x1]
        %v1315 = vlaneseq
        %v1316 = vshrl.u32 %v1315, 7
        %v1317 = vsub.s32 0, %v1316
        %v1318 = vrot.slane %v1313, %v1317
        %v1320 = vadd.f32 %v1312, %v1318
        %v1321 = vld [vmem:[%s11] sm:$0x1]
        %v1322 = vld [vmem:[%s12] sm:$0x1]
        %v1323 = vsel %vm775, %v1320, 0.0
        %1324 = vadd.xlane.f32.xlu0 %v1323
        %v1325 = vpop.xlane.xlu0 %1324
        %v1326 = vmul.f32 %v1325, %v779
        %v1327 = vsub.f32 %v1320, %v1326
        %v1328 = vmul.f32 %v1327, %v1327
        %v1329 = vsel %vm775, %v1328, 0.0
        %1330 = vadd.xlane.f32.xlu0 %v1329
        %v1331 = vpop.xlane.xlu0 %1330
        %v1332 = vmul.f32 %v1331, %v779
        %v1333 = vadd.f32 %v1332, 1e-06
        %v1334 = vrsqrt.pop %v1333
        %v1335 = vmul.f32 %v1327, %v1334
        %v1337 = vlaneseq
        %v1338 = vshrl.u32 %v1337, 7
        %v1339 = vsub.s32 0, %v1338
        %v1340 = vrot.slane %v1321, %v1339
        %v1342 = vmul.f32 %v1335, %v1340
        %v1344 = vlaneseq
        %v1345 = vshrl.u32 %v1344, 7
        %v1346 = vsub.s32 0, %v1345
        %v1347 = vrot.slane %v1322, %v1346
        %v1349 = vadd.f32 %v1342, %v1347
        %v1350 = vld [vmem:[%s13] sm:$0xff]
        %v1351 = vld [vmem:[%s13 + $0x8] sm:$0xff]
        %v1352 = vld [vmem:[%s13 + $0x10] sm:$0xff]
        %v1353 = vld [vmem:[%s13 + $0x18] sm:$0xff]
        %v1354 = vld [vmem:[%s14] sm:$0x1]
        %v1356 = vlaneseq
        %v1357 = vshrl.u32 %v1356, 7
        %v1358 = vsub.s32 0, %v1357
        %v1359 = vrot.slane %v1354, %v1358
        %v1362 = vsel %vm815, %v1349, 0
        %1364 = vmatprep.subr.mxu0 0.0
        %1365 = vmatpush1.msra.mxu0 %v1350
        %1366 = vmatprep.subr.mxu0 0.0
        %1367 = vmatpush1.msra.mxu0 %v1351
        %1368 = vmatprep.subr.mxu0 0.0
        %1369 = vmatpush1.msra.mxu0 %v1352
        %1370 = vmatprep.subr.mxu0 0.0
        %1371 = vmatpush1.msra.mxu0 %v1353
        %1372 = vmatprep.subr.mxu0 0.0
        %1373 = vmatpush1.msra.mxu0 0.0
        %1374 = vmatprep.subr.mxu0 0.0
        %1375 = vmatpush1.msra.mxu0 0.0
        %1376 = vmatprep.subr.mxu0 0.0
        %1377 = vmatpush1.msra.mxu0 0.0
        %1378 = vmatprep.subr.mxu0 0.0
        %1379 = vmatpush1.msra.mxu0 0.0
        %1380 = vmatprep.subr.mxu0 0.0
        %1381 = vmatpush1.msra.mxu0 0.0
        %1382 = vmatprep.subr.mxu0 0.0
        %1383 = vmatpush1.msra.mxu0 0.0
        %1384 = vmatprep.subr.mxu0 0.0
        %1385 = vmatpush1.msra.mxu0 0.0
        %1386 = vmatprep.subr.mxu0 0.0
        %1387 = vmatpush1.msra.mxu0 0.0
        %1388 = vmatprep.subr.mxu0 0.0
        %1389 = vmatpush1.msra.mxu0 0.0
        %1390 = vmatprep.subr.mxu0 0.0
        %1391 = vmatpush1.msra.mxu0 0.0
        %1392 = vmatprep.subr.mxu0 0.0
        %1393 = vmatpush1.msra.mxu0 0.0
        %1394 = vmatprep.subr.mxu0 0.0
        %1395 = vmatpush1.msra.mxu0 0.0
        %1396 = vmatprep.subr.mxu0 0.0
        %1397 = vmatpush1.msra.mxu0 0.0
        %1398 = vmatprep.subr.mxu0 0.0
        %1399 = vmatpush1.msra.mxu0 0.0
        %1400 = vmatprep.subr.mxu0 0.0
        %1401 = vmatpush1.msra.mxu0 0.0
        %1402 = vmatprep.subr.mxu0 0.0
        %1403 = vmatpush1.msra.mxu0 0.0
        %1404 = vmatprep.subr.mxu0 0.0
        %1405 = vmatpush1.msra.mxu0 0.0
        %1406 = vmatprep.subr.mxu0 0.0
        %1407 = vmatpush1.msra.mxu0 0.0
        %1408 = vmatprep.subr.mxu0 0.0
        %1409 = vmatpush1.msra.mxu0 0.0
        %1410 = vmatprep.subr.mxu0 0.0
        %1411 = vmatpush1.msra.mxu0 0.0
        %1412 = vmatprep.subr.mxu0 0.0
        %1413 = vmatpush1.msra.mxu0 0.0
        %1414 = vmatprep.subr.mxu0 0.0
        %1415 = vmatpush1.msra.mxu0 0.0
        %1416 = vmatprep.subr.mxu0 0.0
        %1417 = vmatpush1.msra.mxu0 0.0
        %1418 = vmatprep.subr.mxu0 0.0
        %1419 = vmatpush1.msra.mxu0 0.0
        %1420 = vmatprep.subr.mxu0 0.0
        %1421 = vmatpush1.msra.mxu0 0.0
        %1422 = vmatprep.subr.mxu0 0.0
        %1423 = vmatpush1.msra.mxu0 0.0
        %1424 = vmatprep.subr.mxu0 0.0
        %1425 = vmatpush1.msra.mxu0 0.0
        %1426 = vmatprep.subr.mxu0 0.0
        %1427 = vmatpush1.msra.mxu0 0.0
        %1428 = vmatprep.mubr.f32.mxu0 0.0
        %1429 = vmatmul.mubr.f32.gmra.mrb[0].mxu0 %v1362
        %v1430 = vpop.f32.mrb[0].mxu0
        %v1431 = vadd.f32 %v1359, %v1430
        %v1432 = vpop.f32.mrb[0].mxu0
        %1433 = vdwg.mxu0
        %v1434 = vmul.f32 %v1431, 0.5
        %v1435 = vmul.f32 %v1431, 0.044715
        %v1436 = vmul.f32 %v1435, %v1431
        %v1437 = vmul.f32 %v1436, %v1431
        %v1438 = vadd.f32 %v1431, %v1437
        %v1439 = vmul.f32 %v1438, 0.7978846
        %v1440 = vtanh.pop %v1439
        %v1441 = vadd.f32 %v1440, 1.0
        %v1442 = vmul.f32 %v1434, %v1441
        %v1443 = vld [vmem:[%s15] sm:$0xff]
        %v1444 = vld [vmem:[%s15 + $0x8] sm:$0xff]
        %v1445 = vld [vmem:[%s15 + $0x10] sm:$0xff]
        %v1446 = vld [vmem:[%s15 + $0x18] sm:$0xff]
        %v1447 = vld [vmem:[%s15 + $0x20] sm:$0xff]
        %v1448 = vld [vmem:[%s15 + $0x28] sm:$0xff]
        %v1449 = vld [vmem:[%s15 + $0x30] sm:$0xff]
        %v1450 = vld [vmem:[%s15 + $0x38] sm:$0xff]
        %v1451 = vld [vmem:[%s15 + $0x40] sm:$0xff]
        %v1452 = vld [vmem:[%s15 + $0x48] sm:$0xff]
        %v1453 = vld [vmem:[%s15 + $0x50] sm:$0xff]
        %v1454 = vld [vmem:[%s15 + $0x58] sm:$0xff]
        %v1455 = vld [vmem:[%s15 + $0x60] sm:$0xff]
        %v1456 = vld [vmem:[%s15 + $0x68] sm:$0xff]
        %v1457 = vld [vmem:[%s15 + $0x70] sm:$0xff]
        %v1458 = vld [vmem:[%s15 + $0x78] sm:$0xff]
        %1459 = vmatprep.subr.mxu0 0.0
        %1460 = vmatpush1.msra.mxu0 %v1443
        %1461 = vmatprep.subr.mxu0 0.0
        %1462 = vmatpush1.msra.mxu0 %v1444
        %1463 = vmatprep.subr.mxu0 0.0
        %1464 = vmatpush1.msra.mxu0 %v1445
        %1465 = vmatprep.subr.mxu0 0.0
        %1466 = vmatpush1.msra.mxu0 %v1446
        %1467 = vmatprep.subr.mxu0 0.0
        %1468 = vmatpush1.msra.mxu0 %v1447
        %1469 = vmatprep.subr.mxu0 0.0
        %1470 = vmatpush1.msra.mxu0 %v1448
        %1471 = vmatprep.subr.mxu0 0.0
        %1472 = vmatpush1.msra.mxu0 %v1449
        %1473 = vmatprep.subr.mxu0 0.0
        %1474 = vmatpush1.msra.mxu0 %v1450
        %1475 = vmatprep.subr.mxu0 0.0
        %1476 = vmatpush1.msra.mxu0 %v1451
        %1477 = vmatprep.subr.mxu0 0.0
        %1478 = vmatpush1.msra.mxu0 %v1452
        %1479 = vmatprep.subr.mxu0 0.0
        %1480 = vmatpush1.msra.mxu0 %v1453
        %1481 = vmatprep.subr.mxu0 0.0
        %1482 = vmatpush1.msra.mxu0 %v1454
        %1483 = vmatprep.subr.mxu0 0.0
        %1484 = vmatpush1.msra.mxu0 %v1455
        %1485 = vmatprep.subr.mxu0 0.0
        %1486 = vmatpush1.msra.mxu0 %v1456
        %1487 = vmatprep.subr.mxu0 0.0
        %1488 = vmatpush1.msra.mxu0 %v1457
        %1489 = vmatprep.subr.mxu0 0.0
        %1490 = vmatpush1.msra.mxu0 %v1458
        %1491 = vmatprep.subr.mxu0 0.0
        %1492 = vmatpush1.msra.mxu0 0.0
        %1493 = vmatprep.subr.mxu0 0.0
        %1494 = vmatpush1.msra.mxu0 0.0
        %1495 = vmatprep.subr.mxu0 0.0
        %1496 = vmatpush1.msra.mxu0 0.0
        %1497 = vmatprep.subr.mxu0 0.0
        %1498 = vmatpush1.msra.mxu0 0.0
        %1499 = vmatprep.subr.mxu0 0.0
        %1500 = vmatpush1.msra.mxu0 0.0
        %1501 = vmatprep.subr.mxu0 0.0
        %1502 = vmatpush1.msra.mxu0 0.0
        %1503 = vmatprep.subr.mxu0 0.0
        %1504 = vmatpush1.msra.mxu0 0.0
        %1505 = vmatprep.subr.mxu0 0.0
        %1506 = vmatpush1.msra.mxu0 0.0
        %1507 = vmatprep.subr.mxu0 0.0
        %1508 = vmatpush1.msra.mxu0 0.0
        %1509 = vmatprep.subr.mxu0 0.0
        %1510 = vmatpush1.msra.mxu0 0.0
        %1511 = vmatprep.subr.mxu0 0.0
        %1512 = vmatpush1.msra.mxu0 0.0
        %1513 = vmatprep.subr.mxu0 0.0
        %1514 = vmatpush1.msra.mxu0 0.0
        %1515 = vmatprep.subr.mxu0 0.0
        %1516 = vmatpush1.msra.mxu0 0.0
        %1517 = vmatprep.subr.mxu0 0.0
        %1518 = vmatpush1.msra.mxu0 0.0
        %1519 = vmatprep.subr.mxu0 0.0
        %1520 = vmatpush1.msra.mxu0 0.0
        %1521 = vmatprep.subr.mxu0 0.0
        %1522 = vmatpush1.msra.mxu0 0.0
        %1523 = vmatprep.mubr.f32.mxu0 0.0
        %1524 = vmatmul.mubr.f32.gmra.mrb[0].mxu0 %v1442
        %v1525 = vpop.f32.mrb[0].mxu0
        %v1526 = vadd.f32 0.0, %v1525
        %v1527 = vpop.f32.mrb[0].mxu0
        %1528 = vdwg.mxu0
        %v1529 = vadd.f32 %v1320, %v1526
        %v1530 = vld [vmem:[%s16] sm:$0x1]
        %v1532 = vlaneseq
        %v1533 = vshrl.u32 %v1532, 7
        %v1534 = vsub.s32 0, %v1533
        %v1535 = vrot.slane %v1530, %v1534
        %v1537 = vadd.f32 %v1529, %v1535
        %s1538 = scalar_lea.vmem %s5, 1
        %v1539 = vld [vmem:[%s1538] sm:$0x1]
        %s1540 = scalar_lea.vmem %s6, 1
        %v1541 = vld [vmem:[%s1540] sm:$0x1]
        %v1542 = vsel %vm775, %v1537, 0.0
        %1543 = vadd.xlane.f32.xlu0 %v1542
        %v1544 = vpop.xlane.xlu0 %1543
        %v1545 = vmul.f32 %v1544, %v779
        %v1546 = vsub.f32 %v1537, %v1545
        %v1547 = vmul.f32 %v1546, %v1546
        %v1548 = vsel %vm775, %v1547, 0.0
        %1549 = vadd.xlane.f32.xlu0 %v1548
        %v1550 = vpop.xlane.xlu0 %1549
        %v1551 = vmul.f32 %v1550, %v779
        %v1552 = vadd.f32 %v1551, 1e-06
        %v1553 = vrsqrt.pop %v1552
        %v1554 = vmul.f32 %v1546, %v1553
        %v1556 = vlaneseq
        %v1557 = vshrl.u32 %v1556, 7
        %v1558 = vsub.s32 0, %v1557
        %v1559 = vrot.slane %v1539, %v1558
        %v1561 = vmul.f32 %v1554, %v1559
        %v1563 = vlaneseq
        %v1564 = vshrl.u32 %v1563, 7
        %v1565 = vsub.s32 0, %v1564
        %v1566 = vrot.slane %v1541, %v1565
        %v1568 = vadd.f32 %v1561, %v1566
        %s1569 = scalar_lea.vmem %s7, 32
        %v1570 = vld [vmem:[%s1569] sm:$0xff]
        %v1571 = vld [vmem:[%s1569 + $0x8] sm:$0xff]
        %v1572 = vld [vmem:[%s1569 + $0x10] sm:$0xff]
        %v1573 = vld [vmem:[%s1569 + $0x18] sm:$0xff]
        %s1574 = scalar_lea.vmem %s8, 1
        %v1575 = vld [vmem:[%s1574] sm:$0x1]
        %v1577 = vlaneseq
        %v1578 = vshrl.u32 %v1577, 7
        %v1579 = vsub.s32 0, %v1578
        %v1580 = vrot.slane %v1575, %v1579
        %v1583 = vsel %vm815, %v1568, 0
        %1585 = vmatprep.subr.mxu0 0.0
        %1586 = vmatpush1.msra.mxu0 %v1570
        %1587 = vmatprep.subr.mxu0 0.0
        %1588 = vmatpush1.msra.mxu0 %v1571
        %1589 = vmatprep.subr.mxu0 0.0
        %1590 = vmatpush1.msra.mxu0 %v1572
        %1591 = vmatprep.subr.mxu0 0.0
        %1592 = vmatpush1.msra.mxu0 %v1573
        %1593 = vmatprep.subr.mxu0 0.0
        %1594 = vmatpush1.msra.mxu0 0.0
        %1595 = vmatprep.subr.mxu0 0.0
        %1596 = vmatpush1.msra.mxu0 0.0
        %1597 = vmatprep.subr.mxu0 0.0
        %1598 = vmatpush1.msra.mxu0 0.0
        %1599 = vmatprep.subr.mxu0 0.0
        %1600 = vmatpush1.msra.mxu0 0.0
        %1601 = vmatprep.subr.mxu0 0.0
        %1602 = vmatpush1.msra.mxu0 0.0
        %1603 = vmatprep.subr.mxu0 0.0
        %1604 = vmatpush1.msra.mxu0 0.0
        %1605 = vmatprep.subr.mxu0 0.0
        %1606 = vmatpush1.msra.mxu0 0.0
        %1607 = vmatprep.subr.mxu0 0.0
        %1608 = vmatpush1.msra.mxu0 0.0
        %1609 = vmatprep.subr.mxu0 0.0
        %1610 = vmatpush1.msra.mxu0 0.0
        %1611 = vmatprep.subr.mxu0 0.0
        %1612 = vmatpush1.msra.mxu0 0.0
        %1613 = vmatprep.subr.mxu0 0.0
        %1614 = vmatpush1.msra.mxu0 0.0
        %1615 = vmatprep.subr.mxu0 0.0
        %1616 = vmatpush1.msra.mxu0 0.0
        %1617 = vmatprep.subr.mxu0 0.0
        %1618 = vmatpush1.msra.mxu0 0.0
        %1619 = vmatprep.subr.mxu0 0.0
        %1620 = vmatpush1.msra.mxu0 0.0
        %1621 = vmatprep.subr.mxu0 0.0
        %1622 = vmatpush1.msra.mxu0 0.0
        %1623 = vmatprep.subr.mxu0 0.0
        %1624 = vmatpush1.msra.mxu0 0.0
        %1625 = vmatprep.subr.mxu0 0.0
        %1626 = vmatpush1.msra.mxu0 0.0
        %1627 = vmatprep.subr.mxu0 0.0
        %1628 = vmatpush1.msra.mxu0 0.0
        %1629 = vmatprep.subr.mxu0 0.0
        %1630 = vmatpush1.msra.mxu0 0.0
        %1631 = vmatprep.subr.mxu0 0.0
        %1632 = vmatpush1.msra.mxu0 0.0
        %1633 = vmatprep.subr.mxu0 0.0
        %1634 = vmatpush1.msra.mxu0 0.0
        %1635 = vmatprep.subr.mxu0 0.0
        %1636 = vmatpush1.msra.mxu0 0.0
        %1637 = vmatprep.subr.mxu0 0.0
        %1638 = vmatpush1.msra.mxu0 0.0
        %1639 = vmatprep.subr.mxu0 0.0
        %1640 = vmatpush1.msra.mxu0 0.0
        %1641 = vmatprep.subr.mxu0 0.0
        %1642 = vmatpush1.msra.mxu0 0.0
        %1643 = vmatprep.subr.mxu0 0.0
        %1644 = vmatpush1.msra.mxu0 0.0
        %1645 = vmatprep.subr.mxu0 0.0
        %1646 = vmatpush1.msra.mxu0 0.0
        %1647 = vmatprep.subr.mxu0 0.0
        %1648 = vmatpush1.msra.mxu0 0.0
        %1649 = vmatprep.mubr.f32.mxu0 0.0
        %1650 = vmatmul.mubr.f32.gmra.mrb[0].mxu0 %v1583
        %v1651 = vpop.f32.mrb[0].mxu0
        %v1652 = vadd.f32 %v1580, %v1651
        %v1653 = vpop.f32.mrb[0].mxu0
        %1654 = vdwg.mxu0
        %1656 = vrot.lane.b32.xlu0 %v1652, 96
        %v1657 = vpop.permute.xlu0 %1656
        %v1658 = vsel %vm892, %v1652, 0
        %v1660 = vsel %vm892, %v1657, 0
        %1662 = vmatprep.subr.mxu0 0.0
        %1663 = vmatpush1.xpose.msra.mxu0 %v1660
        %1664 = vmatprep.subr.mxu0 0.0
        %1665 = vmatpush1.xpose.msra.mxu0 0.0
        %1666 = vmatprep.subr.mxu0 0.0
        %1667 = vmatpush1.xpose.msra.mxu0 0.0
        %1668 = vmatprep.subr.mxu0 0.0
        %1669 = vmatpush1.xpose.msra.mxu0 0.0
        %1670 = vmatprep.subr.mxu0 0.0
        %1671 = vmatpush1.xpose.msra.mxu0 0.0
        %1672 = vmatprep.subr.mxu0 0.0
        %1673 = vmatpush1.xpose.msra.mxu0 0.0
        %1674 = vmatprep.subr.mxu0 0.0
        %1675 = vmatpush1.xpose.msra.mxu0 0.0
        %1676 = vmatprep.subr.mxu0 0.0
        %1677 = vmatpush1.xpose.msra.mxu0 0.0
        %1678 = vmatprep.subr.mxu0 0.0
        %1679 = vmatpush1.xpose.msra.mxu0 0.0
        %1680 = vmatprep.subr.mxu0 0.0
        %1681 = vmatpush1.xpose.msra.mxu0 0.0
        %1682 = vmatprep.subr.mxu0 0.0
        %1683 = vmatpush1.xpose.msra.mxu0 0.0
        %1684 = vmatprep.subr.mxu0 0.0
        %1685 = vmatpush1.xpose.msra.mxu0 0.0
        %1686 = vmatprep.subr.mxu0 0.0
        %1687 = vmatpush1.xpose.msra.mxu0 0.0
        %1688 = vmatprep.subr.mxu0 0.0
        %1689 = vmatpush1.xpose.msra.mxu0 0.0
        %1690 = vmatprep.subr.mxu0 0.0
        %1691 = vmatpush1.xpose.msra.mxu0 0.0
        %1692 = vmatprep.subr.mxu0 0.0
        %1693 = vmatpush1.xpose.msra.mxu0 0.0
        %1694 = vmatprep.subr.mxu0 0.0
        %1695 = vmatpush1.xpose.msra.mxu0 0.0
        %1696 = vmatprep.subr.mxu0 0.0
        %1697 = vmatpush1.xpose.msra.mxu0 0.0
        %1698 = vmatprep.subr.mxu0 0.0
        %1699 = vmatpush1.xpose.msra.mxu0 0.0
        %1700 = vmatprep.subr.mxu0 0.0
        %1701 = vmatpush1.xpose.msra.mxu0 0.0
        %1702 = vmatprep.subr.mxu0 0.0
        %1703 = vmatpush1.xpose.msra.mxu0 0.0
        %1704 = vmatprep.subr.mxu0 0.0
        %1705 = vmatpush1.xpose.msra.mxu0 0.0
        %1706 = vmatprep.subr.mxu0 0.0
        %1707 = vmatpush1.xpose.msra.mxu0 0.0
        %1708 = vmatprep.subr.mxu0 0.0
        %1709 = vmatpush1.xpose.msra.mxu0 0.0
        %1710 = vmatprep.subr.mxu0 0.0
        %1711 = vmatpush1.xpose.msra.mxu0 0.0
        %1712 = vmatprep.subr.mxu0 0.0
        %1713 = vmatpush1.xpose.msra.mxu0 0.0
        %1714 = vmatprep.subr.mxu0 0.0
        %1715 = vmatpush1.xpose.msra.mxu0 0.0
        %1716 = vmatprep.subr.mxu0 0.0
        %1717 = vmatpush1.xpose.msra.mxu0 0.0
        %1718 = vmatprep.subr.mxu0 0.0
        %1719 = vmatpush1.xpose.msra.mxu0 0.0
        %1720 = vmatprep.subr.mxu0 0.0
        %1721 = vmatpush1.xpose.msra.mxu0 0.0
        %1722 = vmatprep.subr.mxu0 0.0
        %1723 = vmatpush1.xpose.msra.mxu0 0.0
        %1724 = vmatprep.subr.mxu0 0.0
        %1725 = vmatpush1.xpose.msra.mxu0 0.0
        %1726 = vmatprep.mubr.f32.mxu0 0.0
        %1727 = vmatmul.mubr.f32.gmra.mrb[0].mxu0 %v1658
        %v1728 = vpop.f32.mrb[0].mxu0
        %v1729 = vadd.f32 0.0, %v1728
        %v1730 = vpop.f32.mrb[0].mxu0
        %1731 = vdwg.mxu0
        %v1732 = vmul.f32 %v1729, 0.25
        %v1733 = vsel %vm968, %v1732, -inf
        %1734 = vmax.xlane.f32.xlu0 %v1733
        %v1735 = vpop.xlane.xlu0 %1734
        %v1736 = vsub.f32 %v1732, %v1735
        %v1737 = vmul.f32 %v1736, 1.442695
        %v1738 = vpow.pop %v1737
        %v1739 = vsel %vm968, %v1738, 0.0
        %1740 = vadd.xlane.f32.xlu0 %v1739
        %v1741 = vpop.xlane.xlu0 %1740
        %1742 = vrot.lane.b32.xlu0 %v1652, 64
        %v1743 = vpop.permute.xlu0 %1742
        %v1745 = vsel %vm980, %v1738, 0
        %v1747 = vsel %vm984, %v1743, 0
        %1749 = vmatprep.subr.mxu0 0.0
        %1750 = vmatpush1.msra.mxu0 %v1747
        %1751 = vmatprep.subr.mxu0 0.0
        %1752 = vmatpush1.msra.mxu0 0.0
        %1753 = vmatprep.subr.mxu0 0.0
        %1754 = vmatpush1.msra.mxu0 0.0
        %1755 = vmatprep.subr.mxu0 0.0
        %1756 = vmatpush1.msra.mxu0 0.0
        %1757 = vmatprep.subr.mxu0 0.0
        %1758 = vmatpush1.msra.mxu0 0.0
        %1759 = vmatprep.subr.mxu0 0.0
        %1760 = vmatpush1.msra.mxu0 0.0
        %1761 = vmatprep.subr.mxu0 0.0
        %1762 = vmatpush1.msra.mxu0 0.0
        %1763 = vmatprep.subr.mxu0 0.0
        %1764 = vmatpush1.msra.mxu0 0.0
        %1765 = vmatprep.subr.mxu0 0.0
        %1766 = vmatpush1.msra.mxu0 0.0
        %1767 = vmatprep.subr.mxu0 0.0
        %1768 = vmatpush1.msra.mxu0 0.0
        %1769 = vmatprep.subr.mxu0 0.0
        %1770 = vmatpush1.msra.mxu0 0.0
        %1771 = vmatprep.subr.mxu0 0.0
        %1772 = vmatpush1.msra.mxu0 0.0
        %1773 = vmatprep.subr.mxu0 0.0
        %1774 = vmatpush1.msra.mxu0 0.0
        %1775 = vmatprep.subr.mxu0 0.0
        %1776 = vmatpush1.msra.mxu0 0.0
        %1777 = vmatprep.subr.mxu0 0.0
        %1778 = vmatpush1.msra.mxu0 0.0
        %1779 = vmatprep.subr.mxu0 0.0
        %1780 = vmatpush1.msra.mxu0 0.0
        %1781 = vmatprep.subr.mxu0 0.0
        %1782 = vmatpush1.msra.mxu0 0.0
        %1783 = vmatprep.subr.mxu0 0.0
        %1784 = vmatpush1.msra.mxu0 0.0
        %1785 = vmatprep.subr.mxu0 0.0
        %1786 = vmatpush1.msra.mxu0 0.0
        %1787 = vmatprep.subr.mxu0 0.0
        %1788 = vmatpush1.msra.mxu0 0.0
        %1789 = vmatprep.subr.mxu0 0.0
        %1790 = vmatpush1.msra.mxu0 0.0
        %1791 = vmatprep.subr.mxu0 0.0
        %1792 = vmatpush1.msra.mxu0 0.0
        %1793 = vmatprep.subr.mxu0 0.0
        %1794 = vmatpush1.msra.mxu0 0.0
        %1795 = vmatprep.subr.mxu0 0.0
        %1796 = vmatpush1.msra.mxu0 0.0
        %1797 = vmatprep.subr.mxu0 0.0
        %1798 = vmatpush1.msra.mxu0 0.0
        %1799 = vmatprep.subr.mxu0 0.0
        %1800 = vmatpush1.msra.mxu0 0.0
        %1801 = vmatprep.subr.mxu0 0.0
        %1802 = vmatpush1.msra.mxu0 0.0
        %1803 = vmatprep.subr.mxu0 0.0
        %1804 = vmatpush1.msra.mxu0 0.0
        %1805 = vmatprep.subr.mxu0 0.0
        %1806 = vmatpush1.msra.mxu0 0.0
        %1807 = vmatprep.subr.mxu0 0.0
        %1808 = vmatpush1.msra.mxu0 0.0
        %1809 = vmatprep.subr.mxu0 0.0
        %1810 = vmatpush1.msra.mxu0 0.0
        %1811 = vmatprep.subr.mxu0 0.0
        %1812 = vmatpush1.msra.mxu0 0.0
        %1813 = vmatprep.mubr.f32.mxu0 0.0
        %1814 = vmatmul.mubr.f32.gmra.mrb[0].mxu0 %v1745
        %v1815 = vpop.f32.mrb[0].mxu0
        %v1816 = vadd.f32 0.0, %v1815
        %v1817 = vpop.f32.mrb[0].mxu0
        %1818 = vdwg.mxu0
        %v1819 = vrcp.pop %v1741
        %v1820 = vmul.f32 %v1816, %v1819
        %1821 = vst.msk [vmem:[#allocation3] sm:$0x1f] %vm1059, %v1820
        %1822 = vrot.lane.b32.xlu0 %v1652, 112
        %v1823 = vpop.permute.xlu0 %1822
        %1824 = vrot.lane.b32.xlu0 %v1652, 80
        %v1825 = vpop.permute.xlu0 %1824
        %v1826 = vsel %vm892, %v1823, 0
        %v1828 = vsel %vm892, %v1825, 0
        %1830 = vmatprep.subr.mxu0 0.0
        %1831 = vmatpush1.xpose.msra.mxu0 %v1828
        %1832 = vmatprep.subr.mxu0 0.0
        %1833 = vmatpush1.xpose.msra.mxu0 0.0
        %1834 = vmatprep.subr.mxu0 0.0
        %1835 = vmatpush1.xpose.msra.mxu0 0.0
        %1836 = vmatprep.subr.mxu0 0.0
        %1837 = vmatpush1.xpose.msra.mxu0 0.0
        %1838 = vmatprep.subr.mxu0 0.0
        %1839 = vmatpush1.xpose.msra.mxu0 0.0
        %1840 = vmatprep.subr.mxu0 0.0
        %1841 = vmatpush1.xpose.msra.mxu0 0.0
        %1842 = vmatprep.subr.mxu0 0.0
        %1843 = vmatpush1.xpose.msra.mxu0 0.0
        %1844 = vmatprep.subr.mxu0 0.0
        %1845 = vmatpush1.xpose.msra.mxu0 0.0
        %1846 = vmatprep.subr.mxu0 0.0
        %1847 = vmatpush1.xpose.msra.mxu0 0.0
        %1848 = vmatprep.subr.mxu0 0.0
        %1849 = vmatpush1.xpose.msra.mxu0 0.0
        %1850 = vmatprep.subr.mxu0 0.0
        %1851 = vmatpush1.xpose.msra.mxu0 0.0
        %1852 = vmatprep.subr.mxu0 0.0
        %1853 = vmatpush1.xpose.msra.mxu0 0.0
        %1854 = vmatprep.subr.mxu0 0.0
        %1855 = vmatpush1.xpose.msra.mxu0 0.0
        %1856 = vmatprep.subr.mxu0 0.0
        %1857 = vmatpush1.xpose.msra.mxu0 0.0
        %1858 = vmatprep.subr.mxu0 0.0
        %1859 = vmatpush1.xpose.msra.mxu0 0.0
        %1860 = vmatprep.subr.mxu0 0.0
        %1861 = vmatpush1.xpose.msra.mxu0 0.0
        %1862 = vmatprep.subr.mxu0 0.0
        %1863 = vmatpush1.xpose.msra.mxu0 0.0
        %1864 = vmatprep.subr.mxu0 0.0
        %1865 = vmatpush1.xpose.msra.mxu0 0.0
        %1866 = vmatprep.subr.mxu0 0.0
        %1867 = vmatpush1.xpose.msra.mxu0 0.0
        %1868 = vmatprep.subr.mxu0 0.0
        %1869 = vmatpush1.xpose.msra.mxu0 0.0
        %1870 = vmatprep.subr.mxu0 0.0
        %1871 = vmatpush1.xpose.msra.mxu0 0.0
        %1872 = vmatprep.subr.mxu0 0.0
        %1873 = vmatpush1.xpose.msra.mxu0 0.0
        %1874 = vmatprep.subr.mxu0 0.0
        %1875 = vmatpush1.xpose.msra.mxu0 0.0
        %1876 = vmatprep.subr.mxu0 0.0
        %1877 = vmatpush1.xpose.msra.mxu0 0.0
        %1878 = vmatprep.subr.mxu0 0.0
        %1879 = vmatpush1.xpose.msra.mxu0 0.0
        %1880 = vmatprep.subr.mxu0 0.0
        %1881 = vmatpush1.xpose.msra.mxu0 0.0
        %1882 = vmatprep.subr.mxu0 0.0
        %1883 = vmatpush1.xpose.msra.mxu0 0.0
        %1884 = vmatprep.subr.mxu0 0.0
        %1885 = vmatpush1.xpose.msra.mxu0 0.0
        %1886 = vmatprep.subr.mxu0 0.0
        %1887 = vmatpush1.xpose.msra.mxu0 0.0
        %1888 = vmatprep.subr.mxu0 0.0
        %1889 = vmatpush1.xpose.msra.mxu0 0.0
        %1890 = vmatprep.subr.mxu0 0.0
        %1891 = vmatpush1.xpose.msra.mxu0 0.0
        %1892 = vmatprep.subr.mxu0 0.0
        %1893 = vmatpush1.xpose.msra.mxu0 0.0
        %1894 = vmatprep.mubr.f32.mxu0 0.0
        %1895 = vmatmul.mubr.f32.gmra.mrb[0].mxu0 %v1826
        %v1896 = vpop.f32.mrb[0].mxu0
        %v1897 = vadd.f32 0.0, %v1896
        %v1898 = vpop.f32.mrb[0].mxu0
        %1899 = vdwg.mxu0
        %v1900 = vmul.f32 %v1897, 0.25
        %v1901 = vsel %vm968, %v1900, -inf
        %1902 = vmax.xlane.f32.xlu0 %v1901
        %v1903 = vpop.xlane.xlu0 %1902
        %v1904 = vsub.f32 %v1900, %v1903
        %v1905 = vmul.f32 %v1904, 1.442695
        %v1906 = vpow.pop %v1905
        %v1907 = vsel %vm968, %v1906, 0.0
        %1908 = vadd.xlane.f32.xlu0 %v1907
        %v1909 = vpop.xlane.xlu0 %1908
        %1910 = vrot.lane.b32.xlu0 %v1652, 48
        %v1911 = vpop.permute.xlu0 %1910
        %v1913 = vsel %vm980, %v1906, 0
        %v1915 = vsel %vm984, %v1911, 0
        %1917 = vmatprep.subr.mxu0 0.0
        %1918 = vmatpush1.msra.mxu0 %v1915
        %1919 = vmatprep.subr.mxu0 0.0
        %1920 = vmatpush1.msra.mxu0 0.0
        %1921 = vmatprep.subr.mxu0 0.0
        %1922 = vmatpush1.msra.mxu0 0.0
        %1923 = vmatprep.subr.mxu0 0.0
        %1924 = vmatpush1.msra.mxu0 0.0
        %1925 = vmatprep.subr.mxu0 0.0
        %1926 = vmatpush1.msra.mxu0 0.0
        %1927 = vmatprep.subr.mxu0 0.0
        %1928 = vmatpush1.msra.mxu0 0.0
        %1929 = vmatprep.subr.mxu0 0.0
        %1930 = vmatpush1.msra.mxu0 0.0
        %1931 = vmatprep.subr.mxu0 0.0
        %1932 = vmatpush1.msra.mxu0 0.0
        %1933 = vmatprep.subr.mxu0 0.0
        %1934 = vmatpush1.msra.mxu0 0.0
        %1935 = vmatprep.subr.mxu0 0.0
        %1936 = vmatpush1.msra.mxu0 0.0
        %1937 = vmatprep.subr.mxu0 0.0
        %1938 = vmatpush1.msra.mxu0 0.0
        %1939 = vmatprep.subr.mxu0 0.0
        %1940 = vmatpush1.msra.mxu0 0.0
        %1941 = vmatprep.subr.mxu0 0.0
        %1942 = vmatpush1.msra.mxu0 0.0
        %1943 = vmatprep.subr.mxu0 0.0
        %1944 = vmatpush1.msra.mxu0 0.0
        %1945 = vmatprep.subr.mxu0 0.0
        %1946 = vmatpush1.msra.mxu0 0.0
        %1947 = vmatprep.subr.mxu0 0.0
        %1948 = vmatpush1.msra.mxu0 0.0
        %1949 = vmatprep.subr.mxu0 0.0
        %1950 = vmatpush1.msra.mxu0 0.0
        %1951 = vmatprep.subr.mxu0 0.0
        %1952 = vmatpush1.msra.mxu0 0.0
        %1953 = vmatprep.subr.mxu0 0.0
        %1954 = vmatpush1.msra.mxu0 0.0
        %1955 = vmatprep.subr.mxu0 0.0
        %1956 = vmatpush1.msra.mxu0 0.0
        %1957 = vmatprep.subr.mxu0 0.0
        %1958 = vmatpush1.msra.mxu0 0.0
        %1959 = vmatprep.subr.mxu0 0.0
        %1960 = vmatpush1.msra.mxu0 0.0
        %1961 = vmatprep.subr.mxu0 0.0
        %1962 = vmatpush1.msra.mxu0 0.0
        %1963 = vmatprep.subr.mxu0 0.0
        %1964 = vmatpush1.msra.mxu0 0.0
        %1965 = vmatprep.subr.mxu0 0.0
        %1966 = vmatpush1.msra.mxu0 0.0
        %1967 = vmatprep.subr.mxu0 0.0
        %1968 = vmatpush1.msra.mxu0 0.0
        %1969 = vmatprep.subr.mxu0 0.0
        %1970 = vmatpush1.msra.mxu0 0.0
        %1971 = vmatprep.subr.mxu0 0.0
        %1972 = vmatpush1.msra.mxu0 0.0
        %1973 = vmatprep.subr.mxu0 0.0
        %1974 = vmatpush1.msra.mxu0 0.0
        %1975 = vmatprep.subr.mxu0 0.0
        %1976 = vmatpush1.msra.mxu0 0.0
        %1977 = vmatprep.subr.mxu0 0.0
        %1978 = vmatpush1.msra.mxu0 0.0
        %1979 = vmatprep.subr.mxu0 0.0
        %1980 = vmatpush1.msra.mxu0 0.0
        %1981 = vmatprep.mubr.f32.mxu0 0.0
        %1982 = vmatmul.mubr.f32.gmra.mrb[0].mxu0 %v1913
        %v1983 = vpop.f32.mrb[0].mxu0
        %v1984 = vadd.f32 0.0, %v1983
        %v1985 = vpop.f32.mrb[0].mxu0
        %1986 = vdwg.mxu0
        %v1987 = vrcp.pop %v1909
        %v1988 = vmul.f32 %v1984, %v1987
        %1990 = vrot.lane.b32.xlu0 %v1988, 16
        %v1991 = vpop.permute.xlu0 %1990
        %1993 = vst.msk [vmem:[#allocation3] sm:$0x1f] %vm1232, %v1991
        %v1994 = vld [vmem:[#allocation3] sm:$0x1f]
        %s1995 = scalar_lea.vmem %s9, 32
        %v1996 = vld [vmem:[%s1995] sm:$0xff]
        %v1997 = vld [vmem:[%s1995 + $0x8] sm:$0xff]
        %v1998 = vld [vmem:[%s1995 + $0x10] sm:$0xff]
        %v1999 = vld [vmem:[%s1995 + $0x18] sm:$0xff]
        %v2001 = vsel %vm815, %v1994, 0
        %2003 = vmatprep.subr.mxu0 0.0
        %2004 = vmatpush1.msra.mxu0 %v1996
        %2005 = vmatprep.subr.mxu0 0.0
        %2006 = vmatpush1.msra.mxu0 %v1997
        %2007 = vmatprep.subr.mxu0 0.0
        %2008 = vmatpush1.msra.mxu0 %v1998
        %2009 = vmatprep.subr.mxu0 0.0
        %2010 = vmatpush1.msra.mxu0 %v1999
        %2011 = vmatprep.subr.mxu0 0.0
        %2012 = vmatpush1.msra.mxu0 0.0
        %2013 = vmatprep.subr.mxu0 0.0
        %2014 = vmatpush1.msra.mxu0 0.0
        %2015 = vmatprep.subr.mxu0 0.0
        %2016 = vmatpush1.msra.mxu0 0.0
        %2017 = vmatprep.subr.mxu0 0.0
        %2018 = vmatpush1.msra.mxu0 0.0
        %2019 = vmatprep.subr.mxu0 0.0
        %2020 = vmatpush1.msra.mxu0 0.0
        %2021 = vmatprep.subr.mxu0 0.0
        %2022 = vmatpush1.msra.mxu0 0.0
        %2023 = vmatprep.subr.mxu0 0.0
        %2024 = vmatpush1.msra.mxu0 0.0
        %2025 = vmatprep.subr.mxu0 0.0
        %2026 = vmatpush1.msra.mxu0 0.0
        %2027 = vmatprep.subr.mxu0 0.0
        %2028 = vmatpush1.msra.mxu0 0.0
        %2029 = vmatprep.subr.mxu0 0.0
        %2030 = vmatpush1.msra.mxu0 0.0
        %2031 = vmatprep.subr.mxu0 0.0
        %2032 = vmatpush1.msra.mxu0 0.0
        %2033 = vmatprep.subr.mxu0 0.0
        %2034 = vmatpush1.msra.mxu0 0.0
        %2035 = vmatprep.subr.mxu0 0.0
        %2036 = vmatpush1.msra.mxu0 0.0
        %2037 = vmatprep.subr.mxu0 0.0
        %2038 = vmatpush1.msra.mxu0 0.0
        %2039 = vmatprep.subr.mxu0 0.0
        %2040 = vmatpush1.msra.mxu0 0.0
        %2041 = vmatprep.subr.mxu0 0.0
        %2042 = vmatpush1.msra.mxu0 0.0
        %2043 = vmatprep.subr.mxu0 0.0
        %2044 = vmatpush1.msra.mxu0 0.0
        %2045 = vmatprep.subr.mxu0 0.0
        %2046 = vmatpush1.msra.mxu0 0.0
        %2047 = vmatprep.subr.mxu0 0.0
        %2048 = vmatpush1.msra.mxu0 0.0
        %2049 = vmatprep.subr.mxu0 0.0
        %2050 = vmatpush1.msra.mxu0 0.0
        %2051 = vmatprep.subr.mxu0 0.0
        %2052 = vmatpush1.msra.mxu0 0.0
        %2053 = vmatprep.subr.mxu0 0.0
        %2054 = vmatpush1.msra.mxu0 0.0
        %2055 = vmatprep.subr.mxu0 0.0
        %2056 = vmatpush1.msra.mxu0 0.0
        %2057 = vmatprep.subr.mxu0 0.0
        %2058 = vmatpush1.msra.mxu0 0.0
        %2059 = vmatprep.subr.mxu0 0.0
        %2060 = vmatpush1.msra.mxu0 0.0
        %2061 = vmatprep.subr.mxu0 0.0
        %2062 = vmatpush1.msra.mxu0 0.0
        %2063 = vmatprep.subr.mxu0 0.0
        %2064 = vmatpush1.msra.mxu0 0.0
        %2065 = vmatprep.subr.mxu0 0.0
        %2066 = vmatpush1.msra.mxu0 0.0
        %2067 = vmatprep.mubr.f32.mxu0 0.0
        %2068 = vmatmul.mubr.f32.gmra.mrb[0].mxu0 %v2001
        %v2069 = vpop.f32.mrb[0].mxu0
        %v2070 = vadd.f32 0.0, %v2069
        %v2071 = vpop.f32.mrb[0].mxu0
        %2072 = vdwg.mxu0
        %v2073 = vadd.f32 %v1537, %v2070
        %s2074 = scalar_lea.vmem %s10, 1
        %v2075 = vld [vmem:[%s2074] sm:$0x1]
        %v2077 = vlaneseq
        %v2078 = vshrl.u32 %v2077, 7
        %v2079 = vsub.s32 0, %v2078
        %v2080 = vrot.slane %v2075, %v2079
        %v2082 = vadd.f32 %v2073, %v2080
        %s2083 = scalar_lea.vmem %s11, 1
        %v2084 = vld [vmem:[%s2083] sm:$0x1]
        %s2085 = scalar_lea.vmem %s12, 1
        %v2086 = vld [vmem:[%s2085] sm:$0x1]
        %v2087 = vsel %vm775, %v2082, 0.0
        %2088 = vadd.xlane.f32.xlu0 %v2087
        %v2089 = vpop.xlane.xlu0 %2088
        %v2090 = vmul.f32 %v2089, %v779
        %v2091 = vsub.f32 %v2082, %v2090
        %v2092 = vmul.f32 %v2091, %v2091
        %v2093 = vsel %vm775, %v2092, 0.0
        %2094 = vadd.xlane.f32.xlu0 %v2093
        %v2095 = vpop.xlane.xlu0 %2094
        %v2096 = vmul.f32 %v2095, %v779
        %v2097 = vadd.f32 %v2096, 1e-06
        %v2098 = vrsqrt.pop %v2097
        %v2099 = vmul.f32 %v2091, %v2098
        %v2101 = vlaneseq
        %v2102 = vshrl.u32 %v2101, 7
        %v2103 = vsub.s32 0, %v2102
        %v2104 = vrot.slane %v2084, %v2103
        %v2106 = vmul.f32 %v2099, %v2104
        %v2108 = vlaneseq
        %v2109 = vshrl.u32 %v2108, 7
        %v2110 = vsub.s32 0, %v2109
        %v2111 = vrot.slane %v2086, %v2110
        %v2113 = vadd.f32 %v2106, %v2111
        %s2114 = scalar_lea.vmem %s13, 32
        %v2115 = vld [vmem:[%s2114] sm:$0xff]
        %v2116 = vld [vmem:[%s2114 + $0x8] sm:$0xff]
        %v2117 = vld [vmem:[%s2114 + $0x10] sm:$0xff]
        %v2118 = vld [vmem:[%s2114 + $0x18] sm:$0xff]
        %s2119 = scalar_lea.vmem %s14, 1
        %v2120 = vld [vmem:[%s2119] sm:$0x1]
        %v2122 = vlaneseq
        %v2123 = vshrl.u32 %v2122, 7
        %v2124 = vsub.s32 0, %v2123
        %v2125 = vrot.slane %v2120, %v2124
        %v2128 = vsel %vm815, %v2113, 0
        %2130 = vmatprep.subr.mxu0 0.0
        %2131 = vmatpush1.msra.mxu0 %v2115
        %2132 = vmatprep.subr.mxu0 0.0
        %2133 = vmatpush1.msra.mxu0 %v2116
        %2134 = vmatprep.subr.mxu0 0.0
        %2135 = vmatpush1.msra.mxu0 %v2117
        %2136 = vmatprep.subr.mxu0 0.0
        %2137 = vmatpush1.msra.mxu0 %v2118
        %2138 = vmatprep.subr.mxu0 0.0
        %2139 = vmatpush1.msra.mxu0 0.0
        %2140 = vmatprep.subr.mxu0 0.0
        %2141 = vmatpush1.msra.mxu0 0.0
        %2142 = vmatprep.subr.mxu0 0.0
        %2143 = vmatpush1.msra.mxu0 0.0
        %2144 = vmatprep.subr.mxu0 0.0
        %2145 = vmatpush1.msra.mxu0 0.0
        %2146 = vmatprep.subr.mxu0 0.0
        %2147 = vmatpush1.msra.mxu0 0.0
        %2148 = vmatprep.subr.mxu0 0.0
        %2149 = vmatpush1.msra.mxu0 0.0
        %2150 = vmatprep.subr.mxu0 0.0
        %2151 = vmatpush1.msra.mxu0 0.0
        %2152 = vmatprep.subr.mxu0 0.0
        %2153 = vmatpush1.msra.mxu0 0.0
        %2154 = vmatprep.subr.mxu0 0.0
        %2155 = vmatpush1.msra.mxu0 0.0
        %2156 = vmatprep.subr.mxu0 0.0
        %2157 = vmatpush1.msra.mxu0 0.0
        %2158 = vmatprep.subr.mxu0 0.0
        %2159 = vmatpush1.msra.mxu0 0.0
        %2160 = vmatprep.subr.mxu0 0.0
        %2161 = vmatpush1.msra.mxu0 0.0
        %2162 = vmatprep.subr.mxu0 0.0
        %2163 = vmatpush1.msra.mxu0 0.0
        %2164 = vmatprep.subr.mxu0 0.0
        %2165 = vmatpush1.msra.mxu0 0.0
        %2166 = vmatprep.subr.mxu0 0.0
        %2167 = vmatpush1.msra.mxu0 0.0
        %2168 = vmatprep.subr.mxu0 0.0
        %2169 = vmatpush1.msra.mxu0 0.0
        %2170 = vmatprep.subr.mxu0 0.0
        %2171 = vmatpush1.msra.mxu0 0.0
        %2172 = vmatprep.subr.mxu0 0.0
        %2173 = vmatpush1.msra.mxu0 0.0
        %2174 = vmatprep.subr.mxu0 0.0
        %2175 = vmatpush1.msra.mxu0 0.0
        %2176 = vmatprep.subr.mxu0 0.0
        %2177 = vmatpush1.msra.mxu0 0.0
        %2178 = vmatprep.subr.mxu0 0.0
        %2179 = vmatpush1.msra.mxu0 0.0
        %2180 = vmatprep.subr.mxu0 0.0
        %2181 = vmatpush1.msra.mxu0 0.0
        %2182 = vmatprep.subr.mxu0 0.0
        %2183 = vmatpush1.msra.mxu0 0.0
        %2184 = vmatprep.subr.mxu0 0.0
        %2185 = vmatpush1.msra.mxu0 0.0
        %2186 = vmatprep.subr.mxu0 0.0
        %2187 = vmatpush1.msra.mxu0 0.0
        %2188 = vmatprep.subr.mxu0 0.0
        %2189 = vmatpush1.msra.mxu0 0.0
        %2190 = vmatprep.subr.mxu0 0.0
        %2191 = vmatpush1.msra.mxu0 0.0
        %2192 = vmatprep.subr.mxu0 0.0
        %2193 = vmatpush1.msra.mxu0 0.0
        %2194 = vmatprep.mubr.f32.mxu0 0.0
        %2195 = vmatmul.mubr.f32.gmra.mrb[0].mxu0 %v2128
        %v2196 = vpop.f32.mrb[0].mxu0
        %v2197 = vadd.f32 %v2125, %v2196
        %v2198 = vpop.f32.mrb[0].mxu0
        %2199 = vdwg.mxu0
        %v2200 = vmul.f32 %v2197, 0.5
        %v2201 = vmul.f32 %v2197, 0.044715
        %v2202 = vmul.f32 %v2201, %v2197
        %v2203 = vmul.f32 %v2202, %v2197
        %v2204 = vadd.f32 %v2197, %v2203
        %v2205 = vmul.f32 %v2204, 0.7978846
        %v2206 = vtanh.pop %v2205
        %v2207 = vadd.f32 %v2206, 1.0
        %v2208 = vmul.f32 %v2200, %v2207
        %s2209 = scalar_lea.vmem %s15, 128
        %v2210 = vld [vmem:[%s2209] sm:$0xff]
        %v2211 = vld [vmem:[%s2209 + $0x8] sm:$0xff]
        %v2212 = vld [vmem:[%s2209 + $0x10] sm:$0xff]
        %v2213 = vld [vmem:[%s2209 + $0x18] sm:$0xff]
        %v2214 = vld [vmem:[%s2209 + $0x20] sm:$0xff]
        %v2215 = vld [vmem:[%s2209 + $0x28] sm:$0xff]
        %v2216 = vld [vmem:[%s2209 + $0x30] sm:$0xff]
        %v2217 = vld [vmem:[%s2209 + $0x38] sm:$0xff]
        %v2218 = vld [vmem:[%s2209 + $0x40] sm:$0xff]
        %v2219 = vld [vmem:[%s2209 + $0x48] sm:$0xff]
        %v2220 = vld [vmem:[%s2209 + $0x50] sm:$0xff]
        %v2221 = vld [vmem:[%s2209 + $0x58] sm:$0xff]
        %v2222 = vld [vmem:[%s2209 + $0x60] sm:$0xff]
        %v2223 = vld [vmem:[%s2209 + $0x68] sm:$0xff]
        %v2224 = vld [vmem:[%s2209 + $0x70] sm:$0xff]
        %v2225 = vld [vmem:[%s2209 + $0x78] sm:$0xff]
        %2226 = vmatprep.subr.mxu0 0.0
        %2227 = vmatpush1.msra.mxu0 %v2210
        %2228 = vmatprep.subr.mxu0 0.0
        %2229 = vmatpush1.msra.mxu0 %v2211
        %2230 = vmatprep.subr.mxu0 0.0
        %2231 = vmatpush1.msra.mxu0 %v2212
        %2232 = vmatprep.subr.mxu0 0.0
        %2233 = vmatpush1.msra.mxu0 %v2213
        %2234 = vmatprep.subr.mxu0 0.0
        %2235 = vmatpush1.msra.mxu0 %v2214
        %2236 = vmatprep.subr.mxu0 0.0
        %2237 = vmatpush1.msra.mxu0 %v2215
        %2238 = vmatprep.subr.mxu0 0.0
        %2239 = vmatpush1.msra.mxu0 %v2216
        %2240 = vmatprep.subr.mxu0 0.0
        %2241 = vmatpush1.msra.mxu0 %v2217
        %2242 = vmatprep.subr.mxu0 0.0
        %2243 = vmatpush1.msra.mxu0 %v2218
        %2244 = vmatprep.subr.mxu0 0.0
        %2245 = vmatpush1.msra.mxu0 %v2219
        %2246 = vmatprep.subr.mxu0 0.0
        %2247 = vmatpush1.msra.mxu0 %v2220
        %2248 = vmatprep.subr.mxu0 0.0
        %2249 = vmatpush1.msra.mxu0 %v2221
        %2250 = vmatprep.subr.mxu0 0.0
        %2251 = vmatpush1.msra.mxu0 %v2222
        %2252 = vmatprep.subr.mxu0 0.0
        %2253 = vmatpush1.msra.mxu0 %v2223
        %2254 = vmatprep.subr.mxu0 0.0
        %2255 = vmatpush1.msra.mxu0 %v2224
        %2256 = vmatprep.subr.mxu0 0.0
        %2257 = vmatpush1.msra.mxu0 %v2225
        %2258 = vmatprep.subr.mxu0 0.0
        %2259 = vmatpush1.msra.mxu0 0.0
        %2260 = vmatprep.subr.mxu0 0.0
        %2261 = vmatpush1.msra.mxu0 0.0
        %2262 = vmatprep.subr.mxu0 0.0
        %2263 = vmatpush1.msra.mxu0 0.0
        %2264 = vmatprep.subr.mxu0 0.0
        %2265 = vmatpush1.msra.mxu0 0.0
        %2266 = vmatprep.subr.mxu0 0.0
        %2267 = vmatpush1.msra.mxu0 0.0
        %2268 = vmatprep.subr.mxu0 0.0
        %2269 = vmatpush1.msra.mxu0 0.0
        %2270 = vmatprep.subr.mxu0 0.0
        %2271 = vmatpush1.msra.mxu0 0.0
        %2272 = vmatprep.subr.mxu0 0.0
        %2273 = vmatpush1.msra.mxu0 0.0
        %2274 = vmatprep.subr.mxu0 0.0
        %2275 = vmatpush1.msra.mxu0 0.0
        %2276 = vmatprep.subr.mxu0 0.0
        %2277 = vmatpush1.msra.mxu0 0.0
        %2278 = vmatprep.subr.mxu0 0.0
        %2279 = vmatpush1.msra.mxu0 0.0
        %2280 = vmatprep.subr.mxu0 0.0
        %2281 = vmatpush1.msra.mxu0 0.0
        %2282 = vmatprep.subr.mxu0 0.0
        %2283 = vmatpush1.msra.mxu0 0.0
        %2284 = vmatprep.subr.mxu0 0.0
        %2285 = vmatpush1.msra.mxu0 0.0
        %2286 = vmatprep.subr.mxu0 0.0
        %2287 = vmatpush1.msra.mxu0 0.0
        %2288 = vmatprep.subr.mxu0 0.0
        %2289 = vmatpush1.msra.mxu0 0.0
        %2290 = vmatprep.mubr.f32.mxu0 0.0
        %2291 = vmatmul.mubr.f32.gmra.mrb[0].mxu0 %v2208
        %v2292 = vpop.f32.mrb[0].mxu0
        %v2293 = vadd.f32 0.0, %v2292
        %v2294 = vpop.f32.mrb[0].mxu0
        %2295 = vdwg.mxu0
        %v2296 = vadd.f32 %v2082, %v2293
        %s2297 = scalar_lea.vmem %s16, 1
        %v2298 = vld [vmem:[%s2297] sm:$0x1]
        %v2300 = vlaneseq
        %v2301 = vshrl.u32 %v2300, 7
        %v2302 = vsub.s32 0, %v2301
        %v2303 = vrot.slane %v2298, %v2302
        %v2305 = vadd.f32 %v2296, %v2303
        %v2306 = vld [vmem:[%s17] sm:$0x1]
        %v2307 = vld [vmem:[%s18] sm:$0x1]
        %v2308 = vsel %vm775, %v2305, 0.0
        %2309 = vadd.xlane.f32.xlu0 %v2308
        %v2310 = vpop.xlane.xlu0 %2309
        %v2311 = vmul.f32 %v2310, %v779
        %v2312 = vsub.f32 %v2305, %v2311
        %v2313 = vmul.f32 %v2312, %v2312
        %v2314 = vsel %vm775, %v2313, 0.0
        %2315 = vadd.xlane.f32.xlu0 %v2314
        %v2316 = vpop.xlane.xlu0 %2315
        %v2317 = vmul.f32 %v2316, %v779
        %v2318 = vadd.f32 %v2317, 1e-06
        %v2319 = vrsqrt.pop %v2318
        %v2320 = vmul.f32 %v2312, %v2319
        %v2322 = vlaneseq
        %v2323 = vshrl.u32 %v2322, 7
        %v2324 = vsub.s32 0, %v2323
        %v2325 = vrot.slane %v2306, %v2324
        %v2327 = vmul.f32 %v2320, %v2325
        %v2329 = vlaneseq
        %v2330 = vshrl.u32 %v2329, 7
        %v2331 = vsub.s32 0, %v2330
        %v2332 = vrot.slane %v2307, %v2331
        %v2334 = vadd.f32 %v2327, %v2332
        %v2335 = vld [vmem:[%s19] sm:$0xff]
        %v2336 = vld [vmem:[%s19 + $0x8] sm:$0xff]
        %v2337 = vld [vmem:[%s19 + $0x10] sm:$0xff]
        %v2338 = vld [vmem:[%s19 + $0x18] sm:$0xff]
        %v2339 = vld [vmem:[%s20] sm:$0x1]
        %v2341 = vsel %vm815, %v2334, 0
        %2343 = vmatprep.subr.mxu0 0.0
        %2344 = vmatpush1.msra.mxu0 %v2335
        %2345 = vmatprep.subr.mxu0 0.0
        %2346 = vmatpush1.msra.mxu0 %v2336
        %2347 = vmatprep.subr.mxu0 0.0
        %2348 = vmatpush1.msra.mxu0 %v2337
        %2349 = vmatprep.subr.mxu0 0.0
        %2350 = vmatpush1.msra.mxu0 %v2338
        %2351 = vmatprep.subr.mxu0 0.0
        %2352 = vmatpush1.msra.mxu0 0.0
        %2353 = vmatprep.subr.mxu0 0.0
        %2354 = vmatpush1.msra.mxu0 0.0
        %2355 = vmatprep.subr.mxu0 0.0
        %2356 = vmatpush1.msra.mxu0 0.0
        %2357 = vmatprep.subr.mxu0 0.0
        %2358 = vmatpush1.msra.mxu0 0.0
        %2359 = vmatprep.subr.mxu0 0.0
        %2360 = vmatpush1.msra.mxu0 0.0
        %2361 = vmatprep.subr.mxu0 0.0
        %2362 = vmatpush1.msra.mxu0 0.0
        %2363 = vmatprep.subr.mxu0 0.0
        %2364 = vmatpush1.msra.mxu0 0.0
        %2365 = vmatprep.subr.mxu0 0.0
        %2366 = vmatpush1.msra.mxu0 0.0
        %2367 = vmatprep.subr.mxu0 0.0
        %2368 = vmatpush1.msra.mxu0 0.0
        %2369 = vmatprep.subr.mxu0 0.0
        %2370 = vmatpush1.msra.mxu0 0.0
        %2371 = vmatprep.subr.mxu0 0.0
        %2372 = vmatpush1.msra.mxu0 0.0
        %2373 = vmatprep.subr.mxu0 0.0
        %2374 = vmatpush1.msra.mxu0 0.0
        %2375 = vmatprep.subr.mxu0 0.0
        %2376 = vmatpush1.msra.mxu0 0.0
        %2377 = vmatprep.subr.mxu0 0.0
        %2378 = vmatpush1.msra.mxu0 0.0
        %2379 = vmatprep.subr.mxu0 0.0
        %2380 = vmatpush1.msra.mxu0 0.0
        %2381 = vmatprep.subr.mxu0 0.0
        %2382 = vmatpush1.msra.mxu0 0.0
        %2383 = vmatprep.subr.mxu0 0.0
        %2384 = vmatpush1.msra.mxu0 0.0
        %2385 = vmatprep.subr.mxu0 0.0
        %2386 = vmatpush1.msra.mxu0 0.0
        %2387 = vmatprep.subr.mxu0 0.0
        %2388 = vmatpush1.msra.mxu0 0.0
        %2389 = vmatprep.subr.mxu0 0.0
        %2390 = vmatpush1.msra.mxu0 0.0
        %2391 = vmatprep.subr.mxu0 0.0
        %2392 = vmatpush1.msra.mxu0 0.0
        %2393 = vmatprep.subr.mxu0 0.0
        %2394 = vmatpush1.msra.mxu0 0.0
        %2395 = vmatprep.subr.mxu0 0.0
        %2396 = vmatpush1.msra.mxu0 0.0
        %2397 = vmatprep.subr.mxu0 0.0
        %2398 = vmatpush1.msra.mxu0 0.0
        %2399 = vmatprep.subr.mxu0 0.0
        %2400 = vmatpush1.msra.mxu0 0.0
        %2401 = vmatprep.subr.mxu0 0.0
        %2402 = vmatpush1.msra.mxu0 0.0
        %2403 = vmatprep.subr.mxu0 0.0
        %2404 = vmatpush1.msra.mxu0 0.0
        %2405 = vmatprep.subr.mxu0 0.0
        %2406 = vmatpush1.msra.mxu0 0.0
        %2407 = vmatprep.mubr.f32.mxu0 0.0
        %2408 = vmatmul.mubr.f32.gmra.mrb[0].mxu0 %v2341
        %v2409 = vpop.f32.mrb[0].mxu0
        %v2410 = vadd.f32 %v2339, %v2409
        %v2411 = vpop.f32.mrb[0].mxu0
        %2412 = vdwg.mxu0
        %2413 = vst [vmem:[%s648] sm:$0x1] %v2410
        %s2414 = sand.u32 %s489, 1
        %s2415 = scalar_lea.sflag [#allocation5], %s2414
        %s2416 = sand.u32 %s489, 1
        %s2417 = scalar_lea.vmem [#allocation4], %s2416
        // Predicated region
        $region105: #{classification_model_forward.1} parent=103 // pred_check
          %p2418 = pneg %p499
        $region106: #{classification_model_forward.1} parent=103 // pred_check_branch
          %2420 = sbr.rel (%p2418) target = $region108
        $region107: #{classification_model_forward.1} parent=103 // pred_region
          %s2422 = ssub.s32 16, 16
          %2423 = vsyncadd %s2415, %s2422
          %s2424 = smul.addr %s35, 16
          %s2425 = scalar_lea.hbm %s21, %s2424
          %s2427 = sshll.u32 %s2417, 4
          %s2428 = int_to_ptr.vmem [resolvable:$true] %s2427
          %2430 = dma.vmem_to_hbm [thread:$0]  %s2428, 16, %s2425, %s2415
        $region108: #{classification_model_forward.1} parent=103 // pred_fallthru
          _
      $region104: #{classification_model_forward.1} parent=5 // pred_fallthru
        _
      %p2431 = scmp.le.s32.totalorder 2, %s30
      // Predicated region
      $region109: #{classification_model_forward.1} parent=5 // pred_check
        %p2432 = pneg %p2431
      $region110: #{classification_model_forward.1} parent=5 // pred_check_branch
        %2434 = sbr.rel (%p2432) target = $region112
      $region111: #{classification_model_forward.1} parent=5 // pred_region
        %s2435 = ssub.s32 %s30, 2
        // Predicated region
        $region113: #{classification_model_forward.1} parent=111 // pred_check
          %p2436 = pneg %p505
        $region114: #{classification_model_forward.1} parent=111 // pred_check_branch
          %2438 = sbr.rel (%p2436) target = $region116
        $region115: #{classification_model_forward.1} parent=111 // pred_region
          %s2439 = sand.u32 %s490, 1
          %s2440 = scalar_lea.sflag [#allocation5], %s2439
          %s2441 = sand.u32 %s490, 1
          %s2442 = scalar_lea.vmem [#allocation4], %s2441
          %2443 = dma.done %s2440, 16
        $region116: #{classification_model_forward.1} parent=111 // pred_fallthru
          _
      $region112: #{classification_model_forward.1} parent=5 // pred_fallthru
        _
    $region6: #{classification_model_forward.1} parent=1 // loop_footer
      %s34 = sadd.s32 1, %s30
    $region7: #{classification_model_forward.1} parent=1 // loop_footer_branch
      %29 = sbr.rel target = $region3
    $region8: #{classification_model_forward.1} parent=1 // loop_exit
      _
    %2444 = vsyncpa [#allocation5], 1
    %s2445 = scalar_lea.sflag [#allocation5], 1
    %2446 = vsyncpa %s2445, 1

</llo_original>
